<compile_context>
chip_gen: v7x
topology: tpu7x:2x2x1
jax: 0.10.0
libtpu: 0.0.40
codegen_flags: <defaults>
</compile_context>

<pallas_src>
import jax
import jax.numpy as jnp
from jax import lax
from jax.experimental import pallas as pl
from jax.experimental.pallas import tpu as pltpu


# ----------------------------- Fused Pallas kernel ---------------------------

def make_bilstm_kernel(num_layers, T, TB, H):
    """Kernel ref layout (positional):
      refs[0]                     : x tile       (T, TB, E)   time-major, f32
      refs[1 : 1+3L]              : per layer [w_ih_cat (Din,8H) bf16,
                                               w_hh_blk (2H,8H) bf16 (block-diagonal),
                                               b_cat    (1,8H) f32 (= b_ih+b_hh, fwd|bwd)]
      refs[1+3L], refs[2+3L]      : cls_w (1,2H) f32, cls_b (1,1) f32
      refs[3+3L]                  : out tile (TB, 1)
      refs[4+3L:]                 : scratch seq (T,TB,2H) f32, gx (T,TB,8H) bf16
    """

    def kernel(*refs):
        x_ref = refs[0]
        lstm_refs = refs[1:1 + 3 * num_layers]
        cls_w_ref = refs[1 + 3 * num_layers]
        cls_b_ref = refs[2 + 3 * num_layers]
        out_ref = refs[3 + 3 * num_layers]
        seq_sc, gx_sc = refs[4 + 3 * num_layers:]

        def cell(gates, c_prev):
            # One EUP sigmoid over the full (TB, 4H) tile + one tanh on the g slice.
            sig = jax.nn.sigmoid(gates)
            i = sig[:, 0:H]
            f = sig[:, H:2 * H]
            o = sig[:, 3 * H:4 * H]
            g = jnp.tanh(gates[:, 2 * H:3 * H])
            c_new = f * c_prev + i * g
            h_new = o * jnp.tanh(c_new)
            return h_new, c_new

        layer_in_ref = x_ref
        h_f = hb0 = None  # bound by the layer loop below (num_layers >= 1)

        for l in range(num_layers):
            is_last = (l + 1 == num_layers)
            w_ih_ref, w_hh_ref, b_ref = lstm_refs[3 * l:3 * l + 3]

            # Hoisted, fused input projection for both directions:
            # one (T*TB, Din) @ (Din, 8H) MXU pass -> bf16 gx scratch.
            layer_in = layer_in_ref[...]                       # (T, TB, Din)
            Din = layer_in.shape[-1]
            flat = layer_in.reshape(T * TB, Din).astype(jnp.bfloat16)
            gx = jnp.dot(flat, w_ih_ref[...],
                         preferred_element_type=jnp.float32) + b_ref[...]
            gx_sc[...] = gx.reshape(T, TB, 8 * H).astype(jnp.bfloat16)

            whh = w_hh_ref[...]                                # (2H, 8H) bf16 block-diag

            def step(t, carry, whh=whh, is_last=is_last):
                h_f, c_f, h_b, c_b, hb0 = carry
                tb = T - 1 - t                                 # backward reads pos T-1-t

                # One fused recurrent matmul for both directions.
                h_cat = jnp.concatenate([h_f, h_b], axis=-1).astype(jnp.bfloat16)
                rec = jnp.dot(h_cat, whh, preferred_element_type=jnp.float32)  # (TB,8H)

                gates_f = gx_sc[t, :, 0:4 * H].astype(jnp.float32) + rec[:, 0:4 * H]
                gates_b = gx_sc[tb, :, 4 * H:8 * H].astype(jnp.float32) + rec[:, 4 * H:8 * H]
                h_f, c_f = cell(gates_f, c_f)
                h_b, c_b = cell(gates_b, c_b)

                if not is_last:
                    # Merged sequence buffer: fwd -> low H lanes, bwd -> high H lanes.
                    seq_sc[t, :, 0:H] = h_f
                    seq_sc[tb, :, H:2 * H] = h_b
                else:
                    # Backward "last timestep" state is produced at processing step 0.
                    hb0 = jnp.where(t == 0, h_b, hb0)
                return (h_f, c_f, h_b, c_b, hb0)

            z = jnp.zeros((TB, H), jnp.float32)
            h_f, c_f, h_b, c_b, hb0 = lax.fori_loop(
                0, T, step, (z, z, z, z, z), unroll=True)
            # TODO(synk): at H>=128 / T=30 use unroll=4-8 to bound vreg live ranges.

            layer_in_ref = seq_sc                              # next layer reads (T,TB,2H)

        # Head: x[:, -1, :] = concat(fwd final state, bwd state after x[T-1]).
        last = jnp.concatenate([h_f, hb0], axis=-1)            # (TB, 2H)
        # N=1 classifier as VPU multiply + lane reduce (skip an MXU push for one column).
        logits = jnp.sum(last * cls_w_ref[...], axis=-1, keepdims=True) + cls_b_ref[...]
        out_ref[...] = jax.nn.sigmoid(logits)

    return kernel


# ------------------------------ Wrapper ---------------------------------------

def _pick_batch_tile(b_pad):
    # Prefer >=2 tiles (megacore split on v7x) while keeping tiles MXU-friendly.
    for cand in (64, 32, 16, 8):
        if b_pad % cand == 0 and b_pad // cand >= 2:
            return cand
    return min(b_pad, 64)


def prepare_weights(params):
    """Pack per-layer weights for the fused kernel (done once, outside the kernel)."""
    H = params["lstm"][0]["w_hh_f"].shape[0]
    packed = []
    for layer in params["lstm"]:
        w_ih = jnp.concatenate([layer["w_ih_f"], layer["w_ih_b"]], axis=1)   # (Din, 8H)
        w_hh = jnp.zeros((2 * H, 8 * H), jnp.float32)
        w_hh = w_hh.at[:H, :4 * H].set(layer["w_hh_f"])
        w_hh = w_hh.at[H:, 4 * H:].set(layer["w_hh_b"])                       # block-diag
        b = jnp.concatenate([layer["b_f"], layer["b_b"]], axis=1)             # (1, 8H)
        packed += [w_ih.astype(jnp.bfloat16), w_hh.astype(jnp.bfloat16),
                   b.astype(jnp.float32)]
    cls_w = jnp.transpose(params["cls_w"]).astype(jnp.float32)                # (1, 2H)
    cls_b = params["cls_b"].astype(jnp.float32)                               # (1, 1)
    return packed, cls_w, cls_b, H


def bilstm_net_forward(token_ids, params, num_layers):
    # Embedding lookup (fixed table) -- gather glue left to XLA.
    emb = jnp.take(params["embedding"], token_ids, axis=0)      # (B, T, E)
    B, T, E = emb.shape
    x = jnp.transpose(emb, (1, 0, 2)).astype(jnp.float32)       # (T, B, E) time-major

    # Pad batch rows to a multiple of 8 sublanes (zero rows; sliced off at the end).
    B_pad = max(8, ((B + 7) // 8) * 8)
    if B_pad != B:
        x = jnp.pad(x, ((0, 0), (0, B_pad - B), (0, 0)))

    packed, cls_w, cls_b, H = prepare_weights(params)
    TB = _pick_batch_tile(B_pad)
    grid = (B_pad // TB,)

    x_spec = pl.BlockSpec((T, TB, E), lambda b: (0, b, 0))
    weight_specs = [pl.BlockSpec(w.shape, lambda b: (0, 0))
                    for w in packed + [cls_w, cls_b]]
    out_spec = pl.BlockSpec((TB, 1), lambda b: (b, 0))

    scratch = [
        pltpu.VMEM((T, TB, 2 * H), jnp.float32),     # merged fwd|bwd hidden sequence
        pltpu.VMEM((T, TB, 8 * H), jnp.bfloat16),    # fused input-gate projection
    ]

    # Explicit VMEM budget derived from the actual per-tile footprint.
    def nb(shape, itemsize):
        n = 1
        for s in shape:
            n *= s
        return n * itemsize

    fp = 2 * nb((T, TB, E), 4) + 2 * nb((TB, 1), 4)             # x / out tiles (dbl-buf)
    for w in packed + [cls_w, cls_b]:
        fp += 2 * nb(w.shape, jnp.dtype(w.dtype).itemsize)
    fp += nb((T, TB, 2 * H), 4) + nb((T, TB, 8 * H), 2)         # scratch buffers
    fp += nb((T, TB, 8 * H), 4)                                 # f32 gx before bf16 cast
    try:
        phys_vmem = pltpu.get_tpu_info().vmem_capacity_bytes
    except Exception:
        phys_vmem = 64 * 1024 * 1024                            # v7x per-TC floor
    vmem_limit = int(min(max(2 * fp, 16 * 1024 * 1024), 0.9 * phys_vmem))

    kernel = make_bilstm_kernel(num_layers, T, TB, H)
    out = pl.pallas_call(
        kernel,
        out_shape=jax.ShapeDtypeStruct((B_pad, 1), jnp.float32),
        grid=grid,
        in_specs=[x_spec] + weight_specs,
        out_specs=out_spec,
        scratch_shapes=scratch,
        compiler_params=pltpu.CompilerParams(
            dimension_semantics=("parallel",),
            vmem_limit_bytes=vmem_limit),
    )(x, *packed, cls_w, cls_b)
    return out[:B]                                              # (B, 1)


# ------------------------------ Param init -----------------------------------

def init_params(key, vocab, embed_dim, hidden_dim, num_layers):
    keys = iter(jax.random.split(key, 4 + num_layers * 12))
    params = {}
    params["embedding"] = jax.random.normal(next(keys), (vocab, embed_dim),
                                            jnp.float32) * 0.1
    k = 1.0 / jnp.sqrt(hidden_dim)
    lstm = []
    in_dim = embed_dim
    for _ in range(num_layers):
        def u(shape):
            return jax.random.uniform(next(keys), shape, jnp.float32, -k, k)
        layer = {
            "w_ih_f": u((in_dim, 4 * hidden_dim)),
            "w_hh_f": u((hidden_dim, 4 * hidden_dim)),
            "b_f":    u((1, 4 * hidden_dim)) + u((1, 4 * hidden_dim)),  # b_ih + b_hh
            "w_ih_b": u((in_dim, 4 * hidden_dim)),
            "w_hh_b": u((hidden_dim, 4 * hidden_dim)),
            "b_b":    u((1, 4 * hidden_dim)) + u((1, 4 * hidden_dim)),
        }
        lstm.append(layer)
        in_dim = 2 * hidden_dim
    params["lstm"] = lstm
    kc = 1.0 / jnp.sqrt(2 * hidden_dim)
    params["cls_w"] = jax.random.uniform(next(keys), (2 * hidden_dim, 1),
                                         jnp.float32, -kc, kc)
    params["cls_b"] = jax.random.uniform(next(keys), (1, 1),
                                         jnp.float32, -kc, kc)
    return params


# --------------------------------- Main ---------------------------------------

if __name__ == "__main__":
    VOCAB = 64
    EMBED_DIM = 32
    HIDDEN_DIM = 32
    NUM_LAYERS = 2
    BATCH = 2
    SEQ = 8          # small stand-in for sen_len=30

    key = jax.random.PRNGKey(0)
    k_tok, k_par = jax.random.split(key)
    token_ids = jax.random.randint(k_tok, (BATCH, SEQ), 0, VOCAB, dtype=jnp.int32)
    params = init_params(k_par, VOCAB, EMBED_DIM, HIDDEN_DIM, NUM_LAYERS)

    out = bilstm_net_forward(token_ids, params, NUM_LAYERS)
    out = jax.block_until_ready(out)

    assert out.shape == (BATCH, 1)
    assert bool(jnp.all(jnp.isfinite(out)))
    assert bool(jnp.all((out > 0.0) & (out < 1.0)))
    print("KERNEL_OK")
</pallas_src>

<mosaic_0001>
module attributes {stable_mosaic.version = 11 : i64} {
  func.func @kernel(%arg0: i32, %arg1: memref<8x8x32xf32, #tpu.memory_space<vmem>>, %arg2: memref<32x256xbf16, #tpu.memory_space<vmem>>, %arg3: memref<64x256xbf16, #tpu.memory_space<vmem>>, %arg4: memref<1x256xf32, #tpu.memory_space<vmem>>, %arg5: memref<64x256xbf16, #tpu.memory_space<vmem>>, %arg6: memref<64x256xbf16, #tpu.memory_space<vmem>>, %arg7: memref<1x256xf32, #tpu.memory_space<vmem>>, %arg8: memref<1x64xf32, #tpu.memory_space<vmem>>, %arg9: memref<1x1xf32, #tpu.memory_space<vmem>>, %arg10: memref<8x1xf32, #tpu.memory_space<vmem>>, %arg11: memref<8x8x64xf32, #tpu.memory_space<vmem>>, %arg12: memref<8x8x256xbf16, #tpu.memory_space<vmem>>) attributes {dimension_semantics = [#tpu.dimension_semantics<parallel>], iteration_bounds = array<i64: 1>, scalar_prefetch = 0 : i64, scratch_operands = 2 : i64, tpu.core_type = #tpu.core_type<tc>, window_params = [{transform_indices = @transform_0, window_bounds = array<i64: 8, 8, 32>}, {pipeline_mode = #tpu.pipeline_mode<synchronous>, transform_indices = @transform_1, window_bounds = array<i64: 32, 256>}, {pipeline_mode = #tpu.pipeline_mode<synchronous>, transform_indices = @transform_2, window_bounds = array<i64: 64, 256>}, {pipeline_mode = #tpu.pipeline_mode<synchronous>, transform_indices = @transform_3, window_bounds = array<i64: 1, 256>}, {pipeline_mode = #tpu.pipeline_mode<synchronous>, transform_indices = @transform_4, window_bounds = array<i64: 64, 256>}, {pipeline_mode = #tpu.pipeline_mode<synchronous>, transform_indices = @transform_5, window_bounds = array<i64: 64, 256>}, {pipeline_mode = #tpu.pipeline_mode<synchronous>, transform_indices = @transform_6, window_bounds = array<i64: 1, 256>}, {pipeline_mode = #tpu.pipeline_mode<synchronous>, transform_indices = @transform_7, window_bounds = array<i64: 1, 64>}, {pipeline_mode = #tpu.pipeline_mode<synchronous>, transform_indices = @transform_8, window_bounds = array<i64: 1, 1>}, {transform_indices = @transform_9, window_bounds = array<i64: 8, 1>}]} {
    %c0 = arith.constant 0 : index
    %c0_0 = arith.constant 0 : index
    %c0_1 = arith.constant 0 : index
    %0 = vector.load %arg1[%c0, %c0_0, %c0_1] : memref<8x8x32xf32, #tpu.memory_space<vmem>>, vector<8x8x32xf32>
    %1 = vector.shape_cast %0 : vector<8x8x32xf32> to vector<64x32xf32>
    %2 = arith.truncf %1 : vector<64x32xf32> to vector<64x32xbf16>
    %c0_2 = arith.constant 0 : index
    %c0_3 = arith.constant 0 : index
    %3 = vector.load %arg2[%c0_2, %c0_3] : memref<32x256xbf16, #tpu.memory_space<vmem>>, vector<32x256xbf16>
    %cst = arith.constant dense<0.000000e+00> : vector<64x256xf32>
    %4 = tpu.matmul %2, %3, %cst {dimension_numbers = #tpu.dot_dimension_numbers<[1], [0], [0], [1], [0, 0, 1, 1], [], []>} : vector<64x32xbf16>, vector<32x256xbf16>, vector<64x256xf32> -> vector<64x256xf32>
    %c0_4 = arith.constant 0 : index
    %c0_5 = arith.constant 0 : index
    %5 = vector.load %arg4[%c0_4, %c0_5] : memref<1x256xf32, #tpu.memory_space<vmem>>, vector<1x256xf32>
    %6 = vector.broadcast %5 : vector<1x256xf32> to vector<64x256xf32>
    %7 = arith.addf %4, %6 : vector<64x256xf32>
    %8 = vector.shape_cast %7 : vector<64x256xf32> to vector<8x8x256xf32>
    %9 = arith.truncf %8 : vector<8x8x256xf32> to vector<8x8x256xbf16>
    %c0_6 = arith.constant 0 : index
    %c0_7 = arith.constant 0 : index
    %c0_8 = arith.constant 0 : index
    %10 = vector.load %arg12[%c0_6, %c0_7, %c0_8] : memref<8x8x256xbf16, #tpu.memory_space<vmem>>, vector<8x8x256xbf16>
    tpu.vector_store %arg12[%c0_6, %c0_7, %c0_8], %9 {strides = array<i32>} : memref<8x8x256xbf16, #tpu.memory_space<vmem>>, vector<8x8x256xbf16>,
    %c0_9 = arith.constant 0 : index
    %c0_10 = arith.constant 0 : index
    %11 = vector.load %arg3[%c0_9, %c0_10] : memref<64x256xbf16, #tpu.memory_space<vmem>>, vector<64x256xbf16>
    %cst_11 = arith.constant 0.000000e+00 : f32
    %12 = vector.broadcast %cst_11 : f32 to vector<8x32xf32>
    %c0_i32 = arith.constant 0 : i32
    %c7_i32 = arith.constant 7 : i32
    %13 = arith.subi %c7_i32, %c0_i32 : i32
    %14 = tpu.concatenate %12, %12 in 1 : vector<8x32xf32>, vector<8x32xf32> -> vector<8x64xf32>
    %15 = arith.truncf %14 : vector<8x64xf32> to vector<8x64xbf16>
    %cst_12 = arith.constant dense<0.000000e+00> : vector<8x256xf32>
    %16 = tpu.matmul %15, %11, %cst_12 {dimension_numbers = #tpu.dot_dimension_numbers<[1], [0], [0], [1], [0, 0, 1, 1], [], []>} : vector<8x64xbf16>, vector<64x256xbf16>, vector<8x256xf32> -> vector<8x256xf32>
    %17 = arith.index_cast %c0_i32 : i32 to index
    %c0_13 = arith.constant 0 : index
    %c0_14 = arith.constant 0 : index
    %18 = vector.load %arg12[%17, %c0_13, %c0_14] : memref<8x8x256xbf16, #tpu.memory_space<vmem>>, vector<1x8x128xbf16>
    %19 = vector.shape_cast %18 : vector<1x8x128xbf16> to vector<8x128xbf16>
    %20 = arith.extf %19 : vector<8x128xbf16> to vector<8x128xf32>
    %21 = vector.extract_strided_slice %16 {offsets = [0, 0], sizes = [8, 128], strides = [1, 1]} : vector<8x256xf32> to vector<8x128xf32>
    %22 = arith.addf %20, %21 : vector<8x128xf32>
    %23 = arith.index_cast %13 : i32 to index
    %c0_15 = arith.constant 0 : index
    %c128 = arith.constant 128 : index
    %24 = vector.load %arg12[%23, %c0_15, %c128] : memref<8x8x256xbf16, #tpu.memory_space<vmem>>, vector<1x8x128xbf16>
    %25 = vector.shape_cast %24 : vector<1x8x128xbf16> to vector<8x128xbf16>
    %26 = arith.extf %25 : vector<8x128xbf16> to vector<8x128xf32>
    %27 = vector.extract_strided_slice %16 {offsets = [0, 128], sizes = [8, 128], strides = [1, 1]} : vector<8x256xf32> to vector<8x128xf32>
    %28 = arith.addf %26, %27 : vector<8x128xf32>
    %29 = arith.negf %22 : vector<8x128xf32>
    %30 = math.exp %29 : vector<8x128xf32>
    %cst_16 = arith.constant 1.000000e+00 : f32
    %31 = vector.broadcast %cst_16 : f32 to vector<8x128xf32>
    %32 = arith.addf %31, %30 : vector<8x128xf32>
    %33 = arith.divf %31, %32 : vector<8x128xf32>
    %34 = vector.extract_strided_slice %33 {offsets = [0, 0], sizes = [8, 32], strides = [1, 1]} : vector<8x128xf32> to vector<8x32xf32>
    %35 = vector.extract_strided_slice %33 {offsets = [0, 32], sizes = [8, 32], strides = [1, 1]} : vector<8x128xf32> to vector<8x32xf32>
    %36 = vector.extract_strided_slice %33 {offsets = [0, 96], sizes = [8, 32], strides = [1, 1]} : vector<8x128xf32> to vector<8x32xf32>
    %37 = vector.extract_strided_slice %22 {offsets = [0, 64], sizes = [8, 32], strides = [1, 1]} : vector<8x128xf32> to vector<8x32xf32>
    %38 = math.tanh %37 : vector<8x32xf32>
    %39 = arith.mulf %35, %12 : vector<8x32xf32>
    %40 = arith.mulf %34, %38 : vector<8x32xf32>
    %41 = arith.addf %39, %40 : vector<8x32xf32>
    %42 = math.tanh %41 : vector<8x32xf32>
    %43 = arith.mulf %36, %42 : vector<8x32xf32>
    %44 = arith.negf %28 : vector<8x128xf32>
    %45 = math.exp %44 : vector<8x128xf32>
    %cst_17 = arith.constant 1.000000e+00 : f32
    %46 = vector.broadcast %cst_17 : f32 to vector<8x128xf32>
    %47 = arith.addf %46, %45 : vector<8x128xf32>
    %48 = arith.divf %46, %47 : vector<8x128xf32>
    %49 = vector.extract_strided_slice %48 {offsets = [0, 0], sizes = [8, 32], strides = [1, 1]} : vector<8x128xf32> to vector<8x32xf32>
    %50 = vector.extract_strided_slice %48 {offsets = [0, 32], sizes = [8, 32], strides = [1, 1]} : vector<8x128xf32> to vector<8x32xf32>
    %51 = vector.extract_strided_slice %48 {offsets = [0, 96], sizes = [8, 32], strides = [1, 1]} : vector<8x128xf32> to vector<8x32xf32>
    %52 = vector.extract_strided_slice %28 {offsets = [0, 64], sizes = [8, 32], strides = [1, 1]} : vector<8x128xf32> to vector<8x32xf32>
    %53 = math.tanh %52 : vector<8x32xf32>
    %54 = arith.mulf %50, %12 : vector<8x32xf32>
    %55 = arith.mulf %49, %53 : vector<8x32xf32>
    %56 = arith.addf %54, %55 : vector<8x32xf32>
    %57 = math.tanh %56 : vector<8x32xf32>
    %58 = arith.mulf %51, %57 : vector<8x32xf32>
    %59 = arith.index_cast %c0_i32 : i32 to index
    %c0_18 = arith.constant 0 : index
    %c0_19 = arith.constant 0 : index
    %60 = vector.load %arg11[%59, %c0_18, %c0_19] : memref<8x8x64xf32, #tpu.memory_space<vmem>>, vector<1x8x32xf32>
    %61 = vector.shape_cast %60 : vector<1x8x32xf32> to vector<8x32xf32>
    %62 = vector.shape_cast %43 : vector<8x32xf32> to vector<1x8x32xf32>
    tpu.vector_store %arg11[%59, %c0_18, %c0_19], %62 {strides = array<i32>} : memref<8x8x64xf32, #tpu.memory_space<vmem>>, vector<1x8x32xf32>,
    %63 = arith.index_cast %13 : i32 to index
    %c0_20 = arith.constant 0 : index
    %c32 = arith.constant 32 : index
    %64 = vector.load %arg11[%63, %c0_20, %c32] : memref<8x8x64xf32, #tpu.memory_space<vmem>>, vector<1x8x32xf32>
    %65 = vector.shape_cast %64 : vector<1x8x32xf32> to vector<8x32xf32>
    %66 = vector.shape_cast %58 : vector<8x32xf32> to vector<1x8x32xf32>
    tpu.vector_store %arg11[%63, %c0_20, %c32], %66 {strides = array<i32>} : memref<8x8x64xf32, #tpu.memory_space<vmem>>, vector<1x8x32xf32>,
    %c1_i32 = arith.constant 1 : i32
    %c7_i32_21 = arith.constant 7 : i32
    %67 = arith.subi %c7_i32_21, %c1_i32 : i32
    %68 = tpu.concatenate %43, %58 in 1 : vector<8x32xf32>, vector<8x32xf32> -> vector<8x64xf32>
    %69 = arith.truncf %68 : vector<8x64xf32> to vector<8x64xbf16>
    %cst_22 = arith.constant dense<0.000000e+00> : vector<8x256xf32>
    %70 = tpu.matmul %69, %11, %cst_22 {dimension_numbers = #tpu.dot_dimension_numbers<[1], [0], [0], [1], [0, 0, 1, 1], [], []>} : vector<8x64xbf16>, vector<64x256xbf16>, vector<8x256xf32> -> vector<8x256xf32>
    %71 = arith.index_cast %c1_i32 : i32 to index
    %c0_23 = arith.constant 0 : index
    %c0_24 = arith.constant 0 : index
    %72 = vector.load %arg12[%71, %c0_23, %c0_24] : memref<8x8x256xbf16, #tpu.memory_space<vmem>>, vector<1x8x128xbf16>
    %73 = vector.shape_cast %72 : vector<1x8x128xbf16> to vector<8x128xbf16>
    %74 = arith.extf %73 : vector<8x128xbf16> to vector<8x128xf32>
    %75 = vector.extract_strided_slice %70 {offsets = [0, 0], sizes = [8, 128], strides = [1, 1]} : vector<8x256xf32> to vector<8x128xf32>
    %76 = arith.addf %74, %75 : vector<8x128xf32>
    %77 = arith.index_cast %67 : i32 to index
    %c0_25 = arith.constant 0 : index
    %c128_26 = arith.constant 128 : index
    %78 = vector.load %arg12[%77, %c0_25, %c128_26] : memref<8x8x256xbf16, #tpu.memory_space<vmem>>, vector<1x8x128xbf16>
    %79 = vector.shape_cast %78 : vector<1x8x128xbf16> to vector<8x128xbf16>
    %80 = arith.extf %79 : vector<8x128xbf16> to vector<8x128xf32>
    %81 = vector.extract_strided_slice %70 {offsets = [0, 128], sizes = [8, 128], strides = [1, 1]} : vector<8x256xf32> to vector<8x128xf32>
    %82 = arith.addf %80, %81 : vector<8x128xf32>
    %83 = arith.negf %76 : vector<8x128xf32>
    %84 = math.exp %83 : vector<8x128xf32>
    %cst_27 = arith.constant 1.000000e+00 : f32
    %85 = vector.broadcast %cst_27 : f32 to vector<8x128xf32>
    %86 = arith.addf %85, %84 : vector<8x128xf32>
    %87 = arith.divf %85, %86 : vector<8x128xf32>
    %88 = vector.extract_strided_slice %87 {offsets = [0, 0], sizes = [8, 32], strides = [1, 1]} : vector<8x128xf32> to vector<8x32xf32>
    %89 = vector.extract_strided_slice %87 {offsets = [0, 32], sizes = [8, 32], strides = [1, 1]} : vector<8x128xf32> to vector<8x32xf32>
    %90 = vector.extract_strided_slice %87 {offsets = [0, 96], sizes = [8, 32], strides = [1, 1]} : vector<8x128xf32> to vector<8x32xf32>
    %91 = vector.extract_strided_slice %76 {offsets = [0, 64], sizes = [8, 32], strides = [1, 1]} : vector<8x128xf32> to vector<8x32xf32>
    %92 = math.tanh %91 : vector<8x32xf32>
    %93 = arith.mulf %89, %41 : vector<8x32xf32>
    %94 = arith.mulf %88, %92 : vector<8x32xf32>
    %95 = arith.addf %93, %94 : vector<8x32xf32>
    %96 = math.tanh %95 : vector<8x32xf32>
    %97 = arith.mulf %90, %96 : vector<8x32xf32>
    %98 = arith.negf %82 : vector<8x128xf32>
    %99 = math.exp %98 : vector<8x128xf32>
    %cst_28 = arith.constant 1.000000e+00 : f32
    %100 = vector.broadcast %cst_28 : f32 to vector<8x128xf32>
    %101 = arith.addf %100, %99 : vector<8x128xf32>
    %102 = arith.divf %100, %101 : vector<8x128xf32>
    %103 = vector.extract_strided_slice %102 {offsets = [0, 0], sizes = [8, 32], strides = [1, 1]} : vector<8x128xf32> to vector<8x32xf32>
    %104 = vector.extract_strided_slice %102 {offsets = [0, 32], sizes = [8, 32], strides = [1, 1]} : vector<8x128xf32> to vector<8x32xf32>
    %105 = vector.extract_strided_slice %102 {offsets = [0, 96], sizes = [8, 32], strides = [1, 1]} : vector<8x128xf32> to vector<8x32xf32>
    %106 = vector.extract_strided_slice %82 {offsets = [0, 64], sizes = [8, 32], strides = [1, 1]} : vector<8x128xf32> to vector<8x32xf32>
    %107 = math.tanh %106 : vector<8x32xf32>
    %108 = arith.mulf %104, %56 : vector<8x32xf32>
    %109 = arith.mulf %103, %107 : vector<8x32xf32>
    %110 = arith.addf %108, %109 : vector<8x32xf32>
    %111 = math.tanh %110 : vector<8x32xf32>
    %112 = arith.mulf %105, %111 : vector<8x32xf32>
    %113 = arith.index_cast %c1_i32 : i32 to index
    %c0_29 = arith.constant 0 : index
    %c0_30 = arith.constant 0 : index
    %114 = vector.load %arg11[%113, %c0_29, %c0_30] : memref<8x8x64xf32, #tpu.memory_space<vmem>>, vector<1x8x32xf32>
    %115 = vector.shape_cast %114 : vector<1x8x32xf32> to vector<8x32xf32>
    %116 = vector.shape_cast %97 : vector<8x32xf32> to vector<1x8x32xf32>
    tpu.vector_store %arg11[%113, %c0_29, %c0_30], %116 {strides = array<i32>} : memref<8x8x64xf32, #tpu.memory_space<vmem>>, vector<1x8x32xf32>,
    %117 = arith.index_cast %67 : i32 to index
    %c0_31 = arith.constant 0 : index
    %c32_32 = arith.constant 32 : index
    %118 = vector.load %arg11[%117, %c0_31, %c32_32] : memref<8x8x64xf32, #tpu.memory_space<vmem>>, vector<1x8x32xf32>
    %119 = vector.shape_cast %118 : vector<1x8x32xf32> to vector<8x32xf32>
    %120 = vector.shape_cast %112 : vector<8x32xf32> to vector<1x8x32xf32>
    tpu.vector_store %arg11[%117, %c0_31, %c32_32], %120 {strides = array<i32>} : memref<8x8x64xf32, #tpu.memory_space<vmem>>, vector<1x8x32xf32>,
    %c2_i32 = arith.constant 2 : i32
    %c7_i32_33 = arith.constant 7 : i32
    %121 = arith.subi %c7_i32_33, %c2_i32 : i32
    %122 = tpu.concatenate %97, %112 in 1 : vector<8x32xf32>, vector<8x32xf32> -> vector<8x64xf32>
    %123 = arith.truncf %122 : vector<8x64xf32> to vector<8x64xbf16>
    %cst_34 = arith.constant dense<0.000000e+00> : vector<8x256xf32>
    %124 = tpu.matmul %123, %11, %cst_34 {dimension_numbers = #tpu.dot_dimension_numbers<[1], [0], [0], [1], [0, 0, 1, 1], [], []>} : vector<8x64xbf16>, vector<64x256xbf16>, vector<8x256xf32> -> vector<8x256xf32>
    %125 = arith.index_cast %c2_i32 : i32 to index
    %c0_35 = arith.constant 0 : index
    %c0_36 = arith.constant 0 : index
    %126 = vector.load %arg12[%125, %c0_35, %c0_36] : memref<8x8x256xbf16, #tpu.memory_space<vmem>>, vector<1x8x128xbf16>
    %127 = vector.shape_cast %126 : vector<1x8x128xbf16> to vector<8x128xbf16>
    %128 = arith.extf %127 : vector<8x128xbf16> to vector<8x128xf32>
    %129 = vector.extract_strided_slice %124 {offsets = [0, 0], sizes = [8, 128], strides = [1, 1]} : vector<8x256xf32> to vector<8x128xf32>
    %130 = arith.addf %128, %129 : vector<8x128xf32>
    %131 = arith.index_cast %121 : i32 to index
    %c0_37 = arith.constant 0 : index
    %c128_38 = arith.constant 128 : index
    %132 = vector.load %arg12[%131, %c0_37, %c128_38] : memref<8x8x256xbf16, #tpu.memory_space<vmem>>, vector<1x8x128xbf16>
    %133 = vector.shape_cast %132 : vector<1x8x128xbf16> to vector<8x128xbf16>
    %134 = arith.extf %133 : vector<8x128xbf16> to vector<8x128xf32>
    %135 = vector.extract_strided_slice %124 {offsets = [0, 128], sizes = [8, 128], strides = [1, 1]} : vector<8x256xf32> to vector<8x128xf32>
    %136 = arith.addf %134, %135 : vector<8x128xf32>
    %137 = arith.negf %130 : vector<8x128xf32>
    %138 = math.exp %137 : vector<8x128xf32>
    %cst_39 = arith.constant 1.000000e+00 : f32
    %139 = vector.broadcast %cst_39 : f32 to vector<8x128xf32>
    %140 = arith.addf %139, %138 : vector<8x128xf32>
    %141 = arith.divf %139, %140 : vector<8x128xf32>
    %142 = vector.extract_strided_slice %141 {offsets = [0, 0], sizes = [8, 32], strides = [1, 1]} : vector<8x128xf32> to vector<8x32xf32>
    %143 = vector.extract_strided_slice %141 {offsets = [0, 32], sizes = [8, 32], strides = [1, 1]} : vector<8x128xf32> to vector<8x32xf32>
    %144 = vector.extract_strided_slice %141 {offsets = [0, 96], sizes = [8, 32], strides = [1, 1]} : vector<8x128xf32> to vector<8x32xf32>
    %145 = vector.extract_strided_slice %130 {offsets = [0, 64], sizes = [8, 32], strides = [1, 1]} : vector<8x128xf32> to vector<8x32xf32>
    %146 = math.tanh %145 : vector<8x32xf32>
    %147 = arith.mulf %143, %95 : vector<8x32xf32>
    %148 = arith.mulf %142, %146 : vector<8x32xf32>
    %149 = arith.addf %147, %148 : vector<8x32xf32>
    %150 = math.tanh %149 : vector<8x32xf32>
    %151 = arith.mulf %144, %150 : vector<8x32xf32>
    %152 = arith.negf %136 : vector<8x128xf32>
    %153 = math.exp %152 : vector<8x128xf32>
    %cst_40 = arith.constant 1.000000e+00 : f32
    %154 = vector.broadcast %cst_40 : f32 to vector<8x128xf32>
    %155 = arith.addf %154, %153 : vector<8x128xf32>
    %156 = arith.divf %154, %155 : vector<8x128xf32>
    %157 = vector.extract_strided_slice %156 {offsets = [0, 0], sizes = [8, 32], strides = [1, 1]} : vector<8x128xf32> to vector<8x32xf32>
    %158 = vector.extract_strided_slice %156 {offsets = [0, 32], sizes = [8, 32], strides = [1, 1]} : vector<8x128xf32> to vector<8x32xf32>
    %159 = vector.extract_strided_slice %156 {offsets = [0, 96], sizes = [8, 32], strides = [1, 1]} : vector<8x128xf32> to vector<8x32xf32>
    %160 = vector.extract_strided_slice %136 {offsets = [0, 64], sizes = [8, 32], strides = [1, 1]} : vector<8x128xf32> to vector<8x32xf32>
    %161 = math.tanh %160 : vector<8x32xf32>
    %162 = arith.mulf %158, %110 : vector<8x32xf32>
    %163 = arith.mulf %157, %161 : vector<8x32xf32>
    %164 = arith.addf %162, %163 : vector<8x32xf32>
    %165 = math.tanh %164 : vector<8x32xf32>
    %166 = arith.mulf %159, %165 : vector<8x32xf32>
    %167 = arith.index_cast %c2_i32 : i32 to index
    %c0_41 = arith.constant 0 : index
    %c0_42 = arith.constant 0 : index
    %168 = vector.load %arg11[%167, %c0_41, %c0_42] : memref<8x8x64xf32, #tpu.memory_space<vmem>>, vector<1x8x32xf32>
    %169 = vector.shape_cast %168 : vector<1x8x32xf32> to vector<8x32xf32>
    %170 = vector.shape_cast %151 : vector<8x32xf32> to vector<1x8x32xf32>
    tpu.vector_store %arg11[%167, %c0_41, %c0_42], %170 {strides = array<i32>} : memref<8x8x64xf32, #tpu.memory_space<vmem>>, vector<1x8x32xf32>,
    %171 = arith.index_cast %121 : i32 to index
    %c0_43 = arith.constant 0 : index
    %c32_44 = arith.constant 32 : index
    %172 = vector.load %arg11[%171, %c0_43, %c32_44] : memref<8x8x64xf32, #tpu.memory_space<vmem>>, vector<1x8x32xf32>
    %173 = vector.shape_cast %172 : vector<1x8x32xf32> to vector<8x32xf32>
    %174 = vector.shape_cast %166 : vector<8x32xf32> to vector<1x8x32xf32>
    tpu.vector_store %arg11[%171, %c0_43, %c32_44], %174 {strides = array<i32>} : memref<8x8x64xf32, #tpu.memory_space<vmem>>, vector<1x8x32xf32>,
    %c3_i32 = arith.constant 3 : i32
    %c7_i32_45 = arith.constant 7 : i32
    %175 = arith.subi %c7_i32_45, %c3_i32 : i32
    %176 = tpu.concatenate %151, %166 in 1 : vector<8x32xf32>, vector<8x32xf32> -> vector<8x64xf32>
    %177 = arith.truncf %176 : vector<8x64xf32> to vector<8x64xbf16>
    %cst_46 = arith.constant dense<0.000000e+00> : vector<8x256xf32>
    %178 = tpu.matmul %177, %11, %cst_46 {dimension_numbers = #tpu.dot_dimension_numbers<[1], [0], [0], [1], [0, 0, 1, 1], [], []>} : vector<8x64xbf16>, vector<64x256xbf16>, vector<8x256xf32> -> vector<8x256xf32>
    %179 = arith.index_cast %c3_i32 : i32 to index
    %c0_47 = arith.constant 0 : index
    %c0_48 = arith.constant 0 : index
    %180 = vector.load %arg12[%179, %c0_47, %c0_48] : memref<8x8x256xbf16, #tpu.memory_space<vmem>>, vector<1x8x128xbf16>
    %181 = vector.shape_cast %180 : vector<1x8x128xbf16> to vector<8x128xbf16>
    %182 = arith.extf %181 : vector<8x128xbf16> to vector<8x128xf32>
    %183 = vector.extract_strided_slice %178 {offsets = [0, 0], sizes = [8, 128], strides = [1, 1]} : vector<8x256xf32> to vector<8x128xf32>
    %184 = arith.addf %182, %183 : vector<8x128xf32>
    %185 = arith.index_cast %175 : i32 to index
    %c0_49 = arith.constant 0 : index
    %c128_50 = arith.constant 128 : index
    %186 = vector.load %arg12[%185, %c0_49, %c128_50] : memref<8x8x256xbf16, #tpu.memory_space<vmem>>, vector<1x8x128xbf16>
    %187 = vector.shape_cast %186 : vector<1x8x128xbf16> to vector<8x128xbf16>
    %188 = arith.extf %187 : vector<8x128xbf16> to vector<8x128xf32>
    %189 = vector.extract_strided_slice %178 {offsets = [0, 128], sizes = [8, 128], strides = [1, 1]} : vector<8x256xf32> to vector<8x128xf32>
    %190 = arith.addf %188, %189 : vector<8x128xf32>
    %191 = arith.negf %184 : vector<8x128xf32>
    %192 = math.exp %191 : vector<8x128xf32>
    %cst_51 = arith.constant 1.000000e+00 : f32
    %193 = vector.broadcast %cst_51 : f32 to vector<8x128xf32>
    %194 = arith.addf %193, %192 : vector<8x128xf32>
    %195 = arith.divf %193, %194 : vector<8x128xf32>
    %196 = vector.extract_strided_slice %195 {offsets = [0, 0], sizes = [8, 32], strides = [1, 1]} : vector<8x128xf32> to vector<8x32xf32>
    %197 = vector.extract_strided_slice %195 {offsets = [0, 32], sizes = [8, 32], strides = [1, 1]} : vector<8x128xf32> to vector<8x32xf32>
    %198 = vector.extract_strided_slice %195 {offsets = [0, 96], sizes = [8, 32], strides = [1, 1]} : vector<8x128xf32> to vector<8x32xf32>
    %199 = vector.extract_strided_slice %184 {offsets = [0, 64], sizes = [8, 32], strides = [1, 1]} : vector<8x128xf32> to vector<8x32xf32>
    %200 = math.tanh %199 : vector<8x32xf32>
    %201 = arith.mulf %197, %149 : vector<8x32xf32>
    %202 = arith.mulf %196, %200 : vector<8x32xf32>
    %203 = arith.addf %201, %202 : vector<8x32xf32>
    %204 = math.tanh %203 : vector<8x32xf32>
    %205 = arith.mulf %198, %204 : vector<8x32xf32>
    %206 = arith.negf %190 : vector<8x128xf32>
    %207 = math.exp %206 : vector<8x128xf32>
    %cst_52 = arith.constant 1.000000e+00 : f32
    %208 = vector.broadcast %cst_52 : f32 to vector<8x128xf32>
    %209 = arith.addf %208, %207 : vector<8x128xf32>
    %210 = arith.divf %208, %209 : vector<8x128xf32>
    %211 = vector.extract_strided_slice %210 {offsets = [0, 0], sizes = [8, 32], strides = [1, 1]} : vector<8x128xf32> to vector<8x32xf32>
    %212 = vector.extract_strided_slice %210 {offsets = [0, 32], sizes = [8, 32], strides = [1, 1]} : vector<8x128xf32> to vector<8x32xf32>
    %213 = vector.extract_strided_slice %210 {offsets = [0, 96], sizes = [8, 32], strides = [1, 1]} : vector<8x128xf32> to vector<8x32xf32>
    %214 = vector.extract_strided_slice %190 {offsets = [0, 64], sizes = [8, 32], strides = [1, 1]} : vector<8x128xf32> to vector<8x32xf32>
    %215 = math.tanh %214 : vector<8x32xf32>
    %216 = arith.mulf %212, %164 : vector<8x32xf32>
    %217 = arith.mulf %211, %215 : vector<8x32xf32>
    %218 = arith.addf %216, %217 : vector<8x32xf32>
    %219 = math.tanh %218 : vector<8x32xf32>
    %220 = arith.mulf %213, %219 : vector<8x32xf32>
    %221 = arith.index_cast %c3_i32 : i32 to index
    %c0_53 = arith.constant 0 : index
    %c0_54 = arith.constant 0 : index
    %222 = vector.load %arg11[%221, %c0_53, %c0_54] : memref<8x8x64xf32, #tpu.memory_space<vmem>>, vector<1x8x32xf32>
    %223 = vector.shape_cast %222 : vector<1x8x32xf32> to vector<8x32xf32>
    %224 = vector.shape_cast %205 : vector<8x32xf32> to vector<1x8x32xf32>
    tpu.vector_store %arg11[%221, %c0_53, %c0_54], %224 {strides = array<i32>} : memref<8x8x64xf32, #tpu.memory_space<vmem>>, vector<1x8x32xf32>,
    %225 = arith.index_cast %175 : i32 to index
    %c0_55 = arith.constant 0 : index
    %c32_56 = arith.constant 32 : index
    %226 = vector.load %arg11[%225, %c0_55, %c32_56] : memref<8x8x64xf32, #tpu.memory_space<vmem>>, vector<1x8x32xf32>
    %227 = vector.shape_cast %226 : vector<1x8x32xf32> to vector<8x32xf32>
    %228 = vector.shape_cast %220 : vector<8x32xf32> to vector<1x8x32xf32>
    tpu.vector_store %arg11[%225, %c0_55, %c32_56], %228 {strides = array<i32>} : memref<8x8x64xf32, #tpu.memory_space<vmem>>, vector<1x8x32xf32>,
    %c4_i32 = arith.constant 4 : i32
    %c7_i32_57 = arith.constant 7 : i32
    %229 = arith.subi %c7_i32_57, %c4_i32 : i32
    %230 = tpu.concatenate %205, %220 in 1 : vector<8x32xf32>, vector<8x32xf32> -> vector<8x64xf32>
    %231 = arith.truncf %230 : vector<8x64xf32> to vector<8x64xbf16>
    %cst_58 = arith.constant dense<0.000000e+00> : vector<8x256xf32>
    %232 = tpu.matmul %231, %11, %cst_58 {dimension_numbers = #tpu.dot_dimension_numbers<[1], [0], [0], [1], [0, 0, 1, 1], [], []>} : vector<8x64xbf16>, vector<64x256xbf16>, vector<8x256xf32> -> vector<8x256xf32>
    %233 = arith.index_cast %c4_i32 : i32 to index
    %c0_59 = arith.constant 0 : index
    %c0_60 = arith.constant 0 : index
    %234 = vector.load %arg12[%233, %c0_59, %c0_60] : memref<8x8x256xbf16, #tpu.memory_space<vmem>>, vector<1x8x128xbf16>
    %235 = vector.shape_cast %234 : vector<1x8x128xbf16> to vector<8x128xbf16>
    %236 = arith.extf %235 : vector<8x128xbf16> to vector<8x128xf32>
    %237 = vector.extract_strided_slice %232 {offsets = [0, 0], sizes = [8, 128], strides = [1, 1]} : vector<8x256xf32> to vector<8x128xf32>
    %238 = arith.addf %236, %237 : vector<8x128xf32>
    %239 = arith.index_cast %229 : i32 to index
    %c0_61 = arith.constant 0 : index
    %c128_62 = arith.constant 128 : index
    %240 = vector.load %arg12[%239, %c0_61, %c128_62] : memref<8x8x256xbf16, #tpu.memory_space<vmem>>, vector<1x8x128xbf16>
    %241 = vector.shape_cast %240 : vector<1x8x128xbf16> to vector<8x128xbf16>
    %242 = arith.extf %241 : vector<8x128xbf16> to vector<8x128xf32>
    %243 = vector.extract_strided_slice %232 {offsets = [0, 128], sizes = [8, 128], strides = [1, 1]} : vector<8x256xf32> to vector<8x128xf32>
    %244 = arith.addf %242, %243 : vector<8x128xf32>
    %245 = arith.negf %238 : vector<8x128xf32>
    %246 = math.exp %245 : vector<8x128xf32>
    %cst_63 = arith.constant 1.000000e+00 : f32
    %247 = vector.broadcast %cst_63 : f32 to vector<8x128xf32>
    %248 = arith.addf %247, %246 : vector<8x128xf32>
    %249 = arith.divf %247, %248 : vector<8x128xf32>
    %250 = vector.extract_strided_slice %249 {offsets = [0, 0], sizes = [8, 32], strides = [1, 1]} : vector<8x128xf32> to vector<8x32xf32>
    %251 = vector.extract_strided_slice %249 {offsets = [0, 32], sizes = [8, 32], strides = [1, 1]} : vector<8x128xf32> to vector<8x32xf32>
    %252 = vector.extract_strided_slice %249 {offsets = [0, 96], sizes = [8, 32], strides = [1, 1]} : vector<8x128xf32> to vector<8x32xf32>
    %253 = vector.extract_strided_slice %238 {offsets = [0, 64], sizes = [8, 32], strides = [1, 1]} : vector<8x128xf32> to vector<8x32xf32>
    %254 = math.tanh %253 : vector<8x32xf32>
    %255 = arith.mulf %251, %203 : vector<8x32xf32>
    %256 = arith.mulf %250, %254 : vector<8x32xf32>
    %257 = arith.addf %255, %256 : vector<8x32xf32>
    %258 = math.tanh %257 : vector<8x32xf32>
    %259 = arith.mulf %252, %258 : vector<8x32xf32>
    %260 = arith.negf %244 : vector<8x128xf32>
    %261 = math.exp %260 : vector<8x128xf32>
    %cst_64 = arith.constant 1.000000e+00 : f32
    %262 = vector.broadcast %cst_64 : f32 to vector<8x128xf32>
    %263 = arith.addf %262, %261 : vector<8x128xf32>
    %264 = arith.divf %262, %263 : vector<8x128xf32>
    %265 = vector.extract_strided_slice %264 {offsets = [0, 0], sizes = [8, 32], strides = [1, 1]} : vector<8x128xf32> to vector<8x32xf32>
    %266 = vector.extract_strided_slice %264 {offsets = [0, 32], sizes = [8, 32], strides = [1, 1]} : vector<8x128xf32> to vector<8x32xf32>
    %267 = vector.extract_strided_slice %264 {offsets = [0, 96], sizes = [8, 32], strides = [1, 1]} : vector<8x128xf32> to vector<8x32xf32>
    %268 = vector.extract_strided_slice %244 {offsets = [0, 64], sizes = [8, 32], strides = [1, 1]} : vector<8x128xf32> to vector<8x32xf32>
    %269 = math.tanh %268 : vector<8x32xf32>
    %270 = arith.mulf %266, %218 : vector<8x32xf32>
    %271 = arith.mulf %265, %269 : vector<8x32xf32>
    %272 = arith.addf %270, %271 : vector<8x32xf32>
    %273 = math.tanh %272 : vector<8x32xf32>
    %274 = arith.mulf %267, %273 : vector<8x32xf32>
    %275 = arith.index_cast %c4_i32 : i32 to index
    %c0_65 = arith.constant 0 : index
    %c0_66 = arith.constant 0 : index
    %276 = vector.load %arg11[%275, %c0_65, %c0_66] : memref<8x8x64xf32, #tpu.memory_space<vmem>>, vector<1x8x32xf32>
    %277 = vector.shape_cast %276 : vector<1x8x32xf32> to vector<8x32xf32>
    %278 = vector.shape_cast %259 : vector<8x32xf32> to vector<1x8x32xf32>
    tpu.vector_store %arg11[%275, %c0_65, %c0_66], %278 {strides = array<i32>} : memref<8x8x64xf32, #tpu.memory_space<vmem>>, vector<1x8x32xf32>,
    %279 = arith.index_cast %229 : i32 to index
    %c0_67 = arith.constant 0 : index
    %c32_68 = arith.constant 32 : index
    %280 = vector.load %arg11[%279, %c0_67, %c32_68] : memref<8x8x64xf32, #tpu.memory_space<vmem>>, vector<1x8x32xf32>
    %281 = vector.shape_cast %280 : vector<1x8x32xf32> to vector<8x32xf32>
    %282 = vector.shape_cast %274 : vector<8x32xf32> to vector<1x8x32xf32>
    tpu.vector_store %arg11[%279, %c0_67, %c32_68], %282 {strides = array<i32>} : memref<8x8x64xf32, #tpu.memory_space<vmem>>, vector<1x8x32xf32>,
    %c5_i32 = arith.constant 5 : i32
    %c7_i32_69 = arith.constant 7 : i32
    %283 = arith.subi %c7_i32_69, %c5_i32 : i32
    %284 = tpu.concatenate %259, %274 in 1 : vector<8x32xf32>, vector<8x32xf32> -> vector<8x64xf32>
    %285 = arith.truncf %284 : vector<8x64xf32> to vector<8x64xbf16>
    %cst_70 = arith.constant dense<0.000000e+00> : vector<8x256xf32>
    %286 = tpu.matmul %285, %11, %cst_70 {dimension_numbers = #tpu.dot_dimension_numbers<[1], [0], [0], [1], [0, 0, 1, 1], [], []>} : vector<8x64xbf16>, vector<64x256xbf16>, vector<8x256xf32> -> vector<8x256xf32>
    %287 = arith.index_cast %c5_i32 : i32 to index
    %c0_71 = arith.constant 0 : index
    %c0_72 = arith.constant 0 : index
    %288 = vector.load %arg12[%287, %c0_71, %c0_72] : memref<8x8x256xbf16, #tpu.memory_space<vmem>>, vector<1x8x128xbf16>
    %289 = vector.shape_cast %288 : vector<1x8x128xbf16> to vector<8x128xbf16>
    %290 = arith.extf %289 : vector<8x128xbf16> to vector<8x128xf32>
    %291 = vector.extract_strided_slice %286 {offsets = [0, 0], sizes = [8, 128], strides = [1, 1]} : vector<8x256xf32> to vector<8x128xf32>
    %292 = arith.addf %290, %291 : vector<8x128xf32>
    %293 = arith.index_cast %283 : i32 to index
    %c0_73 = arith.constant 0 : index
    %c128_74 = arith.constant 128 : index
    %294 = vector.load %arg12[%293, %c0_73, %c128_74] : memref<8x8x256xbf16, #tpu.memory_space<vmem>>, vector<1x8x128xbf16>
    %295 = vector.shape_cast %294 : vector<1x8x128xbf16> to vector<8x128xbf16>
    %296 = arith.extf %295 : vector<8x128xbf16> to vector<8x128xf32>
    %297 = vector.extract_strided_slice %286 {offsets = [0, 128], sizes = [8, 128], strides = [1, 1]} : vector<8x256xf32> to vector<8x128xf32>
    %298 = arith.addf %296, %297 : vector<8x128xf32>
    %299 = arith.negf %292 : vector<8x128xf32>
    %300 = math.exp %299 : vector<8x128xf32>
    %cst_75 = arith.constant 1.000000e+00 : f32
    %301 = vector.broadcast %cst_75 : f32 to vector<8x128xf32>
    %302 = arith.addf %301, %300 : vector<8x128xf32>
    %303 = arith.divf %301, %302 : vector<8x128xf32>
    %304 = vector.extract_strided_slice %303 {offsets = [0, 0], sizes = [8, 32], strides = [1, 1]} : vector<8x128xf32> to vector<8x32xf32>
    %305 = vector.extract_strided_slice %303 {offsets = [0, 32], sizes = [8, 32], strides = [1, 1]} : vector<8x128xf32> to vector<8x32xf32>
    %306 = vector.extract_strided_slice %303 {offsets = [0, 96], sizes = [8, 32], strides = [1, 1]} : vector<8x128xf32> to vector<8x32xf32>
    %307 = vector.extract_strided_slice %292 {offsets = [0, 64], sizes = [8, 32], strides = [1, 1]} : vector<8x128xf32> to vector<8x32xf32>
    %308 = math.tanh %307 : vector<8x32xf32>
    %309 = arith.mulf %305, %257 : vector<8x32xf32>
    %310 = arith.mulf %304, %308 : vector<8x32xf32>
    %311 = arith.addf %309, %310 : vector<8x32xf32>
    %312 = math.tanh %311 : vector<8x32xf32>
    %313 = arith.mulf %306, %312 : vector<8x32xf32>
    %314 = arith.negf %298 : vector<8x128xf32>
    %315 = math.exp %314 : vector<8x128xf32>
    %cst_76 = arith.constant 1.000000e+00 : f32
    %316 = vector.broadcast %cst_76 : f32 to vector<8x128xf32>
    %317 = arith.addf %316, %315 : vector<8x128xf32>
    %318 = arith.divf %316, %317 : vector<8x128xf32>
    %319 = vector.extract_strided_slice %318 {offsets = [0, 0], sizes = [8, 32], strides = [1, 1]} : vector<8x128xf32> to vector<8x32xf32>
    %320 = vector.extract_strided_slice %318 {offsets = [0, 32], sizes = [8, 32], strides = [1, 1]} : vector<8x128xf32> to vector<8x32xf32>
    %321 = vector.extract_strided_slice %318 {offsets = [0, 96], sizes = [8, 32], strides = [1, 1]} : vector<8x128xf32> to vector<8x32xf32>
    %322 = vector.extract_strided_slice %298 {offsets = [0, 64], sizes = [8, 32], strides = [1, 1]} : vector<8x128xf32> to vector<8x32xf32>
    %323 = math.tanh %322 : vector<8x32xf32>
    %324 = arith.mulf %320, %272 : vector<8x32xf32>
    %325 = arith.mulf %319, %323 : vector<8x32xf32>
    %326 = arith.addf %324, %325 : vector<8x32xf32>
    %327 = math.tanh %326 : vector<8x32xf32>
    %328 = arith.mulf %321, %327 : vector<8x32xf32>
    %329 = arith.index_cast %c5_i32 : i32 to index
    %c0_77 = arith.constant 0 : index
    %c0_78 = arith.constant 0 : index
    %330 = vector.load %arg11[%329, %c0_77, %c0_78] : memref<8x8x64xf32, #tpu.memory_space<vmem>>, vector<1x8x32xf32>
    %331 = vector.shape_cast %330 : vector<1x8x32xf32> to vector<8x32xf32>
    %332 = vector.shape_cast %313 : vector<8x32xf32> to vector<1x8x32xf32>
    tpu.vector_store %arg11[%329, %c0_77, %c0_78], %332 {strides = array<i32>} : memref<8x8x64xf32, #tpu.memory_space<vmem>>, vector<1x8x32xf32>,
    %333 = arith.index_cast %283 : i32 to index
    %c0_79 = arith.constant 0 : index
    %c32_80 = arith.constant 32 : index
    %334 = vector.load %arg11[%333, %c0_79, %c32_80] : memref<8x8x64xf32, #tpu.memory_space<vmem>>, vector<1x8x32xf32>
    %335 = vector.shape_cast %334 : vector<1x8x32xf32> to vector<8x32xf32>
    %336 = vector.shape_cast %328 : vector<8x32xf32> to vector<1x8x32xf32>
    tpu.vector_store %arg11[%333, %c0_79, %c32_80], %336 {strides = array<i32>} : memref<8x8x64xf32, #tpu.memory_space<vmem>>, vector<1x8x32xf32>,
    %c6_i32 = arith.constant 6 : i32
    %c7_i32_81 = arith.constant 7 : i32
    %337 = arith.subi %c7_i32_81, %c6_i32 : i32
    %338 = tpu.concatenate %313, %328 in 1 : vector<8x32xf32>, vector<8x32xf32> -> vector<8x64xf32>
    %339 = arith.truncf %338 : vector<8x64xf32> to vector<8x64xbf16>
    %cst_82 = arith.constant dense<0.000000e+00> : vector<8x256xf32>
    %340 = tpu.matmul %339, %11, %cst_82 {dimension_numbers = #tpu.dot_dimension_numbers<[1], [0], [0], [1], [0, 0, 1, 1], [], []>} : vector<8x64xbf16>, vector<64x256xbf16>, vector<8x256xf32> -> vector<8x256xf32>
    %341 = arith.index_cast %c6_i32 : i32 to index
    %c0_83 = arith.constant 0 : index
    %c0_84 = arith.constant 0 : index
    %342 = vector.load %arg12[%341, %c0_83, %c0_84] : memref<8x8x256xbf16, #tpu.memory_space<vmem>>, vector<1x8x128xbf16>
    %343 = vector.shape_cast %342 : vector<1x8x128xbf16> to vector<8x128xbf16>
    %344 = arith.extf %343 : vector<8x128xbf16> to vector<8x128xf32>
    %345 = vector.extract_strided_slice %340 {offsets = [0, 0], sizes = [8, 128], strides = [1, 1]} : vector<8x256xf32> to vector<8x128xf32>
    %346 = arith.addf %344, %345 : vector<8x128xf32>
    %347 = arith.index_cast %337 : i32 to index
    %c0_85 = arith.constant 0 : index
    %c128_86 = arith.constant 128 : index
    %348 = vector.load %arg12[%347, %c0_85, %c128_86] : memref<8x8x256xbf16, #tpu.memory_space<vmem>>, vector<1x8x128xbf16>
    %349 = vector.shape_cast %348 : vector<1x8x128xbf16> to vector<8x128xbf16>
    %350 = arith.extf %349 : vector<8x128xbf16> to vector<8x128xf32>
    %351 = vector.extract_strided_slice %340 {offsets = [0, 128], sizes = [8, 128], strides = [1, 1]} : vector<8x256xf32> to vector<8x128xf32>
    %352 = arith.addf %350, %351 : vector<8x128xf32>
    %353 = arith.negf %346 : vector<8x128xf32>
    %354 = math.exp %353 : vector<8x128xf32>
    %cst_87 = arith.constant 1.000000e+00 : f32
    %355 = vector.broadcast %cst_87 : f32 to vector<8x128xf32>
    %356 = arith.addf %355, %354 : vector<8x128xf32>
    %357 = arith.divf %355, %356 : vector<8x128xf32>
    %358 = vector.extract_strided_slice %357 {offsets = [0, 0], sizes = [8, 32], strides = [1, 1]} : vector<8x128xf32> to vector<8x32xf32>
    %359 = vector.extract_strided_slice %357 {offsets = [0, 32], sizes = [8, 32], strides = [1, 1]} : vector<8x128xf32> to vector<8x32xf32>
    %360 = vector.extract_strided_slice %357 {offsets = [0, 96], sizes = [8, 32], strides = [1, 1]} : vector<8x128xf32> to vector<8x32xf32>
    %361 = vector.extract_strided_slice %346 {offsets = [0, 64], sizes = [8, 32], strides = [1, 1]} : vector<8x128xf32> to vector<8x32xf32>
    %362 = math.tanh %361 : vector<8x32xf32>
    %363 = arith.mulf %359, %311 : vector<8x32xf32>
    %364 = arith.mulf %358, %362 : vector<8x32xf32>
    %365 = arith.addf %363, %364 : vector<8x32xf32>
    %366 = math.tanh %365 : vector<8x32xf32>
    %367 = arith.mulf %360, %366 : vector<8x32xf32>
    %368 = arith.negf %352 : vector<8x128xf32>
    %369 = math.exp %368 : vector<8x128xf32>
    %cst_88 = arith.constant 1.000000e+00 : f32
    %370 = vector.broadcast %cst_88 : f32 to vector<8x128xf32>
    %371 = arith.addf %370, %369 : vector<8x128xf32>
    %372 = arith.divf %370, %371 : vector<8x128xf32>
    %373 = vector.extract_strided_slice %372 {offsets = [0, 0], sizes = [8, 32], strides = [1, 1]} : vector<8x128xf32> to vector<8x32xf32>
    %374 = vector.extract_strided_slice %372 {offsets = [0, 32], sizes = [8, 32], strides = [1, 1]} : vector<8x128xf32> to vector<8x32xf32>
    %375 = vector.extract_strided_slice %372 {offsets = [0, 96], sizes = [8, 32], strides = [1, 1]} : vector<8x128xf32> to vector<8x32xf32>
    %376 = vector.extract_strided_slice %352 {offsets = [0, 64], sizes = [8, 32], strides = [1, 1]} : vector<8x128xf32> to vector<8x32xf32>
    %377 = math.tanh %376 : vector<8x32xf32>
    %378 = arith.mulf %374, %326 : vector<8x32xf32>
    %379 = arith.mulf %373, %377 : vector<8x32xf32>
    %380 = arith.addf %378, %379 : vector<8x32xf32>
    %381 = math.tanh %380 : vector<8x32xf32>
    %382 = arith.mulf %375, %381 : vector<8x32xf32>
    %383 = arith.index_cast %c6_i32 : i32 to index
    %c0_89 = arith.constant 0 : index
    %c0_90 = arith.constant 0 : index
    %384 = vector.load %arg11[%383, %c0_89, %c0_90] : memref<8x8x64xf32, #tpu.memory_space<vmem>>, vector<1x8x32xf32>
    %385 = vector.shape_cast %384 : vector<1x8x32xf32> to vector<8x32xf32>
    %386 = vector.shape_cast %367 : vector<8x32xf32> to vector<1x8x32xf32>
    tpu.vector_store %arg11[%383, %c0_89, %c0_90], %386 {strides = array<i32>} : memref<8x8x64xf32, #tpu.memory_space<vmem>>, vector<1x8x32xf32>,
    %387 = arith.index_cast %337 : i32 to index
    %c0_91 = arith.constant 0 : index
    %c32_92 = arith.constant 32 : index
    %388 = vector.load %arg11[%387, %c0_91, %c32_92] : memref<8x8x64xf32, #tpu.memory_space<vmem>>, vector<1x8x32xf32>
    %389 = vector.shape_cast %388 : vector<1x8x32xf32> to vector<8x32xf32>
    %390 = vector.shape_cast %382 : vector<8x32xf32> to vector<1x8x32xf32>
    tpu.vector_store %arg11[%387, %c0_91, %c32_92], %390 {strides = array<i32>} : memref<8x8x64xf32, #tpu.memory_space<vmem>>, vector<1x8x32xf32>,
    %c7_i32_93 = arith.constant 7 : i32
    %c7_i32_94 = arith.constant 7 : i32
    %391 = arith.subi %c7_i32_94, %c7_i32_93 : i32
    %392 = tpu.concatenate %367, %382 in 1 : vector<8x32xf32>, vector<8x32xf32> -> vector<8x64xf32>
    %393 = arith.truncf %392 : vector<8x64xf32> to vector<8x64xbf16>
    %cst_95 = arith.constant dense<0.000000e+00> : vector<8x256xf32>
    %394 = tpu.matmul %393, %11, %cst_95 {dimension_numbers = #tpu.dot_dimension_numbers<[1], [0], [0], [1], [0, 0, 1, 1], [], []>} : vector<8x64xbf16>, vector<64x256xbf16>, vector<8x256xf32> -> vector<8x256xf32>
    %395 = arith.index_cast %c7_i32_93 : i32 to index
    %c0_96 = arith.constant 0 : index
    %c0_97 = arith.constant 0 : index
    %396 = vector.load %arg12[%395, %c0_96, %c0_97] : memref<8x8x256xbf16, #tpu.memory_space<vmem>>, vector<1x8x128xbf16>
    %397 = vector.shape_cast %396 : vector<1x8x128xbf16> to vector<8x128xbf16>
    %398 = arith.extf %397 : vector<8x128xbf16> to vector<8x128xf32>
    %399 = vector.extract_strided_slice %394 {offsets = [0, 0], sizes = [8, 128], strides = [1, 1]} : vector<8x256xf32> to vector<8x128xf32>
    %400 = arith.addf %398, %399 : vector<8x128xf32>
    %401 = arith.index_cast %391 : i32 to index
    %c0_98 = arith.constant 0 : index
    %c128_99 = arith.constant 128 : index
    %402 = vector.load %arg12[%401, %c0_98, %c128_99] : memref<8x8x256xbf16, #tpu.memory_space<vmem>>, vector<1x8x128xbf16>
    %403 = vector.shape_cast %402 : vector<1x8x128xbf16> to vector<8x128xbf16>
    %404 = arith.extf %403 : vector<8x128xbf16> to vector<8x128xf32>
    %405 = vector.extract_strided_slice %394 {offsets = [0, 128], sizes = [8, 128], strides = [1, 1]} : vector<8x256xf32> to vector<8x128xf32>
    %406 = arith.addf %404, %405 : vector<8x128xf32>
    %407 = arith.negf %400 : vector<8x128xf32>
    %408 = math.exp %407 : vector<8x128xf32>
    %cst_100 = arith.constant 1.000000e+00 : f32
    %409 = vector.broadcast %cst_100 : f32 to vector<8x128xf32>
    %410 = arith.addf %409, %408 : vector<8x128xf32>
    %411 = arith.divf %409, %410 : vector<8x128xf32>
    %412 = vector.extract_strided_slice %411 {offsets = [0, 0], sizes = [8, 32], strides = [1, 1]} : vector<8x128xf32> to vector<8x32xf32>
    %413 = vector.extract_strided_slice %411 {offsets = [0, 32], sizes = [8, 32], strides = [1, 1]} : vector<8x128xf32> to vector<8x32xf32>
    %414 = vector.extract_strided_slice %411 {offsets = [0, 96], sizes = [8, 32], strides = [1, 1]} : vector<8x128xf32> to vector<8x32xf32>
    %415 = vector.extract_strided_slice %400 {offsets = [0, 64], sizes = [8, 32], strides = [1, 1]} : vector<8x128xf32> to vector<8x32xf32>
    %416 = math.tanh %415 : vector<8x32xf32>
    %417 = arith.mulf %413, %365 : vector<8x32xf32>
    %418 = arith.mulf %412, %416 : vector<8x32xf32>
    %419 = arith.addf %417, %418 : vector<8x32xf32>
    %420 = math.tanh %419 : vector<8x32xf32>
    %421 = arith.mulf %414, %420 : vector<8x32xf32>
    %422 = arith.negf %406 : vector<8x128xf32>
    %423 = math.exp %422 : vector<8x128xf32>
    %cst_101 = arith.constant 1.000000e+00 : f32
    %424 = vector.broadcast %cst_101 : f32 to vector<8x128xf32>
    %425 = arith.addf %424, %423 : vector<8x128xf32>
    %426 = arith.divf %424, %425 : vector<8x128xf32>
    %427 = vector.extract_strided_slice %426 {offsets = [0, 0], sizes = [8, 32], strides = [1, 1]} : vector<8x128xf32> to vector<8x32xf32>
    %428 = vector.extract_strided_slice %426 {offsets = [0, 32], sizes = [8, 32], strides = [1, 1]} : vector<8x128xf32> to vector<8x32xf32>
    %429 = vector.extract_strided_slice %426 {offsets = [0, 96], sizes = [8, 32], strides = [1, 1]} : vector<8x128xf32> to vector<8x32xf32>
    %430 = vector.extract_strided_slice %406 {offsets = [0, 64], sizes = [8, 32], strides = [1, 1]} : vector<8x128xf32> to vector<8x32xf32>
    %431 = math.tanh %430 : vector<8x32xf32>
    %432 = arith.mulf %428, %380 : vector<8x32xf32>
    %433 = arith.mulf %427, %431 : vector<8x32xf32>
    %434 = arith.addf %432, %433 : vector<8x32xf32>
    %435 = math.tanh %434 : vector<8x32xf32>
    %436 = arith.mulf %429, %435 : vector<8x32xf32>
    %437 = arith.index_cast %c7_i32_93 : i32 to index
    %c0_102 = arith.constant 0 : index
    %c0_103 = arith.constant 0 : index
    %438 = vector.load %arg11[%437, %c0_102, %c0_103] : memref<8x8x64xf32, #tpu.memory_space<vmem>>, vector<1x8x32xf32>
    %439 = vector.shape_cast %438 : vector<1x8x32xf32> to vector<8x32xf32>
    %440 = vector.shape_cast %421 : vector<8x32xf32> to vector<1x8x32xf32>
    tpu.vector_store %arg11[%437, %c0_102, %c0_103], %440 {strides = array<i32>} : memref<8x8x64xf32, #tpu.memory_space<vmem>>, vector<1x8x32xf32>,
    %441 = arith.index_cast %391 : i32 to index
    %c0_104 = arith.constant 0 : index
    %c32_105 = arith.constant 32 : index
    %442 = vector.load %arg11[%441, %c0_104, %c32_105] : memref<8x8x64xf32, #tpu.memory_space<vmem>>, vector<1x8x32xf32>
    %443 = vector.shape_cast %442 : vector<1x8x32xf32> to vector<8x32xf32>
    %444 = vector.shape_cast %436 : vector<8x32xf32> to vector<1x8x32xf32>
    tpu.vector_store %arg11[%441, %c0_104, %c32_105], %444 {strides = array<i32>} : memref<8x8x64xf32, #tpu.memory_space<vmem>>, vector<1x8x32xf32>,
    %c8_i32 = arith.constant 8 : i32
    %c0_106 = arith.constant 0 : index
    %c0_107 = arith.constant 0 : index
    %c0_108 = arith.constant 0 : index
    %445 = vector.load %arg11[%c0_106, %c0_107, %c0_108] : memref<8x8x64xf32, #tpu.memory_space<vmem>>, vector<8x8x64xf32>
    %446 = vector.shape_cast %445 : vector<8x8x64xf32> to vector<64x64xf32>
    %447 = arith.truncf %446 : vector<64x64xf32> to vector<64x64xbf16>
    %c0_109 = arith.constant 0 : index
    %c0_110 = arith.constant 0 : index
    %448 = vector.load %arg5[%c0_109, %c0_110] : memref<64x256xbf16, #tpu.memory_space<vmem>>, vector<64x256xbf16>
    %cst_111 = arith.constant dense<0.000000e+00> : vector<64x256xf32>
    %449 = tpu.matmul %447, %448, %cst_111 {dimension_numbers = #tpu.dot_dimension_numbers<[1], [0], [0], [1], [0, 0, 1, 1], [], []>} : vector<64x64xbf16>, vector<64x256xbf16>, vector<64x256xf32> -> vector<64x256xf32>
    %c0_112 = arith.constant 0 : index
    %c0_113 = arith.constant 0 : index
    %450 = vector.load %arg7[%c0_112, %c0_113] : memref<1x256xf32, #tpu.memory_space<vmem>>, vector<1x256xf32>
    %451 = vector.broadcast %450 : vector<1x256xf32> to vector<64x256xf32>
    %452 = arith.addf %449, %451 : vector<64x256xf32>
    %453 = vector.shape_cast %452 : vector<64x256xf32> to vector<8x8x256xf32>
    %454 = arith.truncf %453 : vector<8x8x256xf32> to vector<8x8x256xbf16>
    %c0_114 = arith.constant 0 : index
    %c0_115 = arith.constant 0 : index
    %c0_116 = arith.constant 0 : index
    %455 = vector.load %arg12[%c0_114, %c0_115, %c0_116] : memref<8x8x256xbf16, #tpu.memory_space<vmem>>, vector<8x8x256xbf16>
    tpu.vector_store %arg12[%c0_114, %c0_115, %c0_116], %454 {strides = array<i32>} : memref<8x8x256xbf16, #tpu.memory_space<vmem>>, vector<8x8x256xbf16>,
    %c0_117 = arith.constant 0 : index
    %c0_118 = arith.constant 0 : index
    %456 = vector.load %arg6[%c0_117, %c0_118] : memref<64x256xbf16, #tpu.memory_space<vmem>>, vector<64x256xbf16>
    %cst_119 = arith.constant 0.000000e+00 : f32
    %457 = vector.broadcast %cst_119 : f32 to vector<8x32xf32>
    %c0_i32_120 = arith.constant 0 : i32
    %c7_i32_121 = arith.constant 7 : i32
    %458 = arith.subi %c7_i32_121, %c0_i32_120 : i32
    %459 = tpu.concatenate %457, %457 in 1 : vector<8x32xf32>, vector<8x32xf32> -> vector<8x64xf32>
    %460 = arith.truncf %459 : vector<8x64xf32> to vector<8x64xbf16>
    %cst_122 = arith.constant dense<0.000000e+00> : vector<8x256xf32>
    %461 = tpu.matmul %460, %456, %cst_122 {dimension_numbers = #tpu.dot_dimension_numbers<[1], [0], [0], [1], [0, 0, 1, 1], [], []>} : vector<8x64xbf16>, vector<64x256xbf16>, vector<8x256xf32> -> vector<8x256xf32>
    %462 = arith.index_cast %c0_i32_120 : i32 to index
    %c0_123 = arith.constant 0 : index
    %c0_124 = arith.constant 0 : index
    %463 = vector.load %arg12[%462, %c0_123, %c0_124] : memref<8x8x256xbf16, #tpu.memory_space<vmem>>, vector<1x8x128xbf16>
    %464 = vector.shape_cast %463 : vector<1x8x128xbf16> to vector<8x128xbf16>
    %465 = arith.extf %464 : vector<8x128xbf16> to vector<8x128xf32>
    %466 = vector.extract_strided_slice %461 {offsets = [0, 0], sizes = [8, 128], strides = [1, 1]} : vector<8x256xf32> to vector<8x128xf32>
    %467 = arith.addf %465, %466 : vector<8x128xf32>
    %468 = arith.index_cast %458 : i32 to index
    %c0_125 = arith.constant 0 : index
    %c128_126 = arith.constant 128 : index
    %469 = vector.load %arg12[%468, %c0_125, %c128_126] : memref<8x8x256xbf16, #tpu.memory_space<vmem>>, vector<1x8x128xbf16>
    %470 = vector.shape_cast %469 : vector<1x8x128xbf16> to vector<8x128xbf16>
    %471 = arith.extf %470 : vector<8x128xbf16> to vector<8x128xf32>
    %472 = vector.extract_strided_slice %461 {offsets = [0, 128], sizes = [8, 128], strides = [1, 1]} : vector<8x256xf32> to vector<8x128xf32>
    %473 = arith.addf %471, %472 : vector<8x128xf32>
    %474 = arith.negf %467 : vector<8x128xf32>
    %475 = math.exp %474 : vector<8x128xf32>
    %cst_127 = arith.constant 1.000000e+00 : f32
    %476 = vector.broadcast %cst_127 : f32 to vector<8x128xf32>
    %477 = arith.addf %476, %475 : vector<8x128xf32>
    %478 = arith.divf %476, %477 : vector<8x128xf32>
    %479 = vector.extract_strided_slice %478 {offsets = [0, 0], sizes = [8, 32], strides = [1, 1]} : vector<8x128xf32> to vector<8x32xf32>
    %480 = vector.extract_strided_slice %478 {offsets = [0, 32], sizes = [8, 32], strides = [1, 1]} : vector<8x128xf32> to vector<8x32xf32>
    %481 = vector.extract_strided_slice %478 {offsets = [0, 96], sizes = [8, 32], strides = [1, 1]} : vector<8x128xf32> to vector<8x32xf32>
    %482 = vector.extract_strided_slice %467 {offsets = [0, 64], sizes = [8, 32], strides = [1, 1]} : vector<8x128xf32> to vector<8x32xf32>
    %483 = math.tanh %482 : vector<8x32xf32>
    %484 = arith.mulf %480, %457 : vector<8x32xf32>
    %485 = arith.mulf %479, %483 : vector<8x32xf32>
    %486 = arith.addf %484, %485 : vector<8x32xf32>
    %487 = math.tanh %486 : vector<8x32xf32>
    %488 = arith.mulf %481, %487 : vector<8x32xf32>
    %489 = arith.negf %473 : vector<8x128xf32>
    %490 = math.exp %489 : vector<8x128xf32>
    %cst_128 = arith.constant 1.000000e+00 : f32
    %491 = vector.broadcast %cst_128 : f32 to vector<8x128xf32>
    %492 = arith.addf %491, %490 : vector<8x128xf32>
    %493 = arith.divf %491, %492 : vector<8x128xf32>
    %494 = vector.extract_strided_slice %493 {offsets = [0, 0], sizes = [8, 32], strides = [1, 1]} : vector<8x128xf32> to vector<8x32xf32>
    %495 = vector.extract_strided_slice %493 {offsets = [0, 32], sizes = [8, 32], strides = [1, 1]} : vector<8x128xf32> to vector<8x32xf32>
    %496 = vector.extract_strided_slice %493 {offsets = [0, 96], sizes = [8, 32], strides = [1, 1]} : vector<8x128xf32> to vector<8x32xf32>
    %497 = vector.extract_strided_slice %473 {offsets = [0, 64], sizes = [8, 32], strides = [1, 1]} : vector<8x128xf32> to vector<8x32xf32>
    %498 = math.tanh %497 : vector<8x32xf32>
    %499 = arith.mulf %495, %457 : vector<8x32xf32>
    %500 = arith.mulf %494, %498 : vector<8x32xf32>
    %501 = arith.addf %499, %500 : vector<8x32xf32>
    %502 = math.tanh %501 : vector<8x32xf32>
    %503 = arith.mulf %496, %502 : vector<8x32xf32>
    %c0_i32_129 = arith.constant 0 : i32
    %504 = arith.cmpi eq, %c0_i32_120, %c0_i32_129 : i32
    %505 = arith.select %504, %503, %457 : vector<8x32xf32>
    %c1_i32_130 = arith.constant 1 : i32
    %c7_i32_131 = arith.constant 7 : i32
    %506 = arith.subi %c7_i32_131, %c1_i32_130 : i32
    %507 = tpu.concatenate %488, %503 in 1 : vector<8x32xf32>, vector<8x32xf32> -> vector<8x64xf32>
    %508 = arith.truncf %507 : vector<8x64xf32> to vector<8x64xbf16>
    %cst_132 = arith.constant dense<0.000000e+00> : vector<8x256xf32>
    %509 = tpu.matmul %508, %456, %cst_132 {dimension_numbers = #tpu.dot_dimension_numbers<[1], [0], [0], [1], [0, 0, 1, 1], [], []>} : vector<8x64xbf16>, vector<64x256xbf16>, vector<8x256xf32> -> vector<8x256xf32>
    %510 = arith.index_cast %c1_i32_130 : i32 to index
    %c0_133 = arith.constant 0 : index
    %c0_134 = arith.constant 0 : index
    %511 = vector.load %arg12[%510, %c0_133, %c0_134] : memref<8x8x256xbf16, #tpu.memory_space<vmem>>, vector<1x8x128xbf16>
    %512 = vector.shape_cast %511 : vector<1x8x128xbf16> to vector<8x128xbf16>
    %513 = arith.extf %512 : vector<8x128xbf16> to vector<8x128xf32>
    %514 = vector.extract_strided_slice %509 {offsets = [0, 0], sizes = [8, 128], strides = [1, 1]} : vector<8x256xf32> to vector<8x128xf32>
    %515 = arith.addf %513, %514 : vector<8x128xf32>
    %516 = arith.index_cast %506 : i32 to index
    %c0_135 = arith.constant 0 : index
    %c128_136 = arith.constant 128 : index
    %517 = vector.load %arg12[%516, %c0_135, %c128_136] : memref<8x8x256xbf16, #tpu.memory_space<vmem>>, vector<1x8x128xbf16>
    %518 = vector.shape_cast %517 : vector<1x8x128xbf16> to vector<8x128xbf16>
    %519 = arith.extf %518 : vector<8x128xbf16> to vector<8x128xf32>
    %520 = vector.extract_strided_slice %509 {offsets = [0, 128], sizes = [8, 128], strides = [1, 1]} : vector<8x256xf32> to vector<8x128xf32>
    %521 = arith.addf %519, %520 : vector<8x128xf32>
    %522 = arith.negf %515 : vector<8x128xf32>
    %523 = math.exp %522 : vector<8x128xf32>
    %cst_137 = arith.constant 1.000000e+00 : f32
    %524 = vector.broadcast %cst_137 : f32 to vector<8x128xf32>
    %525 = arith.addf %524, %523 : vector<8x128xf32>
    %526 = arith.divf %524, %525 : vector<8x128xf32>
    %527 = vector.extract_strided_slice %526 {offsets = [0, 0], sizes = [8, 32], strides = [1, 1]} : vector<8x128xf32> to vector<8x32xf32>
    %528 = vector.extract_strided_slice %526 {offsets = [0, 32], sizes = [8, 32], strides = [1, 1]} : vector<8x128xf32> to vector<8x32xf32>
    %529 = vector.extract_strided_slice %526 {offsets = [0, 96], sizes = [8, 32], strides = [1, 1]} : vector<8x128xf32> to vector<8x32xf32>
    %530 = vector.extract_strided_slice %515 {offsets = [0, 64], sizes = [8, 32], strides = [1, 1]} : vector<8x128xf32> to vector<8x32xf32>
    %531 = math.tanh %530 : vector<8x32xf32>
    %532 = arith.mulf %528, %486 : vector<8x32xf32>
    %533 = arith.mulf %527, %531 : vector<8x32xf32>
    %534 = arith.addf %532, %533 : vector<8x32xf32>
    %535 = math.tanh %534 : vector<8x32xf32>
    %536 = arith.mulf %529, %535 : vector<8x32xf32>
    %537 = arith.negf %521 : vector<8x128xf32>
    %538 = math.exp %537 : vector<8x128xf32>
    %cst_138 = arith.constant 1.000000e+00 : f32
    %539 = vector.broadcast %cst_138 : f32 to vector<8x128xf32>
    %540 = arith.addf %539, %538 : vector<8x128xf32>
    %541 = arith.divf %539, %540 : vector<8x128xf32>
    %542 = vector.extract_strided_slice %541 {offsets = [0, 0], sizes = [8, 32], strides = [1, 1]} : vector<8x128xf32> to vector<8x32xf32>
    %543 = vector.extract_strided_slice %541 {offsets = [0, 32], sizes = [8, 32], strides = [1, 1]} : vector<8x128xf32> to vector<8x32xf32>
    %544 = vector.extract_strided_slice %541 {offsets = [0, 96], sizes = [8, 32], strides = [1, 1]} : vector<8x128xf32> to vector<8x32xf32>
    %545 = vector.extract_strided_slice %521 {offsets = [0, 64], sizes = [8, 32], strides = [1, 1]} : vector<8x128xf32> to vector<8x32xf32>
    %546 = math.tanh %545 : vector<8x32xf32>
    %547 = arith.mulf %543, %501 : vector<8x32xf32>
    %548 = arith.mulf %542, %546 : vector<8x32xf32>
    %549 = arith.addf %547, %548 : vector<8x32xf32>
    %550 = math.tanh %549 : vector<8x32xf32>
    %551 = arith.mulf %544, %550 : vector<8x32xf32>
    %c0_i32_139 = arith.constant 0 : i32
    %552 = arith.cmpi eq, %c1_i32_130, %c0_i32_139 : i32
    %553 = arith.select %552, %551, %505 : vector<8x32xf32>
    %c2_i32_140 = arith.constant 2 : i32
    %c7_i32_141 = arith.constant 7 : i32
    %554 = arith.subi %c7_i32_141, %c2_i32_140 : i32
    %555 = tpu.concatenate %536, %551 in 1 : vector<8x32xf32>, vector<8x32xf32> -> vector<8x64xf32>
    %556 = arith.truncf %555 : vector<8x64xf32> to vector<8x64xbf16>
    %cst_142 = arith.constant dense<0.000000e+00> : vector<8x256xf32>
    %557 = tpu.matmul %556, %456, %cst_142 {dimension_numbers = #tpu.dot_dimension_numbers<[1], [0], [0], [1], [0, 0, 1, 1], [], []>} : vector<8x64xbf16>, vector<64x256xbf16>, vector<8x256xf32> -> vector<8x256xf32>
    %558 = arith.index_cast %c2_i32_140 : i32 to index
    %c0_143 = arith.constant 0 : index
    %c0_144 = arith.constant 0 : index
    %559 = vector.load %arg12[%558, %c0_143, %c0_144] : memref<8x8x256xbf16, #tpu.memory_space<vmem>>, vector<1x8x128xbf16>
    %560 = vector.shape_cast %559 : vector<1x8x128xbf16> to vector<8x128xbf16>
    %561 = arith.extf %560 : vector<8x128xbf16> to vector<8x128xf32>
    %562 = vector.extract_strided_slice %557 {offsets = [0, 0], sizes = [8, 128], strides = [1, 1]} : vector<8x256xf32> to vector<8x128xf32>
    %563 = arith.addf %561, %562 : vector<8x128xf32>
    %564 = arith.index_cast %554 : i32 to index
    %c0_145 = arith.constant 0 : index
    %c128_146 = arith.constant 128 : index
    %565 = vector.load %arg12[%564, %c0_145, %c128_146] : memref<8x8x256xbf16, #tpu.memory_space<vmem>>, vector<1x8x128xbf16>
    %566 = vector.shape_cast %565 : vector<1x8x128xbf16> to vector<8x128xbf16>
    %567 = arith.extf %566 : vector<8x128xbf16> to vector<8x128xf32>
    %568 = vector.extract_strided_slice %557 {offsets = [0, 128], sizes = [8, 128], strides = [1, 1]} : vector<8x256xf32> to vector<8x128xf32>
    %569 = arith.addf %567, %568 : vector<8x128xf32>
    %570 = arith.negf %563 : vector<8x128xf32>
    %571 = math.exp %570 : vector<8x128xf32>
    %cst_147 = arith.constant 1.000000e+00 : f32
    %572 = vector.broadcast %cst_147 : f32 to vector<8x128xf32>
    %573 = arith.addf %572, %571 : vector<8x128xf32>
    %574 = arith.divf %572, %573 : vector<8x128xf32>
    %575 = vector.extract_strided_slice %574 {offsets = [0, 0], sizes = [8, 32], strides = [1, 1]} : vector<8x128xf32> to vector<8x32xf32>
    %576 = vector.extract_strided_slice %574 {offsets = [0, 32], sizes = [8, 32], strides = [1, 1]} : vector<8x128xf32> to vector<8x32xf32>
    %577 = vector.extract_strided_slice %574 {offsets = [0, 96], sizes = [8, 32], strides = [1, 1]} : vector<8x128xf32> to vector<8x32xf32>
    %578 = vector.extract_strided_slice %563 {offsets = [0, 64], sizes = [8, 32], strides = [1, 1]} : vector<8x128xf32> to vector<8x32xf32>
    %579 = math.tanh %578 : vector<8x32xf32>
    %580 = arith.mulf %576, %534 : vector<8x32xf32>
    %581 = arith.mulf %575, %579 : vector<8x32xf32>
    %582 = arith.addf %580, %581 : vector<8x32xf32>
    %583 = math.tanh %582 : vector<8x32xf32>
    %584 = arith.mulf %577, %583 : vector<8x32xf32>
    %585 = arith.negf %569 : vector<8x128xf32>
    %586 = math.exp %585 : vector<8x128xf32>
    %cst_148 = arith.constant 1.000000e+00 : f32
    %587 = vector.broadcast %cst_148 : f32 to vector<8x128xf32>
    %588 = arith.addf %587, %586 : vector<8x128xf32>
    %589 = arith.divf %587, %588 : vector<8x128xf32>
    %590 = vector.extract_strided_slice %589 {offsets = [0, 0], sizes = [8, 32], strides = [1, 1]} : vector<8x128xf32> to vector<8x32xf32>
    %591 = vector.extract_strided_slice %589 {offsets = [0, 32], sizes = [8, 32], strides = [1, 1]} : vector<8x128xf32> to vector<8x32xf32>
    %592 = vector.extract_strided_slice %589 {offsets = [0, 96], sizes = [8, 32], strides = [1, 1]} : vector<8x128xf32> to vector<8x32xf32>
    %593 = vector.extract_strided_slice %569 {offsets = [0, 64], sizes = [8, 32], strides = [1, 1]} : vector<8x128xf32> to vector<8x32xf32>
    %594 = math.tanh %593 : vector<8x32xf32>
    %595 = arith.mulf %591, %549 : vector<8x32xf32>
    %596 = arith.mulf %590, %594 : vector<8x32xf32>
    %597 = arith.addf %595, %596 : vector<8x32xf32>
    %598 = math.tanh %597 : vector<8x32xf32>
    %599 = arith.mulf %592, %598 : vector<8x32xf32>
    %c0_i32_149 = arith.constant 0 : i32
    %600 = arith.cmpi eq, %c2_i32_140, %c0_i32_149 : i32
    %601 = arith.select %600, %599, %553 : vector<8x32xf32>
    %c3_i32_150 = arith.constant 3 : i32
    %c7_i32_151 = arith.constant 7 : i32
    %602 = arith.subi %c7_i32_151, %c3_i32_150 : i32
    %603 = tpu.concatenate %584, %599 in 1 : vector<8x32xf32>, vector<8x32xf32> -> vector<8x64xf32>
    %604 = arith.truncf %603 : vector<8x64xf32> to vector<8x64xbf16>
    %cst_152 = arith.constant dense<0.000000e+00> : vector<8x256xf32>
    %605 = tpu.matmul %604, %456, %cst_152 {dimension_numbers = #tpu.dot_dimension_numbers<[1], [0], [0], [1], [0, 0, 1, 1], [], []>} : vector<8x64xbf16>, vector<64x256xbf16>, vector<8x256xf32> -> vector<8x256xf32>
    %606 = arith.index_cast %c3_i32_150 : i32 to index
    %c0_153 = arith.constant 0 : index
    %c0_154 = arith.constant 0 : index
    %607 = vector.load %arg12[%606, %c0_153, %c0_154] : memref<8x8x256xbf16, #tpu.memory_space<vmem>>, vector<1x8x128xbf16>
    %608 = vector.shape_cast %607 : vector<1x8x128xbf16> to vector<8x128xbf16>
    %609 = arith.extf %608 : vector<8x128xbf16> to vector<8x128xf32>
    %610 = vector.extract_strided_slice %605 {offsets = [0, 0], sizes = [8, 128], strides = [1, 1]} : vector<8x256xf32> to vector<8x128xf32>
    %611 = arith.addf %609, %610 : vector<8x128xf32>
    %612 = arith.index_cast %602 : i32 to index
    %c0_155 = arith.constant 0 : index
    %c128_156 = arith.constant 128 : index
    %613 = vector.load %arg12[%612, %c0_155, %c128_156] : memref<8x8x256xbf16, #tpu.memory_space<vmem>>, vector<1x8x128xbf16>
    %614 = vector.shape_cast %613 : vector<1x8x128xbf16> to vector<8x128xbf16>
    %615 = arith.extf %614 : vector<8x128xbf16> to vector<8x128xf32>
    %616 = vector.extract_strided_slice %605 {offsets = [0, 128], sizes = [8, 128], strides = [1, 1]} : vector<8x256xf32> to vector<8x128xf32>
    %617 = arith.addf %615, %616 : vector<8x128xf32>
    %618 = arith.negf %611 : vector<8x128xf32>
    %619 = math.exp %618 : vector<8x128xf32>
    %cst_157 = arith.constant 1.000000e+00 : f32
    %620 = vector.broadcast %cst_157 : f32 to vector<8x128xf32>
    %621 = arith.addf %620, %619 : vector<8x128xf32>
    %622 = arith.divf %620, %621 : vector<8x128xf32>
    %623 = vector.extract_strided_slice %622 {offsets = [0, 0], sizes = [8, 32], strides = [1, 1]} : vector<8x128xf32> to vector<8x32xf32>
    %624 = vector.extract_strided_slice %622 {offsets = [0, 32], sizes = [8, 32], strides = [1, 1]} : vector<8x128xf32> to vector<8x32xf32>
    %625 = vector.extract_strided_slice %622 {offsets = [0, 96], sizes = [8, 32], strides = [1, 1]} : vector<8x128xf32> to vector<8x32xf32>
    %626 = vector.extract_strided_slice %611 {offsets = [0, 64], sizes = [8, 32], strides = [1, 1]} : vector<8x128xf32> to vector<8x32xf32>
    %627 = math.tanh %626 : vector<8x32xf32>
    %628 = arith.mulf %624, %582 : vector<8x32xf32>
    %629 = arith.mulf %623, %627 : vector<8x32xf32>
    %630 = arith.addf %628, %629 : vector<8x32xf32>
    %631 = math.tanh %630 : vector<8x32xf32>
    %632 = arith.mulf %625, %631 : vector<8x32xf32>
    %633 = arith.negf %617 : vector<8x128xf32>
    %634 = math.exp %633 : vector<8x128xf32>
    %cst_158 = arith.constant 1.000000e+00 : f32
    %635 = vector.broadcast %cst_158 : f32 to vector<8x128xf32>
    %636 = arith.addf %635, %634 : vector<8x128xf32>
    %637 = arith.divf %635, %636 : vector<8x128xf32>
    %638 = vector.extract_strided_slice %637 {offsets = [0, 0], sizes = [8, 32], strides = [1, 1]} : vector<8x128xf32> to vector<8x32xf32>
    %639 = vector.extract_strided_slice %637 {offsets = [0, 32], sizes = [8, 32], strides = [1, 1]} : vector<8x128xf32> to vector<8x32xf32>
    %640 = vector.extract_strided_slice %637 {offsets = [0, 96], sizes = [8, 32], strides = [1, 1]} : vector<8x128xf32> to vector<8x32xf32>
    %641 = vector.extract_strided_slice %617 {offsets = [0, 64], sizes = [8, 32], strides = [1, 1]} : vector<8x128xf32> to vector<8x32xf32>
    %642 = math.tanh %641 : vector<8x32xf32>
    %643 = arith.mulf %639, %597 : vector<8x32xf32>
    %644 = arith.mulf %638, %642 : vector<8x32xf32>
    %645 = arith.addf %643, %644 : vector<8x32xf32>
    %646 = math.tanh %645 : vector<8x32xf32>
    %647 = arith.mulf %640, %646 : vector<8x32xf32>
    %c0_i32_159 = arith.constant 0 : i32
    %648 = arith.cmpi eq, %c3_i32_150, %c0_i32_159 : i32
    %649 = arith.select %648, %647, %601 : vector<8x32xf32>
    %c4_i32_160 = arith.constant 4 : i32
    %c7_i32_161 = arith.constant 7 : i32
    %650 = arith.subi %c7_i32_161, %c4_i32_160 : i32
    %651 = tpu.concatenate %632, %647 in 1 : vector<8x32xf32>, vector<8x32xf32> -> vector<8x64xf32>
    %652 = arith.truncf %651 : vector<8x64xf32> to vector<8x64xbf16>
    %cst_162 = arith.constant dense<0.000000e+00> : vector<8x256xf32>
    %653 = tpu.matmul %652, %456, %cst_162 {dimension_numbers = #tpu.dot_dimension_numbers<[1], [0], [0], [1], [0, 0, 1, 1], [], []>} : vector<8x64xbf16>, vector<64x256xbf16>, vector<8x256xf32> -> vector<8x256xf32>
    %654 = arith.index_cast %c4_i32_160 : i32 to index
    %c0_163 = arith.constant 0 : index
    %c0_164 = arith.constant 0 : index
    %655 = vector.load %arg12[%654, %c0_163, %c0_164] : memref<8x8x256xbf16, #tpu.memory_space<vmem>>, vector<1x8x128xbf16>
    %656 = vector.shape_cast %655 : vector<1x8x128xbf16> to vector<8x128xbf16>
    %657 = arith.extf %656 : vector<8x128xbf16> to vector<8x128xf32>
    %658 = vector.extract_strided_slice %653 {offsets = [0, 0], sizes = [8, 128], strides = [1, 1]} : vector<8x256xf32> to vector<8x128xf32>
    %659 = arith.addf %657, %658 : vector<8x128xf32>
    %660 = arith.index_cast %650 : i32 to index
    %c0_165 = arith.constant 0 : index
    %c128_166 = arith.constant 128 : index
    %661 = vector.load %arg12[%660, %c0_165, %c128_166] : memref<8x8x256xbf16, #tpu.memory_space<vmem>>, vector<1x8x128xbf16>
    %662 = vector.shape_cast %661 : vector<1x8x128xbf16> to vector<8x128xbf16>
    %663 = arith.extf %662 : vector<8x128xbf16> to vector<8x128xf32>
    %664 = vector.extract_strided_slice %653 {offsets = [0, 128], sizes = [8, 128], strides = [1, 1]} : vector<8x256xf32> to vector<8x128xf32>
    %665 = arith.addf %663, %664 : vector<8x128xf32>
    %666 = arith.negf %659 : vector<8x128xf32>
    %667 = math.exp %666 : vector<8x128xf32>
    %cst_167 = arith.constant 1.000000e+00 : f32
    %668 = vector.broadcast %cst_167 : f32 to vector<8x128xf32>
    %669 = arith.addf %668, %667 : vector<8x128xf32>
    %670 = arith.divf %668, %669 : vector<8x128xf32>
    %671 = vector.extract_strided_slice %670 {offsets = [0, 0], sizes = [8, 32], strides = [1, 1]} : vector<8x128xf32> to vector<8x32xf32>
    %672 = vector.extract_strided_slice %670 {offsets = [0, 32], sizes = [8, 32], strides = [1, 1]} : vector<8x128xf32> to vector<8x32xf32>
    %673 = vector.extract_strided_slice %670 {offsets = [0, 96], sizes = [8, 32], strides = [1, 1]} : vector<8x128xf32> to vector<8x32xf32>
    %674 = vector.extract_strided_slice %659 {offsets = [0, 64], sizes = [8, 32], strides = [1, 1]} : vector<8x128xf32> to vector<8x32xf32>
    %675 = math.tanh %674 : vector<8x32xf32>
    %676 = arith.mulf %672, %630 : vector<8x32xf32>
    %677 = arith.mulf %671, %675 : vector<8x32xf32>
    %678 = arith.addf %676, %677 : vector<8x32xf32>
    %679 = math.tanh %678 : vector<8x32xf32>
    %680 = arith.mulf %673, %679 : vector<8x32xf32>
    %681 = arith.negf %665 : vector<8x128xf32>
    %682 = math.exp %681 : vector<8x128xf32>
    %cst_168 = arith.constant 1.000000e+00 : f32
    %683 = vector.broadcast %cst_168 : f32 to vector<8x128xf32>
    %684 = arith.addf %683, %682 : vector<8x128xf32>
    %685 = arith.divf %683, %684 : vector<8x128xf32>
    %686 = vector.extract_strided_slice %685 {offsets = [0, 0], sizes = [8, 32], strides = [1, 1]} : vector<8x128xf32> to vector<8x32xf32>
    %687 = vector.extract_strided_slice %685 {offsets = [0, 32], sizes = [8, 32], strides = [1, 1]} : vector<8x128xf32> to vector<8x32xf32>
    %688 = vector.extract_strided_slice %685 {offsets = [0, 96], sizes = [8, 32], strides = [1, 1]} : vector<8x128xf32> to vector<8x32xf32>
    %689 = vector.extract_strided_slice %665 {offsets = [0, 64], sizes = [8, 32], strides = [1, 1]} : vector<8x128xf32> to vector<8x32xf32>
    %690 = math.tanh %689 : vector<8x32xf32>
    %691 = arith.mulf %687, %645 : vector<8x32xf32>
    %692 = arith.mulf %686, %690 : vector<8x32xf32>
    %693 = arith.addf %691, %692 : vector<8x32xf32>
    %694 = math.tanh %693 : vector<8x32xf32>
    %695 = arith.mulf %688, %694 : vector<8x32xf32>
    %c0_i32_169 = arith.constant 0 : i32
    %696 = arith.cmpi eq, %c4_i32_160, %c0_i32_169 : i32
    %697 = arith.select %696, %695, %649 : vector<8x32xf32>
    %c5_i32_170 = arith.constant 5 : i32
    %c7_i32_171 = arith.constant 7 : i32
    %698 = arith.subi %c7_i32_171, %c5_i32_170 : i32
    %699 = tpu.concatenate %680, %695 in 1 : vector<8x32xf32>, vector<8x32xf32> -> vector<8x64xf32>
    %700 = arith.truncf %699 : vector<8x64xf32> to vector<8x64xbf16>
    %cst_172 = arith.constant dense<0.000000e+00> : vector<8x256xf32>
    %701 = tpu.matmul %700, %456, %cst_172 {dimension_numbers = #tpu.dot_dimension_numbers<[1], [0], [0], [1], [0, 0, 1, 1], [], []>} : vector<8x64xbf16>, vector<64x256xbf16>, vector<8x256xf32> -> vector<8x256xf32>
    %702 = arith.index_cast %c5_i32_170 : i32 to index
    %c0_173 = arith.constant 0 : index
    %c0_174 = arith.constant 0 : index
    %703 = vector.load %arg12[%702, %c0_173, %c0_174] : memref<8x8x256xbf16, #tpu.memory_space<vmem>>, vector<1x8x128xbf16>
    %704 = vector.shape_cast %703 : vector<1x8x128xbf16> to vector<8x128xbf16>
    %705 = arith.extf %704 : vector<8x128xbf16> to vector<8x128xf32>
    %706 = vector.extract_strided_slice %701 {offsets = [0, 0], sizes = [8, 128], strides = [1, 1]} : vector<8x256xf32> to vector<8x128xf32>
    %707 = arith.addf %705, %706 : vector<8x128xf32>
    %708 = arith.index_cast %698 : i32 to index
    %c0_175 = arith.constant 0 : index
    %c128_176 = arith.constant 128 : index
    %709 = vector.load %arg12[%708, %c0_175, %c128_176] : memref<8x8x256xbf16, #tpu.memory_space<vmem>>, vector<1x8x128xbf16>
    %710 = vector.shape_cast %709 : vector<1x8x128xbf16> to vector<8x128xbf16>
    %711 = arith.extf %710 : vector<8x128xbf16> to vector<8x128xf32>
    %712 = vector.extract_strided_slice %701 {offsets = [0, 128], sizes = [8, 128], strides = [1, 1]} : vector<8x256xf32> to vector<8x128xf32>
    %713 = arith.addf %711, %712 : vector<8x128xf32>
    %714 = arith.negf %707 : vector<8x128xf32>
    %715 = math.exp %714 : vector<8x128xf32>
    %cst_177 = arith.constant 1.000000e+00 : f32
    %716 = vector.broadcast %cst_177 : f32 to vector<8x128xf32>
    %717 = arith.addf %716, %715 : vector<8x128xf32>
    %718 = arith.divf %716, %717 : vector<8x128xf32>
    %719 = vector.extract_strided_slice %718 {offsets = [0, 0], sizes = [8, 32], strides = [1, 1]} : vector<8x128xf32> to vector<8x32xf32>
    %720 = vector.extract_strided_slice %718 {offsets = [0, 32], sizes = [8, 32], strides = [1, 1]} : vector<8x128xf32> to vector<8x32xf32>
    %721 = vector.extract_strided_slice %718 {offsets = [0, 96], sizes = [8, 32], strides = [1, 1]} : vector<8x128xf32> to vector<8x32xf32>
    %722 = vector.extract_strided_slice %707 {offsets = [0, 64], sizes = [8, 32], strides = [1, 1]} : vector<8x128xf32> to vector<8x32xf32>
    %723 = math.tanh %722 : vector<8x32xf32>
    %724 = arith.mulf %720, %678 : vector<8x32xf32>
    %725 = arith.mulf %719, %723 : vector<8x32xf32>
    %726 = arith.addf %724, %725 : vector<8x32xf32>
    %727 = math.tanh %726 : vector<8x32xf32>
    %728 = arith.mulf %721, %727 : vector<8x32xf32>
    %729 = arith.negf %713 : vector<8x128xf32>
    %730 = math.exp %729 : vector<8x128xf32>
    %cst_178 = arith.constant 1.000000e+00 : f32
    %731 = vector.broadcast %cst_178 : f32 to vector<8x128xf32>
    %732 = arith.addf %731, %730 : vector<8x128xf32>
    %733 = arith.divf %731, %732 : vector<8x128xf32>
    %734 = vector.extract_strided_slice %733 {offsets = [0, 0], sizes = [8, 32], strides = [1, 1]} : vector<8x128xf32> to vector<8x32xf32>
    %735 = vector.extract_strided_slice %733 {offsets = [0, 32], sizes = [8, 32], strides = [1, 1]} : vector<8x128xf32> to vector<8x32xf32>
    %736 = vector.extract_strided_slice %733 {offsets = [0, 96], sizes = [8, 32], strides = [1, 1]} : vector<8x128xf32> to vector<8x32xf32>
    %737 = vector.extract_strided_slice %713 {offsets = [0, 64], sizes = [8, 32], strides = [1, 1]} : vector<8x128xf32> to vector<8x32xf32>
    %738 = math.tanh %737 : vector<8x32xf32>
    %739 = arith.mulf %735, %693 : vector<8x32xf32>
    %740 = arith.mulf %734, %738 : vector<8x32xf32>
    %741 = arith.addf %739, %740 : vector<8x32xf32>
    %742 = math.tanh %741 : vector<8x32xf32>
    %743 = arith.mulf %736, %742 : vector<8x32xf32>
    %c0_i32_179 = arith.constant 0 : i32
    %744 = arith.cmpi eq, %c5_i32_170, %c0_i32_179 : i32
    %745 = arith.select %744, %743, %697 : vector<8x32xf32>
    %c6_i32_180 = arith.constant 6 : i32
    %c7_i32_181 = arith.constant 7 : i32
    %746 = arith.subi %c7_i32_181, %c6_i32_180 : i32
    %747 = tpu.concatenate %728, %743 in 1 : vector<8x32xf32>, vector<8x32xf32> -> vector<8x64xf32>
    %748 = arith.truncf %747 : vector<8x64xf32> to vector<8x64xbf16>
    %cst_182 = arith.constant dense<0.000000e+00> : vector<8x256xf32>
    %749 = tpu.matmul %748, %456, %cst_182 {dimension_numbers = #tpu.dot_dimension_numbers<[1], [0], [0], [1], [0, 0, 1, 1], [], []>} : vector<8x64xbf16>, vector<64x256xbf16>, vector<8x256xf32> -> vector<8x256xf32>
    %750 = arith.index_cast %c6_i32_180 : i32 to index
    %c0_183 = arith.constant 0 : index
    %c0_184 = arith.constant 0 : index
    %751 = vector.load %arg12[%750, %c0_183, %c0_184] : memref<8x8x256xbf16, #tpu.memory_space<vmem>>, vector<1x8x128xbf16>
    %752 = vector.shape_cast %751 : vector<1x8x128xbf16> to vector<8x128xbf16>
    %753 = arith.extf %752 : vector<8x128xbf16> to vector<8x128xf32>
    %754 = vector.extract_strided_slice %749 {offsets = [0, 0], sizes = [8, 128], strides = [1, 1]} : vector<8x256xf32> to vector<8x128xf32>
    %755 = arith.addf %753, %754 : vector<8x128xf32>
    %756 = arith.index_cast %746 : i32 to index
    %c0_185 = arith.constant 0 : index
    %c128_186 = arith.constant 128 : index
    %757 = vector.load %arg12[%756, %c0_185, %c128_186] : memref<8x8x256xbf16, #tpu.memory_space<vmem>>, vector<1x8x128xbf16>
    %758 = vector.shape_cast %757 : vector<1x8x128xbf16> to vector<8x128xbf16>
    %759 = arith.extf %758 : vector<8x128xbf16> to vector<8x128xf32>
    %760 = vector.extract_strided_slice %749 {offsets = [0, 128], sizes = [8, 128], strides = [1, 1]} : vector<8x256xf32> to vector<8x128xf32>
    %761 = arith.addf %759, %760 : vector<8x128xf32>
    %762 = arith.negf %755 : vector<8x128xf32>
    %763 = math.exp %762 : vector<8x128xf32>
    %cst_187 = arith.constant 1.000000e+00 : f32
    %764 = vector.broadcast %cst_187 : f32 to vector<8x128xf32>
    %765 = arith.addf %764, %763 : vector<8x128xf32>
    %766 = arith.divf %764, %765 : vector<8x128xf32>
    %767 = vector.extract_strided_slice %766 {offsets = [0, 0], sizes = [8, 32], strides = [1, 1]} : vector<8x128xf32> to vector<8x32xf32>
    %768 = vector.extract_strided_slice %766 {offsets = [0, 32], sizes = [8, 32], strides = [1, 1]} : vector<8x128xf32> to vector<8x32xf32>
    %769 = vector.extract_strided_slice %766 {offsets = [0, 96], sizes = [8, 32], strides = [1, 1]} : vector<8x128xf32> to vector<8x32xf32>
    %770 = vector.extract_strided_slice %755 {offsets = [0, 64], sizes = [8, 32], strides = [1, 1]} : vector<8x128xf32> to vector<8x32xf32>
    %771 = math.tanh %770 : vector<8x32xf32>
    %772 = arith.mulf %768, %726 : vector<8x32xf32>
    %773 = arith.mulf %767, %771 : vector<8x32xf32>
    %774 = arith.addf %772, %773 : vector<8x32xf32>
    %775 = math.tanh %774 : vector<8x32xf32>
    %776 = arith.mulf %769, %775 : vector<8x32xf32>
    %777 = arith.negf %761 : vector<8x128xf32>
    %778 = math.exp %777 : vector<8x128xf32>
    %cst_188 = arith.constant 1.000000e+00 : f32
    %779 = vector.broadcast %cst_188 : f32 to vector<8x128xf32>
    %780 = arith.addf %779, %778 : vector<8x128xf32>
    %781 = arith.divf %779, %780 : vector<8x128xf32>
    %782 = vector.extract_strided_slice %781 {offsets = [0, 0], sizes = [8, 32], strides = [1, 1]} : vector<8x128xf32> to vector<8x32xf32>
    %783 = vector.extract_strided_slice %781 {offsets = [0, 32], sizes = [8, 32], strides = [1, 1]} : vector<8x128xf32> to vector<8x32xf32>
    %784 = vector.extract_strided_slice %781 {offsets = [0, 96], sizes = [8, 32], strides = [1, 1]} : vector<8x128xf32> to vector<8x32xf32>
    %785 = vector.extract_strided_slice %761 {offsets = [0, 64], sizes = [8, 32], strides = [1, 1]} : vector<8x128xf32> to vector<8x32xf32>
    %786 = math.tanh %785 : vector<8x32xf32>
    %787 = arith.mulf %783, %741 : vector<8x32xf32>
    %788 = arith.mulf %782, %786 : vector<8x32xf32>
    %789 = arith.addf %787, %788 : vector<8x32xf32>
    %790 = math.tanh %789 : vector<8x32xf32>
    %791 = arith.mulf %784, %790 : vector<8x32xf32>
    %c0_i32_189 = arith.constant 0 : i32
    %792 = arith.cmpi eq, %c6_i32_180, %c0_i32_189 : i32
    %793 = arith.select %792, %791, %745 : vector<8x32xf32>
    %c7_i32_190 = arith.constant 7 : i32
    %c7_i32_191 = arith.constant 7 : i32
    %794 = arith.subi %c7_i32_191, %c7_i32_190 : i32
    %795 = tpu.concatenate %776, %791 in 1 : vector<8x32xf32>, vector<8x32xf32> -> vector<8x64xf32>
    %796 = arith.truncf %795 : vector<8x64xf32> to vector<8x64xbf16>
    %cst_192 = arith.constant dense<0.000000e+00> : vector<8x256xf32>
    %797 = tpu.matmul %796, %456, %cst_192 {dimension_numbers = #tpu.dot_dimension_numbers<[1], [0], [0], [1], [0, 0, 1, 1], [], []>} : vector<8x64xbf16>, vector<64x256xbf16>, vector<8x256xf32> -> vector<8x256xf32>
    %798 = arith.index_cast %c7_i32_190 : i32 to index
    %c0_193 = arith.constant 0 : index
    %c0_194 = arith.constant 0 : index
    %799 = vector.load %arg12[%798, %c0_193, %c0_194] : memref<8x8x256xbf16, #tpu.memory_space<vmem>>, vector<1x8x128xbf16>
    %800 = vector.shape_cast %799 : vector<1x8x128xbf16> to vector<8x128xbf16>
    %801 = arith.extf %800 : vector<8x128xbf16> to vector<8x128xf32>
    %802 = vector.extract_strided_slice %797 {offsets = [0, 0], sizes = [8, 128], strides = [1, 1]} : vector<8x256xf32> to vector<8x128xf32>
    %803 = arith.addf %801, %802 : vector<8x128xf32>
    %804 = arith.index_cast %794 : i32 to index
    %c0_195 = arith.constant 0 : index
    %c128_196 = arith.constant 128 : index
    %805 = vector.load %arg12[%804, %c0_195, %c128_196] : memref<8x8x256xbf16, #tpu.memory_space<vmem>>, vector<1x8x128xbf16>
    %806 = vector.shape_cast %805 : vector<1x8x128xbf16> to vector<8x128xbf16>
    %807 = arith.extf %806 : vector<8x128xbf16> to vector<8x128xf32>
    %808 = vector.extract_strided_slice %797 {offsets = [0, 128], sizes = [8, 128], strides = [1, 1]} : vector<8x256xf32> to vector<8x128xf32>
    %809 = arith.addf %807, %808 : vector<8x128xf32>
    %810 = arith.negf %803 : vector<8x128xf32>
    %811 = math.exp %810 : vector<8x128xf32>
    %cst_197 = arith.constant 1.000000e+00 : f32
    %812 = vector.broadcast %cst_197 : f32 to vector<8x128xf32>
    %813 = arith.addf %812, %811 : vector<8x128xf32>
    %814 = arith.divf %812, %813 : vector<8x128xf32>
    %815 = vector.extract_strided_slice %814 {offsets = [0, 0], sizes = [8, 32], strides = [1, 1]} : vector<8x128xf32> to vector<8x32xf32>
    %816 = vector.extract_strided_slice %814 {offsets = [0, 32], sizes = [8, 32], strides = [1, 1]} : vector<8x128xf32> to vector<8x32xf32>
    %817 = vector.extract_strided_slice %814 {offsets = [0, 96], sizes = [8, 32], strides = [1, 1]} : vector<8x128xf32> to vector<8x32xf32>
    %818 = vector.extract_strided_slice %803 {offsets = [0, 64], sizes = [8, 32], strides = [1, 1]} : vector<8x128xf32> to vector<8x32xf32>
    %819 = math.tanh %818 : vector<8x32xf32>
    %820 = arith.mulf %816, %774 : vector<8x32xf32>
    %821 = arith.mulf %815, %819 : vector<8x32xf32>
    %822 = arith.addf %820, %821 : vector<8x32xf32>
    %823 = math.tanh %822 : vector<8x32xf32>
    %824 = arith.mulf %817, %823 : vector<8x32xf32>
    %825 = arith.negf %809 : vector<8x128xf32>
    %826 = math.exp %825 : vector<8x128xf32>
    %cst_198 = arith.constant 1.000000e+00 : f32
    %827 = vector.broadcast %cst_198 : f32 to vector<8x128xf32>
    %828 = arith.addf %827, %826 : vector<8x128xf32>
    %829 = arith.divf %827, %828 : vector<8x128xf32>
    %830 = vector.extract_strided_slice %829 {offsets = [0, 0], sizes = [8, 32], strides = [1, 1]} : vector<8x128xf32> to vector<8x32xf32>
    %831 = vector.extract_strided_slice %829 {offsets = [0, 32], sizes = [8, 32], strides = [1, 1]} : vector<8x128xf32> to vector<8x32xf32>
    %832 = vector.extract_strided_slice %829 {offsets = [0, 96], sizes = [8, 32], strides = [1, 1]} : vector<8x128xf32> to vector<8x32xf32>
    %833 = vector.extract_strided_slice %809 {offsets = [0, 64], sizes = [8, 32], strides = [1, 1]} : vector<8x128xf32> to vector<8x32xf32>
    %834 = math.tanh %833 : vector<8x32xf32>
    %835 = arith.mulf %831, %789 : vector<8x32xf32>
    %836 = arith.mulf %830, %834 : vector<8x32xf32>
    %837 = arith.addf %835, %836 : vector<8x32xf32>
    %838 = math.tanh %837 : vector<8x32xf32>
    %839 = arith.mulf %832, %838 : vector<8x32xf32>
    %c0_i32_199 = arith.constant 0 : i32
    %840 = arith.cmpi eq, %c7_i32_190, %c0_i32_199 : i32
    %841 = arith.select %840, %839, %793 : vector<8x32xf32>
    %c8_i32_200 = arith.constant 8 : i32
    %842 = tpu.concatenate %824, %841 in 1 : vector<8x32xf32>, vector<8x32xf32> -> vector<8x64xf32>
    %c0_201 = arith.constant 0 : index
    %c0_202 = arith.constant 0 : index
    %843 = vector.load %arg8[%c0_201, %c0_202] : memref<1x64xf32, #tpu.memory_space<vmem>>, vector<1x64xf32>
    %844 = vector.broadcast %843 : vector<1x64xf32> to vector<8x64xf32>
    %845 = arith.mulf %842, %844 : vector<8x64xf32>
    %cst_203 = arith.constant dense<0.000000e+00> : vector<8xf32>
    %846 = vector.multi_reduction <add>, %845, %cst_203 [1] : vector<8x64xf32> to vector<8xf32>
    %847 = vector.shape_cast %846 : vector<8xf32> to vector<8x1xf32>
    %c0_204 = arith.constant 0 : index
    %c0_205 = arith.constant 0 : index
    %848 = vector.load %arg9[%c0_204, %c0_205] : memref<1x1xf32, #tpu.memory_space<vmem>>, vector<1x1xf32>
    %849 = vector.broadcast %848 : vector<1x1xf32> to vector<8x1xf32>
    %850 = arith.addf %847, %849 : vector<8x1xf32>
    %851 = arith.negf %850 : vector<8x1xf32>
    %852 = math.exp %851 : vector<8x1xf32>
    %cst_206 = arith.constant 1.000000e+00 : f32
    %853 = vector.broadcast %cst_206 : f32 to vector<8x1xf32>
    %854 = arith.addf %853, %852 : vector<8x1xf32>
    %855 = arith.divf %853, %854 : vector<8x1xf32>
    %c0_207 = arith.constant 0 : index
    %c0_208 = arith.constant 0 : index
    %856 = vector.load %arg10[%c0_207, %c0_208] : memref<8x1xf32, #tpu.memory_space<vmem>>, vector<8x1xf32>
    tpu.vector_store %arg10[%c0_207, %c0_208], %855 {strides = array<i32>} : memref<8x1xf32, #tpu.memory_space<vmem>>, vector<8x1xf32>,
    return
  }
  func.func @transform_0(%arg0: i32) -> (i32, i32, i32) {
    %c0_i32 = arith.constant 0 : i32
    %c0_i32_0 = arith.constant 0 : i32
    %c0_i32_1 = arith.constant 0 : i32
    return %c0_i32, %arg0, %c0_i32_0 : i32, i32, i32
  }
  func.func @transform_1(%arg0: i32) -> (i32, i32) {
    %c0_i32 = arith.constant 0 : i32
    %c0_i32_0 = arith.constant 0 : i32
    %c0_i32_1 = arith.constant 0 : i32
    return %c0_i32, %c0_i32_0 : i32, i32
  }
  func.func @transform_2(%arg0: i32) -> (i32, i32) {
    %c0_i32 = arith.constant 0 : i32
    %c0_i32_0 = arith.constant 0 : i32
    %c0_i32_1 = arith.constant 0 : i32
    return %c0_i32, %c0_i32_0 : i32, i32
  }
  func.func @transform_3(%arg0: i32) -> (i32, i32) {
    %c0_i32 = arith.constant 0 : i32
    %c0_i32_0 = arith.constant 0 : i32
    %c0_i32_1 = arith.constant 0 : i32
    return %c0_i32, %c0_i32_0 : i32, i32
  }
  func.func @transform_4(%arg0: i32) -> (i32, i32) {
    %c0_i32 = arith.constant 0 : i32
    %c0_i32_0 = arith.constant 0 : i32
    %c0_i32_1 = arith.constant 0 : i32
    return %c0_i32, %c0_i32_0 : i32, i32
  }
  func.func @transform_5(%arg0: i32) -> (i32, i32) {
    %c0_i32 = arith.constant 0 : i32
    %c0_i32_0 = arith.constant 0 : i32
    %c0_i32_1 = arith.constant 0 : i32
    return %c0_i32, %c0_i32_0 : i32, i32
  }
  func.func @transform_6(%arg0: i32) -> (i32, i32) {
    %c0_i32 = arith.constant 0 : i32
    %c0_i32_0 = arith.constant 0 : i32
    %c0_i32_1 = arith.constant 0 : i32
    return %c0_i32, %c0_i32_0 : i32, i32
  }
  func.func @transform_7(%arg0: i32) -> (i32, i32) {
    %c0_i32 = arith.constant 0 : i32
    %c0_i32_0 = arith.constant 0 : i32
    %c0_i32_1 = arith.constant 0 : i32
    return %c0_i32, %c0_i32_0 : i32, i32
  }
  func.func @transform_8(%arg0: i32) -> (i32, i32) {
    %c0_i32 = arith.constant 0 : i32
    %c0_i32_0 = arith.constant 0 : i32
    %c0_i32_1 = arith.constant 0 : i32
    return %c0_i32, %c0_i32_0 : i32, i32
  }
  func.func @transform_9(%arg0: i32) -> (i32, i32) {
    %c0_i32 = arith.constant 0 : i32
    %c0_i32_0 = arith.constant 0 : i32
    return %arg0, %c0_i32 : i32, i32
  }
}

</mosaic_0001>

<llo_original>
// kernel: tpu_custom_call.1
$region0: #{tpu_custom_call.1}
  #allocation0 [shape = 'u32[]', space=smem, size = 0x4, offset = 0x4, fixed_abs, tag = 'smem constant byte address 0x4 - core index']
  #allocation1 [shape = 'u32[144,128]{1,0:T(1,128)}', space=vmem, size = 0x12000, scoped, tag = 'internal scratch']
  #allocation2 [shape = 'f32[8,8,64]{2,1,0:T(8,128)}', space=vmem, size = 0x8000, scoped, tag = 'scratch operand']
  #allocation3 [shape = 'bf16[8,8,256]{2,1,0:T(8,128)(2,1)}', space=vmem, size = 0x8000, scoped, tag = 'scratch operand']
  #allocation4 [shape = 'f32[1,1]{1,0:T(1,128)S(1)}', space=vmem, size = 0x200, scoped, tag = 'scoped memory for tpu_custom_call.1']
  %s0 = inlined_call_operand.hbm [shape: f32[8,8,32], index: 0, kind: input, shape index: {}]
  %s1 = inlined_call_operand.hbm [shape: bf16[32,256], index: 1, kind: input, shape index: {}]
  %s2 = inlined_call_operand.hbm [shape: bf16[64,256], index: 2, kind: input, shape index: {}]
  %s3 = inlined_call_operand.vmem [shape: f32[1,256], index: 3, kind: input, shape index: {}]
  %s4 = inlined_call_operand.hbm [shape: bf16[64,256], index: 4, kind: input, shape index: {}]
  %s5 = inlined_call_operand.hbm [shape: bf16[64,256], index: 5, kind: input, shape index: {}]
  %s6 = inlined_call_operand.vmem [shape: f32[1,256], index: 6, kind: input, shape index: {}]
  %s7 = inlined_call_operand.vmem [shape: f32[1,64], index: 7, kind: input, shape index: {}]
  %s8 = inlined_call_operand.<no memory space> [shape: f32[1,1], index: 8, kind: input, shape index: {}]
  %s9 = inlined_call_operand.vmem [shape: f32[8,1], index: 9, kind: output, shape index: {}]
  %s10 = sld [smem:[#allocation0]]
  $region66: #{tpu_custom_call.1} parent=0
    _
  %s12 = ssub.s32 1, %s10
  %s13 = scalar_select 0, %s12, %s10
  %v14 = vstv %s8
  %15 = vst [vmem:[#allocation4] sm:$0x1] %v14
  $region1: #{tpu_custom_call.1} parent=0
    #allocation5 [shape = 'u8[32768]{0}', space=vmem, size = 0x8000, scoped, tag = 'input window, operand 0, single buffered']
    #allocation6 [shape = 's32[1]{0}', space=sflag, size = 0x4, scoped, tag = 'scoped memory for tpu_custom_call.1']
    #allocation7 [shape = 'u8[16384]{0}', space=vmem, size = 0x4000, scoped, tag = 'input window, operand 1, single buffered']
    #allocation8 [shape = 's32[1]{0}', space=sflag, size = 0x4, scoped, tag = 'scoped memory for tpu_custom_call.1']
    #allocation9 [shape = 'u8[32768]{0}', space=vmem, size = 0x8000, scoped, tag = 'input window, operand 2, single buffered']
    #allocation10 [shape = 'u8[32768]{0}', space=vmem, size = 0x8000, scoped, tag = 'input window, operand 4, single buffered']
    #allocation11 [shape = 's32[1]{0}', space=sflag, size = 0x4, scoped, tag = 'scoped memory for tpu_custom_call.1']
    #allocation12 [shape = 'u8[32768]{0}', space=vmem, size = 0x8000, scoped, tag = 'input window, operand 5, single buffered']
    %16 = vsyncpa [#allocation6], 0
    %17 = vsyncpa [#allocation8], 0
    %18 = vsyncpa [#allocation11], 0
    // Predicated region
    $region2: #{tpu_custom_call.1} parent=1 // pred_check
      _
    $region3: #{tpu_custom_call.1} parent=1 // pred_check_branch
      %20 = sbr.rel (0) target = $region5
    $region4: #{tpu_custom_call.1} parent=1 // pred_region
      %s22 = ssub.s32 1024, 1024
      %23 = vsyncadd [#allocation6], %s22
      %s24 = sshll.u32 [#allocation5], 4
      %s25 = int_to_ptr.vmem [resolvable:$true] %s24
      %30 = dma.hbm_to_vmem [thread:$0]  %s0, 1024, %s25, [#allocation6], 128, 128, 8
    $region5: #{tpu_custom_call.1} parent=1 // pred_fallthru
      _
    // Predicated region
    $region6: #{tpu_custom_call.1} parent=1 // pred_check
      _
    $region7: #{tpu_custom_call.1} parent=1 // pred_check_branch
      %32 = sbr.rel (0) target = $region9
    $region8: #{tpu_custom_call.1} parent=1 // pred_region
      %s34 = ssub.s32 512, 512
      %35 = vsyncadd [#allocation8], %s34
      %s36 = sshll.u32 [#allocation7], 4
      %s37 = int_to_ptr.vmem [resolvable:$true] %s36
      %42 = dma.hbm_to_vmem [thread:$0]  %s1, 512, %s37, [#allocation8], 128, 128, 8
    $region9: #{tpu_custom_call.1} parent=1 // pred_fallthru
      _
    // Predicated region
    $region10: #{tpu_custom_call.1} parent=1 // pred_check
      _
    $region11: #{tpu_custom_call.1} parent=1 // pred_check_branch
      %44 = sbr.rel (0) target = $region13
    $region12: #{tpu_custom_call.1} parent=1 // pred_region
      %s46 = ssub.s32 1024, 1024
      %47 = vsyncadd [#allocation8], %s46
      %s48 = sshll.u32 [#allocation9], 4
      %s49 = int_to_ptr.vmem [resolvable:$true] %s48
      %54 = dma.hbm_to_vmem [thread:$0]  %s2, 1024, %s49, [#allocation8], 128, 128, 8
    $region13: #{tpu_custom_call.1} parent=1 // pred_fallthru
      _
    // Predicated region
    $region14: #{tpu_custom_call.1} parent=1 // pred_check
      _
    $region15: #{tpu_custom_call.1} parent=1 // pred_check_branch
      %56 = sbr.rel (0) target = $region17
    $region16: #{tpu_custom_call.1} parent=1 // pred_region
      _
    $region17: #{tpu_custom_call.1} parent=1 // pred_fallthru
      _
    // Predicated region
    $region18: #{tpu_custom_call.1} parent=1 // pred_check
      _
    $region19: #{tpu_custom_call.1} parent=1 // pred_check_branch
      %58 = sbr.rel (0) target = $region21
    $region20: #{tpu_custom_call.1} parent=1 // pred_region
      %s60 = ssub.s32 1024, 1024
      %61 = vsyncadd [#allocation11], %s60
      %s62 = sshll.u32 [#allocation10], 4
      %s63 = int_to_ptr.vmem [resolvable:$true] %s62
      %68 = dma.hbm_to_vmem [thread:$0]  %s4, 1024, %s63, [#allocation11], 128, 128, 8
    $region21: #{tpu_custom_call.1} parent=1 // pred_fallthru
      _
    // Predicated region
    $region22: #{tpu_custom_call.1} parent=1 // pred_check
      _
    $region23: #{tpu_custom_call.1} parent=1 // pred_check_branch
      %70 = sbr.rel (0) target = $region25
    $region24: #{tpu_custom_call.1} parent=1 // pred_region
      %s72 = ssub.s32 1024, 1024
      %73 = vsyncadd [#allocation11], %s72
      %s74 = sshll.u32 [#allocation12], 4
      %s75 = int_to_ptr.vmem [resolvable:$true] %s74
      %80 = dma.hbm_to_vmem [thread:$0]  %s5, 1024, %s75, [#allocation11], 128, 128, 8
    $region25: #{tpu_custom_call.1} parent=1 // pred_fallthru
      _
    // Predicated region
    $region26: #{tpu_custom_call.1} parent=1 // pred_check
      _
    $region27: #{tpu_custom_call.1} parent=1 // pred_check_branch
      %82 = sbr.rel (0) target = $region29
    $region28: #{tpu_custom_call.1} parent=1 // pred_region
      _
    $region29: #{tpu_custom_call.1} parent=1 // pred_fallthru
      _
    // Predicated region
    $region30: #{tpu_custom_call.1} parent=1 // pred_check
      _
    $region31: #{tpu_custom_call.1} parent=1 // pred_check_branch
      %84 = sbr.rel (0) target = $region33
    $region32: #{tpu_custom_call.1} parent=1 // pred_region
      _
    $region33: #{tpu_custom_call.1} parent=1 // pred_fallthru
      _
    // Predicated region
    $region34: #{tpu_custom_call.1} parent=1 // pred_check
      _
    $region35: #{tpu_custom_call.1} parent=1 // pred_check_branch
      %86 = sbr.rel (0) target = $region37
    $region36: #{tpu_custom_call.1} parent=1 // pred_region
      _
    $region37: #{tpu_custom_call.1} parent=1 // pred_fallthru
      _
    // Predicated region
    $region38: #{tpu_custom_call.1} parent=1 // pred_check
      _
    $region39: #{tpu_custom_call.1} parent=1 // pred_check_branch
      %88 = sbr.rel (0) target = $region41
    $region40: #{tpu_custom_call.1} parent=1 // pred_region
      %89 = dma.done [#allocation6], 1024
    $region41: #{tpu_custom_call.1} parent=1 // pred_fallthru
      _
    // Predicated region
    $region42: #{tpu_custom_call.1} parent=1 // pred_check
      _
    $region43: #{tpu_custom_call.1} parent=1 // pred_check_branch
      %91 = sbr.rel (0) target = $region45
    $region44: #{tpu_custom_call.1} parent=1 // pred_region
      %92 = dma.done [#allocation8], 512
    $region45: #{tpu_custom_call.1} parent=1 // pred_fallthru
      _
    // Predicated region
    $region46: #{tpu_custom_call.1} parent=1 // pred_check
      _
    $region47: #{tpu_custom_call.1} parent=1 // pred_check_branch
      %94 = sbr.rel (0) target = $region49
    $region48: #{tpu_custom_call.1} parent=1 // pred_region
      %95 = dma.done [#allocation8], 1024
    $region49: #{tpu_custom_call.1} parent=1 // pred_fallthru
      _
    // Predicated region
    $region50: #{tpu_custom_call.1} parent=1 // pred_check
      _
    $region51: #{tpu_custom_call.1} parent=1 // pred_check_branch
      %97 = sbr.rel (0) target = $region53
    $region52: #{tpu_custom_call.1} parent=1 // pred_region
      %98 = dma.done [#allocation11], 1024
    $region53: #{tpu_custom_call.1} parent=1 // pred_fallthru
      _
    // Predicated region
    $region54: #{tpu_custom_call.1} parent=1 // pred_check
      _
    $region55: #{tpu_custom_call.1} parent=1 // pred_check_branch
      %100 = sbr.rel (0) target = $region57
    $region56: #{tpu_custom_call.1} parent=1 // pred_region
      %101 = dma.done [#allocation11], 1024
    $region57: #{tpu_custom_call.1} parent=1 // pred_fallthru
      _
    %v103 = vld [vmem:[#allocation5] sm:$0xff]
    %v104 = vld [vmem:[#allocation5 + $0x8] sm:$0xff]
    %v105 = vld [vmem:[#allocation5 + $0x10] sm:$0xff]
    %v106 = vld [vmem:[#allocation5 + $0x18] sm:$0xff]
    %v107 = vld [vmem:[#allocation5 + $0x20] sm:$0xff]
    %v108 = vld [vmem:[#allocation5 + $0x28] sm:$0xff]
    %v109 = vld [vmem:[#allocation5 + $0x30] sm:$0xff]
    %v110 = vld [vmem:[#allocation5 + $0x38] sm:$0xff]
    %v111 = vpack.c.bf16 %v104, %v103
    %v112 = vpack.c.bf16 %v106, %v105
    %v113 = vpack.c.bf16 %v108, %v107
    %v114 = vpack.c.bf16 %v110, %v109
    %v115 = vld [vmem:[#allocation7] sm:$0xff]
    %v116 = vld [vmem:[#allocation7 + $0x8] sm:$0xff]
    %v117 = vld [vmem:[#allocation7 + $0x10] sm:$0xff]
    %v118 = vld [vmem:[#allocation7 + $0x18] sm:$0xff]
    %v119 = vld [vmem:[%s3] sm:$0x3]
    %v121 = vlaneseq
    %v122 = vshrl.u32 %v121, 7
    %v123 = vsub.s32 0, %v122
    %v124 = vrot.slane %v119, %v123
    %v125 = vlaneseq
    %v126 = vshrl.u32 %v125, 7
    %v127 = vsub.s32 1, %v126
    %v128 = vrot.slane %v119, %v127
    %v135 = vunpack.c.l.b16 %v115
    %v136 = vunpack.c.h.b16 %v115
    %v137 = vunpack.c.l.b16 %v116
    %v138 = vunpack.c.h.b16 %v116
    %v139 = vunpack.c.l.b16 %v117
    %v140 = vunpack.c.h.b16 %v117
    %v141 = vunpack.c.l.b16 %v118
    %v142 = vunpack.c.h.b16 %v118
    %v143 = vpack.c.b16 %v137, %v135
    %v144 = vpack.c.b16 %v138, %v136
    %v145 = vpack.c.b16 %v141, %v139
    %v146 = vpack.c.b16 %v142, %v140
    %vm151 = vcmask 261120
    %v153 = vsel %vm151, %v111, 0
    %v156 = vsel %vm151, %v112, 0
    %v159 = vsel %vm151, %v113, 0
    %v162 = vsel %vm151, %v114, 0
    %164 = vmatprep.subr.bf16.mxu0 %v144
    %165 = vmatpush1.bf16.msra.mxu0 %v143
    %166 = vmatprep.subr.bf16.mxu0 %v146
    %167 = vmatpush1.bf16.msra.mxu0 %v145
    %168 = vmatprep.subr.bf16.mxu0 0
    %169 = vmatpush1.bf16.msra.mxu0 0
    %170 = vmatprep.subr.bf16.mxu0 0
    %171 = vmatpush1.bf16.msra.mxu0 0
    %172 = vmatprep.subr.bf16.mxu0 0
    %173 = vmatpush1.bf16.msra.mxu0 0
    %174 = vmatprep.subr.bf16.mxu0 0
    %175 = vmatpush1.bf16.msra.mxu0 0
    %176 = vmatprep.subr.bf16.mxu0 0
    %177 = vmatpush1.bf16.msra.mxu0 0
    %178 = vmatprep.subr.bf16.mxu0 0
    %179 = vmatpush1.bf16.msra.mxu0 0
    %180 = vmatprep.subr.bf16.mxu0 0
    %181 = vmatpush1.bf16.msra.mxu0 0
    %182 = vmatprep.subr.bf16.mxu0 0
    %183 = vmatpush1.bf16.msra.mxu0 0
    %184 = vmatprep.subr.bf16.mxu0 0
    %185 = vmatpush1.bf16.msra.mxu0 0
    %186 = vmatprep.subr.bf16.mxu0 0
    %187 = vmatpush1.bf16.msra.mxu0 0
    %188 = vmatprep.subr.bf16.mxu0 0
    %189 = vmatpush1.bf16.msra.mxu0 0
    %190 = vmatprep.subr.bf16.mxu0 0
    %191 = vmatpush1.bf16.msra.mxu0 0
    %192 = vmatprep.subr.bf16.mxu0 0
    %193 = vmatpush1.bf16.msra.mxu0 0
    %194 = vmatprep.subr.bf16.mxu0 0
    %195 = vmatpush1.bf16.msra.mxu0 0
    %196 = vmatprep.mubr.bf16.mxu0 0
    %197 = vmatmul.mubr.bf16.gmra.mrb[0].mxu0 %v153
    %v198 = vpop.f32.mrb[0].mxu0
    %v199 = vadd.f32 %v124, %v198
    %v200 = vpop.f32.mrb[0].mxu0
    %v201 = vadd.f32 %v128, %v200
    %v202 = vpop.f32.mrb[0].mxu0
    %v203 = vadd.f32 %v124, %v202
    %v204 = vpop.f32.mrb[0].mxu0
    %v205 = vadd.f32 %v128, %v204
    %206 = vmatprep.mubr.bf16.mxu0 0
    %207 = vmatmul.mubr.bf16.gmra.mrb[0].mxu0 %v156
    %v208 = vpop.f32.mrb[0].mxu0
    %v209 = vadd.f32 %v124, %v208
    %v210 = vpop.f32.mrb[0].mxu0
    %v211 = vadd.f32 %v128, %v210
    %v212 = vpop.f32.mrb[0].mxu0
    %v213 = vadd.f32 %v124, %v212
    %v214 = vpop.f32.mrb[0].mxu0
    %v215 = vadd.f32 %v128, %v214
    %216 = vmatprep.mubr.bf16.mxu0 0
    %217 = vmatmul.mubr.bf16.gmra.mrb[0].mxu0 %v159
    %v218 = vpop.f32.mrb[0].mxu0
    %v219 = vadd.f32 %v124, %v218
    %v220 = vpop.f32.mrb[0].mxu0
    %v221 = vadd.f32 %v128, %v220
    %v222 = vpop.f32.mrb[0].mxu0
    %v223 = vadd.f32 %v124, %v222
    %v224 = vpop.f32.mrb[0].mxu0
    %v225 = vadd.f32 %v128, %v224
    %226 = vmatprep.mubr.bf16.mxu0 0
    %227 = vmatmul.mubr.bf16.gmra.mrb[0].mxu0 %v162
    %v228 = vpop.f32.mrb[0].mxu0
    %v229 = vadd.f32 %v124, %v228
    %v230 = vpop.f32.mrb[0].mxu0
    %v231 = vadd.f32 %v128, %v230
    %v232 = vpop.f32.mrb[0].mxu0
    %v233 = vadd.f32 %v124, %v232
    %v234 = vpop.f32.mrb[0].mxu0
    %v235 = vadd.f32 %v128, %v234
    %236 = vdwg.mxu0
    %v237 = vpack.c.bf16 %v199, %v199
    %v238 = vpack.c.bf16 %v201, %v201
    %v239 = vpack.c.bf16 %v203, %v203
    %v240 = vpack.c.bf16 %v205, %v205
    %v241 = vpack.c.bf16 %v209, %v209
    %v242 = vpack.c.bf16 %v211, %v211
    %v243 = vpack.c.bf16 %v213, %v213
    %v244 = vpack.c.bf16 %v215, %v215
    %v245 = vpack.c.bf16 %v219, %v219
    %v246 = vpack.c.bf16 %v221, %v221
    %v247 = vpack.c.bf16 %v223, %v223
    %v248 = vpack.c.bf16 %v225, %v225
    %v249 = vpack.c.bf16 %v229, %v229
    %v250 = vpack.c.bf16 %v231, %v231
    %v251 = vpack.c.bf16 %v233, %v233
    %v252 = vpack.c.bf16 %v235, %v235
    %v269 = vunpack.c.l.b16 %v237
    %v270 = vunpack.c.l.b16 %v238
    %v271 = vunpack.c.l.b16 %v239
    %v272 = vunpack.c.l.b16 %v240
    %v273 = vunpack.c.l.b16 %v241
    %v274 = vunpack.c.l.b16 %v242
    %v275 = vunpack.c.l.b16 %v243
    %v276 = vunpack.c.l.b16 %v244
    %v277 = vunpack.c.l.b16 %v245
    %v278 = vunpack.c.l.b16 %v246
    %v279 = vunpack.c.l.b16 %v247
    %v280 = vunpack.c.l.b16 %v248
    %v281 = vunpack.c.l.b16 %v249
    %v282 = vunpack.c.l.b16 %v250
    %v283 = vunpack.c.l.b16 %v251
    %v284 = vunpack.c.l.b16 %v252
    %v285 = vpack.c.b16 %v270, %v269
    %v286 = vpack.c.b16 %v272, %v271
    %v287 = vpack.c.b16 %v274, %v273
    %v288 = vpack.c.b16 %v276, %v275
    %v289 = vpack.c.b16 %v278, %v277
    %v290 = vpack.c.b16 %v280, %v279
    %v291 = vpack.c.b16 %v282, %v281
    %v292 = vpack.c.b16 %v284, %v283
    %301 = vst [vmem:[#allocation3] sm:$0xff] %v285
    %302 = vst [vmem:[#allocation3 + $0x8] sm:$0xff] %v286
    %303 = vst [vmem:[#allocation3 + $0x10] sm:$0xff] %v287
    %304 = vst [vmem:[#allocation3 + $0x18] sm:$0xff] %v288
    %305 = vst [vmem:[#allocation3 + $0x20] sm:$0xff] %v289
    %306 = vst [vmem:[#allocation3 + $0x28] sm:$0xff] %v290
    %307 = vst [vmem:[#allocation3 + $0x30] sm:$0xff] %v291
    %308 = vst [vmem:[#allocation3 + $0x38] sm:$0xff] %v292
    %v309 = vld [vmem:[#allocation9] sm:$0xff]
    %v310 = vld [vmem:[#allocation9 + $0x8] sm:$0xff]
    %v311 = vld [vmem:[#allocation9 + $0x10] sm:$0xff]
    %v312 = vld [vmem:[#allocation9 + $0x18] sm:$0xff]
    %v313 = vld [vmem:[#allocation9 + $0x20] sm:$0xff]
    %v314 = vld [vmem:[#allocation9 + $0x28] sm:$0xff]
    %v315 = vld [vmem:[#allocation9 + $0x30] sm:$0xff]
    %v316 = vld [vmem:[#allocation9 + $0x38] sm:$0xff]
    %v317 = vpack.c.bf16 0.0, 0.0
    %v326 = vunpack.c.l.b16 %v309
    %v327 = vunpack.c.h.b16 %v309
    %v328 = vunpack.c.l.b16 %v310
    %v329 = vunpack.c.h.b16 %v310
    %v330 = vunpack.c.l.b16 %v311
    %v331 = vunpack.c.h.b16 %v311
    %v332 = vunpack.c.l.b16 %v312
    %v333 = vunpack.c.h.b16 %v312
    %v334 = vunpack.c.l.b16 %v313
    %v335 = vunpack.c.h.b16 %v313
    %v336 = vunpack.c.l.b16 %v314
    %v337 = vunpack.c.h.b16 %v314
    %v338 = vunpack.c.l.b16 %v315
    %v339 = vunpack.c.h.b16 %v315
    %v340 = vunpack.c.l.b16 %v316
    %v341 = vunpack.c.h.b16 %v316
    %v342 = vpack.c.b16 %v328, %v326
    %v343 = vpack.c.b16 %v329, %v327
    %v344 = vpack.c.b16 %v332, %v330
    %v345 = vpack.c.b16 %v333, %v331
    %v346 = vpack.c.b16 %v336, %v334
    %v347 = vpack.c.b16 %v337, %v335
    %v348 = vpack.c.b16 %v340, %v338
    %v349 = vpack.c.b16 %v341, %v339
    %vm358 = vcmask 523264
    %v360 = vsel %vm358, %v317, 0
    %362 = vmatprep.subr.bf16.mxu0 %v343
    %363 = vmatpush1.bf16.msra.mxu0 %v342
    %364 = vmatprep.subr.bf16.mxu0 %v345
    %365 = vmatpush1.bf16.msra.mxu0 %v344
    %366 = vmatprep.subr.bf16.mxu0 %v347
    %367 = vmatpush1.bf16.msra.mxu0 %v346
    %368 = vmatprep.subr.bf16.mxu0 %v349
    %369 = vmatpush1.bf16.msra.mxu0 %v348
    %370 = vmatprep.subr.bf16.mxu0 0
    %371 = vmatpush1.bf16.msra.mxu0 0
    %372 = vmatprep.subr.bf16.mxu0 0
    %373 = vmatpush1.bf16.msra.mxu0 0
    %374 = vmatprep.subr.bf16.mxu0 0
    %375 = vmatpush1.bf16.msra.mxu0 0
    %376 = vmatprep.subr.bf16.mxu0 0
    %377 = vmatpush1.bf16.msra.mxu0 0
    %378 = vmatprep.subr.bf16.mxu0 0
    %379 = vmatpush1.bf16.msra.mxu0 0
    %380 = vmatprep.subr.bf16.mxu0 0
    %381 = vmatpush1.bf16.msra.mxu0 0
    %382 = vmatprep.subr.bf16.mxu0 0
    %383 = vmatpush1.bf16.msra.mxu0 0
    %384 = vmatprep.subr.bf16.mxu0 0
    %385 = vmatpush1.bf16.msra.mxu0 0
    %386 = vmatprep.subr.bf16.mxu0 0
    %387 = vmatpush1.bf16.msra.mxu0 0
    %388 = vmatprep.subr.bf16.mxu0 0
    %389 = vmatpush1.bf16.msra.mxu0 0
    %390 = vmatprep.subr.bf16.mxu0 0
    %391 = vmatpush1.bf16.msra.mxu0 0
    %392 = vmatprep.subr.bf16.mxu0 0
    %393 = vmatpush1.bf16.msra.mxu0 0
    %394 = vmatprep.mubr.bf16.mxu0 0
    %395 = vmatmul.mubr.bf16.gmra.mrb[0].mxu0 %v360
    %v396 = vpop.f32.mrb[0].mxu0
    %v397 = vadd.f32 0.0, %v396
    %v398 = vpop.f32.mrb[0].mxu0
    %v399 = vadd.f32 0.0, %v398
    %v400 = vpop.f32.mrb[0].mxu0
    %v401 = vpop.f32.mrb[0].mxu0
    %402 = vdwg.mxu0
    %v403 = vld [vmem:[#allocation3] sm:$0xf]
    %v404 = vunpack.c.l.bf16 %v403
    %v405 = vadd.f32 %v404, %v397
    %s406 = scalar_lea.vmem [#allocation3], 56
    %v407 = vld [vmem:[%s406 + $0x4] sm:$0xf]
    %v408 = vunpack.c.l.bf16 %v407
    %v409 = vadd.f32 %v408, %v399
    %v410 = vxor.u32 %v405, 2147483648
    %v411 = vmul.f32 %v410, 1.442695
    %v412 = vpow.pop %v411
    %v413 = vadd.f32 %v412, 1.0
    %v414 = vrcp.pop %v413
    %v415 = vmul.f32 1.0, %v414
    %v416 = vtanh.pop %v405
    %v417 = vmul.f32 %v415, 0.0
    %419 = vrot.lane.b32.xlu0 %v416, 64
    %v420 = vpop.permute.xlu0 %419
    %v422 = vmul.f32 %v415, %v420
    %424 = vrot.lane.b32.xlu0 %v422, 32
    %v425 = vpop.permute.xlu0 %424
    %v427 = vadd.f32 %v417, %v425
    %v428 = vtanh.pop %v427
    %430 = vrot.lane.b32.xlu0 %v428, 64
    %v431 = vpop.permute.xlu0 %430
    %v433 = vmul.f32 %v415, %v431
    %v434 = vxor.u32 %v409, 2147483648
    %v435 = vmul.f32 %v434, 1.442695
    %v436 = vpow.pop %v435
    %v437 = vadd.f32 %v436, 1.0
    %v438 = vrcp.pop %v437
    %v439 = vmul.f32 1.0, %v438
    %v440 = vtanh.pop %v409
    %v441 = vmul.f32 %v439, 0.0
    %443 = vrot.lane.b32.xlu0 %v440, 64
    %v444 = vpop.permute.xlu0 %443
    %v446 = vmul.f32 %v439, %v444
    %448 = vrot.lane.b32.xlu0 %v446, 32
    %v449 = vpop.permute.xlu0 %448
    %v451 = vadd.f32 %v441, %v449
    %v452 = vtanh.pop %v451
    %454 = vrot.lane.b32.xlu0 %v452, 64
    %v455 = vpop.permute.xlu0 %454
    %v457 = vmul.f32 %v439, %v455
    %459 = vrot.lane.b32.xlu0 %v433, 32
    %v460 = vpop.permute.xlu0 %459
    %462 = vst.msk [vmem:[#allocation2] sm:$0xff] %vm151, %v460
    %464 = vrot.lane.b32.xlu0 %v457, 64
    %v465 = vpop.permute.xlu0 %464
    %s467 = scalar_lea.vmem [#allocation2], 56
    %vm468 = vcmask 523520
    %469 = vst.msk [vmem:[%s467] sm:$0xff] %vm468, %v465
    %v470 = vsel %vm151, %v460, %v465
    %v471 = vpack.c.bf16 %v470, %v470
    %v473 = vsel %vm358, %v471, 0
    %475 = vmatprep.subr.bf16.mxu0 %v343
    %476 = vmatpush1.bf16.msra.mxu0 %v342
    %477 = vmatprep.subr.bf16.mxu0 %v345
    %478 = vmatpush1.bf16.msra.mxu0 %v344
    %479 = vmatprep.subr.bf16.mxu0 %v347
    %480 = vmatpush1.bf16.msra.mxu0 %v346
    %481 = vmatprep.subr.bf16.mxu0 %v349
    %482 = vmatpush1.bf16.msra.mxu0 %v348
    %483 = vmatprep.subr.bf16.mxu0 0
    %484 = vmatpush1.bf16.msra.mxu0 0
    %485 = vmatprep.subr.bf16.mxu0 0
    %486 = vmatpush1.bf16.msra.mxu0 0
    %487 = vmatprep.subr.bf16.mxu0 0
    %488 = vmatpush1.bf16.msra.mxu0 0
    %489 = vmatprep.subr.bf16.mxu0 0
    %490 = vmatpush1.bf16.msra.mxu0 0
    %491 = vmatprep.subr.bf16.mxu0 0
    %492 = vmatpush1.bf16.msra.mxu0 0
    %493 = vmatprep.subr.bf16.mxu0 0
    %494 = vmatpush1.bf16.msra.mxu0 0
    %495 = vmatprep.subr.bf16.mxu0 0
    %496 = vmatpush1.bf16.msra.mxu0 0
    %497 = vmatprep.subr.bf16.mxu0 0
    %498 = vmatpush1.bf16.msra.mxu0 0
    %499 = vmatprep.subr.bf16.mxu0 0
    %500 = vmatpush1.bf16.msra.mxu0 0
    %501 = vmatprep.subr.bf16.mxu0 0
    %502 = vmatpush1.bf16.msra.mxu0 0
    %503 = vmatprep.subr.bf16.mxu0 0
    %504 = vmatpush1.bf16.msra.mxu0 0
    %505 = vmatprep.subr.bf16.mxu0 0
    %506 = vmatpush1.bf16.msra.mxu0 0
    %507 = vmatprep.mubr.bf16.mxu0 0
    %508 = vmatmul.mubr.bf16.gmra.mrb[0].mxu0 %v473
    %v509 = vpop.f32.mrb[0].mxu0
    %v510 = vadd.f32 0.0, %v509
    %v511 = vpop.f32.mrb[0].mxu0
    %v512 = vadd.f32 0.0, %v511
    %v513 = vpop.f32.mrb[0].mxu0
    %v514 = vpop.f32.mrb[0].mxu0
    %515 = vdwg.mxu0
    %s516 = scalar_lea.vmem [#allocation3], 8
    %v517 = vld [vmem:[%s516] sm:$0xf]
    %v518 = vunpack.c.l.bf16 %v517
    %v519 = vadd.f32 %v518, %v510
    %s520 = scalar_lea.vmem [#allocation3], 48
    %v521 = vld [vmem:[%s520 + $0x4] sm:$0xf]
    %v522 = vunpack.c.l.bf16 %v521
    %v523 = vadd.f32 %v522, %v512
    %v524 = vxor.u32 %v519, 2147483648
    %v525 = vmul.f32 %v524, 1.442695
    %v526 = vpow.pop %v525
    %v527 = vadd.f32 %v526, 1.0
    %v528 = vrcp.pop %v527
    %v529 = vmul.f32 1.0, %v528
    %v530 = vtanh.pop %v519
    %v531 = vmul.f32 %v529, %v427
    %533 = vrot.lane.b32.xlu0 %v530, 64
    %v534 = vpop.permute.xlu0 %533
    %v536 = vmul.f32 %v529, %v534
    %538 = vrot.lane.b32.xlu0 %v536, 32
    %v539 = vpop.permute.xlu0 %538
    %v541 = vadd.f32 %v531, %v539
    %v542 = vtanh.pop %v541
    %544 = vrot.lane.b32.xlu0 %v542, 64
    %v545 = vpop.permute.xlu0 %544
    %v547 = vmul.f32 %v529, %v545
    %v548 = vxor.u32 %v523, 2147483648
    %v549 = vmul.f32 %v548, 1.442695
    %v550 = vpow.pop %v549
    %v551 = vadd.f32 %v550, 1.0
    %v552 = vrcp.pop %v551
    %v553 = vmul.f32 1.0, %v552
    %v554 = vtanh.pop %v523
    %v555 = vmul.f32 %v553, %v451
    %557 = vrot.lane.b32.xlu0 %v554, 64
    %v558 = vpop.permute.xlu0 %557
    %v560 = vmul.f32 %v553, %v558
    %562 = vrot.lane.b32.xlu0 %v560, 32
    %v563 = vpop.permute.xlu0 %562
    %v565 = vadd.f32 %v555, %v563
    %v566 = vtanh.pop %v565
    %568 = vrot.lane.b32.xlu0 %v566, 64
    %v569 = vpop.permute.xlu0 %568
    %v571 = vmul.f32 %v553, %v569
    %573 = vrot.lane.b32.xlu0 %v547, 32
    %v574 = vpop.permute.xlu0 %573
    %s576 = scalar_lea.vmem [#allocation2], 8
    %577 = vst.msk [vmem:[%s576] sm:$0xff] %vm151, %v574
    %579 = vrot.lane.b32.xlu0 %v571, 64
    %v580 = vpop.permute.xlu0 %579
    %s582 = scalar_lea.vmem [#allocation2], 48
    %583 = vst.msk [vmem:[%s582] sm:$0xff] %vm468, %v580
    %v584 = vsel %vm151, %v574, %v580
    %v585 = vpack.c.bf16 %v584, %v584
    %v587 = vsel %vm358, %v585, 0
    %589 = vmatprep.subr.bf16.mxu0 %v343
    %590 = vmatpush1.bf16.msra.mxu0 %v342
    %591 = vmatprep.subr.bf16.mxu0 %v345
    %592 = vmatpush1.bf16.msra.mxu0 %v344
    %593 = vmatprep.subr.bf16.mxu0 %v347
    %594 = vmatpush1.bf16.msra.mxu0 %v346
    %595 = vmatprep.subr.bf16.mxu0 %v349
    %596 = vmatpush1.bf16.msra.mxu0 %v348
    %597 = vmatprep.subr.bf16.mxu0 0
    %598 = vmatpush1.bf16.msra.mxu0 0
    %599 = vmatprep.subr.bf16.mxu0 0
    %600 = vmatpush1.bf16.msra.mxu0 0
    %601 = vmatprep.subr.bf16.mxu0 0
    %602 = vmatpush1.bf16.msra.mxu0 0
    %603 = vmatprep.subr.bf16.mxu0 0
    %604 = vmatpush1.bf16.msra.mxu0 0
    %605 = vmatprep.subr.bf16.mxu0 0
    %606 = vmatpush1.bf16.msra.mxu0 0
    %607 = vmatprep.subr.bf16.mxu0 0
    %608 = vmatpush1.bf16.msra.mxu0 0
    %609 = vmatprep.subr.bf16.mxu0 0
    %610 = vmatpush1.bf16.msra.mxu0 0
    %611 = vmatprep.subr.bf16.mxu0 0
    %612 = vmatpush1.bf16.msra.mxu0 0
    %613 = vmatprep.subr.bf16.mxu0 0
    %614 = vmatpush1.bf16.msra.mxu0 0
    %615 = vmatprep.subr.bf16.mxu0 0
    %616 = vmatpush1.bf16.msra.mxu0 0
    %617 = vmatprep.subr.bf16.mxu0 0
    %618 = vmatpush1.bf16.msra.mxu0 0
    %619 = vmatprep.subr.bf16.mxu0 0
    %620 = vmatpush1.bf16.msra.mxu0 0
    %621 = vmatprep.mubr.bf16.mxu0 0
    %622 = vmatmul.mubr.bf16.gmra.mrb[0].mxu0 %v587
    %v623 = vpop.f32.mrb[0].mxu0
    %v624 = vadd.f32 0.0, %v623
    %v625 = vpop.f32.mrb[0].mxu0
    %v626 = vadd.f32 0.0, %v625
    %v627 = vpop.f32.mrb[0].mxu0
    %v628 = vpop.f32.mrb[0].mxu0
    %629 = vdwg.mxu0
    %s630 = scalar_lea.vmem [#allocation3], 16
    %v631 = vld [vmem:[%s630] sm:$0xf]
    %v632 = vunpack.c.l.bf16 %v631
    %v633 = vadd.f32 %v632, %v624
    %s634 = scalar_lea.vmem [#allocation3], 40
    %v635 = vld [vmem:[%s634 + $0x4] sm:$0xf]
    %v636 = vunpack.c.l.bf16 %v635
    %v637 = vadd.f32 %v636, %v626
    %v638 = vxor.u32 %v633, 2147483648
    %v639 = vmul.f32 %v638, 1.442695
    %v640 = vpow.pop %v639
    %v641 = vadd.f32 %v640, 1.0
    %v642 = vrcp.pop %v641
    %v643 = vmul.f32 1.0, %v642
    %v644 = vtanh.pop %v633
    %v645 = vmul.f32 %v643, %v541
    %647 = vrot.lane.b32.xlu0 %v644, 64
    %v648 = vpop.permute.xlu0 %647
    %v650 = vmul.f32 %v643, %v648
    %652 = vrot.lane.b32.xlu0 %v650, 32
    %v653 = vpop.permute.xlu0 %652
    %v655 = vadd.f32 %v645, %v653
    %v656 = vtanh.pop %v655
    %658 = vrot.lane.b32.xlu0 %v656, 64
    %v659 = vpop.permute.xlu0 %658
    %v661 = vmul.f32 %v643, %v659
    %v662 = vxor.u32 %v637, 2147483648
    %v663 = vmul.f32 %v662, 1.442695
    %v664 = vpow.pop %v663
    %v665 = vadd.f32 %v664, 1.0
    %v666 = vrcp.pop %v665
    %v667 = vmul.f32 1.0, %v666
    %v668 = vtanh.pop %v637
    %v669 = vmul.f32 %v667, %v565
    %671 = vrot.lane.b32.xlu0 %v668, 64
    %v672 = vpop.permute.xlu0 %671
    %v674 = vmul.f32 %v667, %v672
    %676 = vrot.lane.b32.xlu0 %v674, 32
    %v677 = vpop.permute.xlu0 %676
    %v679 = vadd.f32 %v669, %v677
    %v680 = vtanh.pop %v679
    %682 = vrot.lane.b32.xlu0 %v680, 64
    %v683 = vpop.permute.xlu0 %682
    %v685 = vmul.f32 %v667, %v683
    %687 = vrot.lane.b32.xlu0 %v661, 32
    %v688 = vpop.permute.xlu0 %687
    %s690 = scalar_lea.vmem [#allocation2], 16
    %691 = vst.msk [vmem:[%s690] sm:$0xff] %vm151, %v688
    %693 = vrot.lane.b32.xlu0 %v685, 64
    %v694 = vpop.permute.xlu0 %693
    %s696 = scalar_lea.vmem [#allocation2], 40
    %697 = vst.msk [vmem:[%s696] sm:$0xff] %vm468, %v694
    %v698 = vsel %vm151, %v688, %v694
    %v699 = vpack.c.bf16 %v698, %v698
    %v701 = vsel %vm358, %v699, 0
    %703 = vmatprep.subr.bf16.mxu0 %v343
    %704 = vmatpush1.bf16.msra.mxu0 %v342
    %705 = vmatprep.subr.bf16.mxu0 %v345
    %706 = vmatpush1.bf16.msra.mxu0 %v344
    %707 = vmatprep.subr.bf16.mxu0 %v347
    %708 = vmatpush1.bf16.msra.mxu0 %v346
    %709 = vmatprep.subr.bf16.mxu0 %v349
    %710 = vmatpush1.bf16.msra.mxu0 %v348
    %711 = vmatprep.subr.bf16.mxu0 0
    %712 = vmatpush1.bf16.msra.mxu0 0
    %713 = vmatprep.subr.bf16.mxu0 0
    %714 = vmatpush1.bf16.msra.mxu0 0
    %715 = vmatprep.subr.bf16.mxu0 0
    %716 = vmatpush1.bf16.msra.mxu0 0
    %717 = vmatprep.subr.bf16.mxu0 0
    %718 = vmatpush1.bf16.msra.mxu0 0
    %719 = vmatprep.subr.bf16.mxu0 0
    %720 = vmatpush1.bf16.msra.mxu0 0
    %721 = vmatprep.subr.bf16.mxu0 0
    %722 = vmatpush1.bf16.msra.mxu0 0
    %723 = vmatprep.subr.bf16.mxu0 0
    %724 = vmatpush1.bf16.msra.mxu0 0
    %725 = vmatprep.subr.bf16.mxu0 0
    %726 = vmatpush1.bf16.msra.mxu0 0
    %727 = vmatprep.subr.bf16.mxu0 0
    %728 = vmatpush1.bf16.msra.mxu0 0
    %729 = vmatprep.subr.bf16.mxu0 0
    %730 = vmatpush1.bf16.msra.mxu0 0
    %731 = vmatprep.subr.bf16.mxu0 0
    %732 = vmatpush1.bf16.msra.mxu0 0
    %733 = vmatprep.subr.bf16.mxu0 0
    %734 = vmatpush1.bf16.msra.mxu0 0
    %735 = vmatprep.mubr.bf16.mxu0 0
    %736 = vmatmul.mubr.bf16.gmra.mrb[0].mxu0 %v701
    %v737 = vpop.f32.mrb[0].mxu0
    %v738 = vadd.f32 0.0, %v737
    %v739 = vpop.f32.mrb[0].mxu0
    %v740 = vadd.f32 0.0, %v739
    %v741 = vpop.f32.mrb[0].mxu0
    %v742 = vpop.f32.mrb[0].mxu0
    %743 = vdwg.mxu0
    %s744 = scalar_lea.vmem [#allocation3], 24
    %v745 = vld [vmem:[%s744] sm:$0xf]
    %v746 = vunpack.c.l.bf16 %v745
    %v747 = vadd.f32 %v746, %v738
    %s748 = scalar_lea.vmem [#allocation3], 32
    %v749 = vld [vmem:[%s748 + $0x4] sm:$0xf]
    %v750 = vunpack.c.l.bf16 %v749
    %v751 = vadd.f32 %v750, %v740
    %v752 = vxor.u32 %v747, 2147483648
    %v753 = vmul.f32 %v752, 1.442695
    %v754 = vpow.pop %v753
    %v755 = vadd.f32 %v754, 1.0
    %v756 = vrcp.pop %v755
    %v757 = vmul.f32 1.0, %v756
    %v758 = vtanh.pop %v747
    %v759 = vmul.f32 %v757, %v655
    %761 = vrot.lane.b32.xlu0 %v758, 64
    %v762 = vpop.permute.xlu0 %761
    %v764 = vmul.f32 %v757, %v762
    %766 = vrot.lane.b32.xlu0 %v764, 32
    %v767 = vpop.permute.xlu0 %766
    %v769 = vadd.f32 %v759, %v767
    %v770 = vtanh.pop %v769
    %772 = vrot.lane.b32.xlu0 %v770, 64
    %v773 = vpop.permute.xlu0 %772
    %v775 = vmul.f32 %v757, %v773
    %v776 = vxor.u32 %v751, 2147483648
    %v777 = vmul.f32 %v776, 1.442695
    %v778 = vpow.pop %v777
    %v779 = vadd.f32 %v778, 1.0
    %v780 = vrcp.pop %v779
    %v781 = vmul.f32 1.0, %v780
    %v782 = vtanh.pop %v751
    %v783 = vmul.f32 %v781, %v679
    %785 = vrot.lane.b32.xlu0 %v782, 64
    %v786 = vpop.permute.xlu0 %785
    %v788 = vmul.f32 %v781, %v786
    %790 = vrot.lane.b32.xlu0 %v788, 32
    %v791 = vpop.permute.xlu0 %790
    %v793 = vadd.f32 %v783, %v791
    %v794 = vtanh.pop %v793
    %796 = vrot.lane.b32.xlu0 %v794, 64
    %v797 = vpop.permute.xlu0 %796
    %v799 = vmul.f32 %v781, %v797
    %801 = vrot.lane.b32.xlu0 %v775, 32
    %v802 = vpop.permute.xlu0 %801
    %s804 = scalar_lea.vmem [#allocation2], 24
    %805 = vst.msk [vmem:[%s804] sm:$0xff] %vm151, %v802
    %807 = vrot.lane.b32.xlu0 %v799, 64
    %v808 = vpop.permute.xlu0 %807
    %s810 = scalar_lea.vmem [#allocation2], 32
    %811 = vst.msk [vmem:[%s810] sm:$0xff] %vm468, %v808
    %v812 = vsel %vm151, %v802, %v808
    %v813 = vpack.c.bf16 %v812, %v812
    %v815 = vsel %vm358, %v813, 0
    %817 = vmatprep.subr.bf16.mxu0 %v343
    %818 = vmatpush1.bf16.msra.mxu0 %v342
    %819 = vmatprep.subr.bf16.mxu0 %v345
    %820 = vmatpush1.bf16.msra.mxu0 %v344
    %821 = vmatprep.subr.bf16.mxu0 %v347
    %822 = vmatpush1.bf16.msra.mxu0 %v346
    %823 = vmatprep.subr.bf16.mxu0 %v349
    %824 = vmatpush1.bf16.msra.mxu0 %v348
    %825 = vmatprep.subr.bf16.mxu0 0
    %826 = vmatpush1.bf16.msra.mxu0 0
    %827 = vmatprep.subr.bf16.mxu0 0
    %828 = vmatpush1.bf16.msra.mxu0 0
    %829 = vmatprep.subr.bf16.mxu0 0
    %830 = vmatpush1.bf16.msra.mxu0 0
    %831 = vmatprep.subr.bf16.mxu0 0
    %832 = vmatpush1.bf16.msra.mxu0 0
    %833 = vmatprep.subr.bf16.mxu0 0
    %834 = vmatpush1.bf16.msra.mxu0 0
    %835 = vmatprep.subr.bf16.mxu0 0
    %836 = vmatpush1.bf16.msra.mxu0 0
    %837 = vmatprep.subr.bf16.mxu0 0
    %838 = vmatpush1.bf16.msra.mxu0 0
    %839 = vmatprep.subr.bf16.mxu0 0
    %840 = vmatpush1.bf16.msra.mxu0 0
    %841 = vmatprep.subr.bf16.mxu0 0
    %842 = vmatpush1.bf16.msra.mxu0 0
    %843 = vmatprep.subr.bf16.mxu0 0
    %844 = vmatpush1.bf16.msra.mxu0 0
    %845 = vmatprep.subr.bf16.mxu0 0
    %846 = vmatpush1.bf16.msra.mxu0 0
    %847 = vmatprep.subr.bf16.mxu0 0
    %848 = vmatpush1.bf16.msra.mxu0 0
    %849 = vmatprep.mubr.bf16.mxu0 0
    %850 = vmatmul.mubr.bf16.gmra.mrb[0].mxu0 %v815
    %v851 = vpop.f32.mrb[0].mxu0
    %v852 = vadd.f32 0.0, %v851
    %v853 = vpop.f32.mrb[0].mxu0
    %v854 = vadd.f32 0.0, %v853
    %v855 = vpop.f32.mrb[0].mxu0
    %v856 = vpop.f32.mrb[0].mxu0
    %857 = vdwg.mxu0
    %v858 = vld [vmem:[%s748] sm:$0xf]
    %v859 = vunpack.c.l.bf16 %v858
    %v860 = vadd.f32 %v859, %v852
    %v861 = vld [vmem:[%s744 + $0x4] sm:$0xf]
    %v862 = vunpack.c.l.bf16 %v861
    %v863 = vadd.f32 %v862, %v854
    %v864 = vxor.u32 %v860, 2147483648
    %v865 = vmul.f32 %v864, 1.442695
    %v866 = vpow.pop %v865
    %v867 = vadd.f32 %v866, 1.0
    %v868 = vrcp.pop %v867
    %v869 = vmul.f32 1.0, %v868
    %v870 = vtanh.pop %v860
    %v871 = vmul.f32 %v869, %v769
    %873 = vrot.lane.b32.xlu0 %v870, 64
    %v874 = vpop.permute.xlu0 %873
    %v876 = vmul.f32 %v869, %v874
    %878 = vrot.lane.b32.xlu0 %v876, 32
    %v879 = vpop.permute.xlu0 %878
    %v881 = vadd.f32 %v871, %v879
    %v882 = vtanh.pop %v881
    %884 = vrot.lane.b32.xlu0 %v882, 64
    %v885 = vpop.permute.xlu0 %884
    %v887 = vmul.f32 %v869, %v885
    %v888 = vxor.u32 %v863, 2147483648
    %v889 = vmul.f32 %v888, 1.442695
    %v890 = vpow.pop %v889
    %v891 = vadd.f32 %v890, 1.0
    %v892 = vrcp.pop %v891
    %v893 = vmul.f32 1.0, %v892
    %v894 = vtanh.pop %v863
    %v895 = vmul.f32 %v893, %v793
    %897 = vrot.lane.b32.xlu0 %v894, 64
    %v898 = vpop.permute.xlu0 %897
    %v900 = vmul.f32 %v893, %v898
    %902 = vrot.lane.b32.xlu0 %v900, 32
    %v903 = vpop.permute.xlu0 %902
    %v905 = vadd.f32 %v895, %v903
    %v906 = vtanh.pop %v905
    %908 = vrot.lane.b32.xlu0 %v906, 64
    %v909 = vpop.permute.xlu0 %908
    %v911 = vmul.f32 %v893, %v909
    %913 = vrot.lane.b32.xlu0 %v887, 32
    %v914 = vpop.permute.xlu0 %913
    %916 = vst.msk [vmem:[%s810] sm:$0xff] %vm151, %v914
    %918 = vrot.lane.b32.xlu0 %v911, 64
    %v919 = vpop.permute.xlu0 %918
    %921 = vst.msk [vmem:[%s804] sm:$0xff] %vm468, %v919
    %v922 = vsel %vm151, %v914, %v919
    %v923 = vpack.c.bf16 %v922, %v922
    %v925 = vsel %vm358, %v923, 0
    %927 = vmatprep.subr.bf16.mxu0 %v343
    %928 = vmatpush1.bf16.msra.mxu0 %v342
    %929 = vmatprep.subr.bf16.mxu0 %v345
    %930 = vmatpush1.bf16.msra.mxu0 %v344
    %931 = vmatprep.subr.bf16.mxu0 %v347
    %932 = vmatpush1.bf16.msra.mxu0 %v346
    %933 = vmatprep.subr.bf16.mxu0 %v349
    %934 = vmatpush1.bf16.msra.mxu0 %v348
    %935 = vmatprep.subr.bf16.mxu0 0
    %936 = vmatpush1.bf16.msra.mxu0 0
    %937 = vmatprep.subr.bf16.mxu0 0
    %938 = vmatpush1.bf16.msra.mxu0 0
    %939 = vmatprep.subr.bf16.mxu0 0
    %940 = vmatpush1.bf16.msra.mxu0 0
    %941 = vmatprep.subr.bf16.mxu0 0
    %942 = vmatpush1.bf16.msra.mxu0 0
    %943 = vmatprep.subr.bf16.mxu0 0
    %944 = vmatpush1.bf16.msra.mxu0 0
    %945 = vmatprep.subr.bf16.mxu0 0
    %946 = vmatpush1.bf16.msra.mxu0 0
    %947 = vmatprep.subr.bf16.mxu0 0
    %948 = vmatpush1.bf16.msra.mxu0 0
    %949 = vmatprep.subr.bf16.mxu0 0
    %950 = vmatpush1.bf16.msra.mxu0 0
    %951 = vmatprep.subr.bf16.mxu0 0
    %952 = vmatpush1.bf16.msra.mxu0 0
    %953 = vmatprep.subr.bf16.mxu0 0
    %954 = vmatpush1.bf16.msra.mxu0 0
    %955 = vmatprep.subr.bf16.mxu0 0
    %956 = vmatpush1.bf16.msra.mxu0 0
    %957 = vmatprep.subr.bf16.mxu0 0
    %958 = vmatpush1.bf16.msra.mxu0 0
    %959 = vmatprep.mubr.bf16.mxu0 0
    %960 = vmatmul.mubr.bf16.gmra.mrb[0].mxu0 %v925
    %v961 = vpop.f32.mrb[0].mxu0
    %v962 = vadd.f32 0.0, %v961
    %v963 = vpop.f32.mrb[0].mxu0
    %v964 = vadd.f32 0.0, %v963
    %v965 = vpop.f32.mrb[0].mxu0
    %v966 = vpop.f32.mrb[0].mxu0
    %967 = vdwg.mxu0
    %v968 = vld [vmem:[%s634] sm:$0xf]
    %v969 = vunpack.c.l.bf16 %v968
    %v970 = vadd.f32 %v969, %v962
    %v971 = vld [vmem:[%s630 + $0x4] sm:$0xf]
    %v972 = vunpack.c.l.bf16 %v971
    %v973 = vadd.f32 %v972, %v964
    %v974 = vxor.u32 %v970, 2147483648
    %v975 = vmul.f32 %v974, 1.442695
    %v976 = vpow.pop %v975
    %v977 = vadd.f32 %v976, 1.0
    %v978 = vrcp.pop %v977
    %v979 = vmul.f32 1.0, %v978
    %v980 = vtanh.pop %v970
    %v981 = vmul.f32 %v979, %v881
    %983 = vrot.lane.b32.xlu0 %v980, 64
    %v984 = vpop.permute.xlu0 %983
    %v986 = vmul.f32 %v979, %v984
    %988 = vrot.lane.b32.xlu0 %v986, 32
    %v989 = vpop.permute.xlu0 %988
    %v991 = vadd.f32 %v981, %v989
    %v992 = vtanh.pop %v991
    %994 = vrot.lane.b32.xlu0 %v992, 64
    %v995 = vpop.permute.xlu0 %994
    %v997 = vmul.f32 %v979, %v995
    %v998 = vxor.u32 %v973, 2147483648
    %v999 = vmul.f32 %v998, 1.442695
    %v1000 = vpow.pop %v999
    %v1001 = vadd.f32 %v1000, 1.0
    %v1002 = vrcp.pop %v1001
    %v1003 = vmul.f32 1.0, %v1002
    %v1004 = vtanh.pop %v973
    %v1005 = vmul.f32 %v1003, %v905
    %1007 = vrot.lane.b32.xlu0 %v1004, 64
    %v1008 = vpop.permute.xlu0 %1007
    %v1010 = vmul.f32 %v1003, %v1008
    %1012 = vrot.lane.b32.xlu0 %v1010, 32
    %v1013 = vpop.permute.xlu0 %1012
    %v1015 = vadd.f32 %v1005, %v1013
    %v1016 = vtanh.pop %v1015
    %1018 = vrot.lane.b32.xlu0 %v1016, 64
    %v1019 = vpop.permute.xlu0 %1018
    %v1021 = vmul.f32 %v1003, %v1019
    %1023 = vrot.lane.b32.xlu0 %v997, 32
    %v1024 = vpop.permute.xlu0 %1023
    %1026 = vst.msk [vmem:[%s696] sm:$0xff] %vm151, %v1024
    %1028 = vrot.lane.b32.xlu0 %v1021, 64
    %v1029 = vpop.permute.xlu0 %1028
    %1031 = vst.msk [vmem:[%s690] sm:$0xff] %vm468, %v1029
    %v1032 = vsel %vm151, %v1024, %v1029
    %v1033 = vpack.c.bf16 %v1032, %v1032
    %v1035 = vsel %vm358, %v1033, 0
    %1037 = vmatprep.subr.bf16.mxu0 %v343
    %1038 = vmatpush1.bf16.msra.mxu0 %v342
    %1039 = vmatprep.subr.bf16.mxu0 %v345
    %1040 = vmatpush1.bf16.msra.mxu0 %v344
    %1041 = vmatprep.subr.bf16.mxu0 %v347
    %1042 = vmatpush1.bf16.msra.mxu0 %v346
    %1043 = vmatprep.subr.bf16.mxu0 %v349
    %1044 = vmatpush1.bf16.msra.mxu0 %v348
    %1045 = vmatprep.subr.bf16.mxu0 0
    %1046 = vmatpush1.bf16.msra.mxu0 0
    %1047 = vmatprep.subr.bf16.mxu0 0
    %1048 = vmatpush1.bf16.msra.mxu0 0
    %1049 = vmatprep.subr.bf16.mxu0 0
    %1050 = vmatpush1.bf16.msra.mxu0 0
    %1051 = vmatprep.subr.bf16.mxu0 0
    %1052 = vmatpush1.bf16.msra.mxu0 0
    %1053 = vmatprep.subr.bf16.mxu0 0
    %1054 = vmatpush1.bf16.msra.mxu0 0
    %1055 = vmatprep.subr.bf16.mxu0 0
    %1056 = vmatpush1.bf16.msra.mxu0 0
    %1057 = vmatprep.subr.bf16.mxu0 0
    %1058 = vmatpush1.bf16.msra.mxu0 0
    %1059 = vmatprep.subr.bf16.mxu0 0
    %1060 = vmatpush1.bf16.msra.mxu0 0
    %1061 = vmatprep.subr.bf16.mxu0 0
    %1062 = vmatpush1.bf16.msra.mxu0 0
    %1063 = vmatprep.subr.bf16.mxu0 0
    %1064 = vmatpush1.bf16.msra.mxu0 0
    %1065 = vmatprep.subr.bf16.mxu0 0
    %1066 = vmatpush1.bf16.msra.mxu0 0
    %1067 = vmatprep.subr.bf16.mxu0 0
    %1068 = vmatpush1.bf16.msra.mxu0 0
    %1069 = vmatprep.mubr.bf16.mxu0 0
    %1070 = vmatmul.mubr.bf16.gmra.mrb[0].mxu0 %v1035
    %v1071 = vpop.f32.mrb[0].mxu0
    %v1072 = vadd.f32 0.0, %v1071
    %v1073 = vpop.f32.mrb[0].mxu0
    %v1074 = vadd.f32 0.0, %v1073
    %v1075 = vpop.f32.mrb[0].mxu0
    %v1076 = vpop.f32.mrb[0].mxu0
    %1077 = vdwg.mxu0
    %v1078 = vld [vmem:[%s520] sm:$0xf]
    %v1079 = vunpack.c.l.bf16 %v1078
    %v1080 = vadd.f32 %v1079, %v1072
    %v1081 = vld [vmem:[%s516 + $0x4] sm:$0xf]
    %v1082 = vunpack.c.l.bf16 %v1081
    %v1083 = vadd.f32 %v1082, %v1074
    %v1084 = vxor.u32 %v1080, 2147483648
    %v1085 = vmul.f32 %v1084, 1.442695
    %v1086 = vpow.pop %v1085
    %v1087 = vadd.f32 %v1086, 1.0
    %v1088 = vrcp.pop %v1087
    %v1089 = vmul.f32 1.0, %v1088
    %v1090 = vtanh.pop %v1080
    %v1091 = vmul.f32 %v1089, %v991
    %1093 = vrot.lane.b32.xlu0 %v1090, 64
    %v1094 = vpop.permute.xlu0 %1093
    %v1096 = vmul.f32 %v1089, %v1094
    %1098 = vrot.lane.b32.xlu0 %v1096, 32
    %v1099 = vpop.permute.xlu0 %1098
    %v1101 = vadd.f32 %v1091, %v1099
    %v1102 = vtanh.pop %v1101
    %1104 = vrot.lane.b32.xlu0 %v1102, 64
    %v1105 = vpop.permute.xlu0 %1104
    %v1107 = vmul.f32 %v1089, %v1105
    %v1108 = vxor.u32 %v1083, 2147483648
    %v1109 = vmul.f32 %v1108, 1.442695
    %v1110 = vpow.pop %v1109
    %v1111 = vadd.f32 %v1110, 1.0
    %v1112 = vrcp.pop %v1111
    %v1113 = vmul.f32 1.0, %v1112
    %v1114 = vtanh.pop %v1083
    %v1115 = vmul.f32 %v1113, %v1015
    %1117 = vrot.lane.b32.xlu0 %v1114, 64
    %v1118 = vpop.permute.xlu0 %1117
    %v1120 = vmul.f32 %v1113, %v1118
    %1122 = vrot.lane.b32.xlu0 %v1120, 32
    %v1123 = vpop.permute.xlu0 %1122
    %v1125 = vadd.f32 %v1115, %v1123
    %v1126 = vtanh.pop %v1125
    %1128 = vrot.lane.b32.xlu0 %v1126, 64
    %v1129 = vpop.permute.xlu0 %1128
    %v1131 = vmul.f32 %v1113, %v1129
    %1133 = vrot.lane.b32.xlu0 %v1107, 32
    %v1134 = vpop.permute.xlu0 %1133
    %1136 = vst.msk [vmem:[%s582] sm:$0xff] %vm151, %v1134
    %1138 = vrot.lane.b32.xlu0 %v1131, 64
    %v1139 = vpop.permute.xlu0 %1138
    %1141 = vst.msk [vmem:[%s576] sm:$0xff] %vm468, %v1139
    %v1142 = vsel %vm151, %v1134, %v1139
    %v1143 = vpack.c.bf16 %v1142, %v1142
    %v1145 = vsel %vm358, %v1143, 0
    %1147 = vmatprep.subr.bf16.mxu0 %v343
    %1148 = vmatpush1.bf16.msra.mxu0 %v342
    %1149 = vmatprep.subr.bf16.mxu0 %v345
    %1150 = vmatpush1.bf16.msra.mxu0 %v344
    %1151 = vmatprep.subr.bf16.mxu0 %v347
    %1152 = vmatpush1.bf16.msra.mxu0 %v346
    %1153 = vmatprep.subr.bf16.mxu0 %v349
    %1154 = vmatpush1.bf16.msra.mxu0 %v348
    %1155 = vmatprep.subr.bf16.mxu0 0
    %1156 = vmatpush1.bf16.msra.mxu0 0
    %1157 = vmatprep.subr.bf16.mxu0 0
    %1158 = vmatpush1.bf16.msra.mxu0 0
    %1159 = vmatprep.subr.bf16.mxu0 0
    %1160 = vmatpush1.bf16.msra.mxu0 0
    %1161 = vmatprep.subr.bf16.mxu0 0
    %1162 = vmatpush1.bf16.msra.mxu0 0
    %1163 = vmatprep.subr.bf16.mxu0 0
    %1164 = vmatpush1.bf16.msra.mxu0 0
    %1165 = vmatprep.subr.bf16.mxu0 0
    %1166 = vmatpush1.bf16.msra.mxu0 0
    %1167 = vmatprep.subr.bf16.mxu0 0
    %1168 = vmatpush1.bf16.msra.mxu0 0
    %1169 = vmatprep.subr.bf16.mxu0 0
    %1170 = vmatpush1.bf16.msra.mxu0 0
    %1171 = vmatprep.subr.bf16.mxu0 0
    %1172 = vmatpush1.bf16.msra.mxu0 0
    %1173 = vmatprep.subr.bf16.mxu0 0
    %1174 = vmatpush1.bf16.msra.mxu0 0
    %1175 = vmatprep.subr.bf16.mxu0 0
    %1176 = vmatpush1.bf16.msra.mxu0 0
    %1177 = vmatprep.subr.bf16.mxu0 0
    %1178 = vmatpush1.bf16.msra.mxu0 0
    %1179 = vmatprep.mubr.bf16.mxu0 0
    %1180 = vmatmul.mubr.bf16.gmra.mrb[0].mxu0 %v1145
    %v1181 = vpop.f32.mrb[0].mxu0
    %v1182 = vadd.f32 0.0, %v1181
    %v1183 = vpop.f32.mrb[0].mxu0
    %v1184 = vadd.f32 0.0, %v1183
    %v1185 = vpop.f32.mrb[0].mxu0
    %v1186 = vpop.f32.mrb[0].mxu0
    %1187 = vdwg.mxu0
    %v1188 = vld [vmem:[%s406] sm:$0xf]
    %v1189 = vunpack.c.l.bf16 %v1188
    %v1190 = vadd.f32 %v1189, %v1182
    %v1191 = vld [vmem:[#allocation3 + $0x4] sm:$0xf]
    %v1192 = vunpack.c.l.bf16 %v1191
    %v1193 = vadd.f32 %v1192, %v1184
    %v1194 = vxor.u32 %v1190, 2147483648
    %v1195 = vmul.f32 %v1194, 1.442695
    %v1196 = vpow.pop %v1195
    %v1197 = vadd.f32 %v1196, 1.0
    %v1198 = vrcp.pop %v1197
    %v1199 = vmul.f32 1.0, %v1198
    %v1200 = vtanh.pop %v1190
    %v1201 = vmul.f32 %v1199, %v1101
    %1203 = vrot.lane.b32.xlu0 %v1200, 64
    %v1204 = vpop.permute.xlu0 %1203
    %v1206 = vmul.f32 %v1199, %v1204
    %1208 = vrot.lane.b32.xlu0 %v1206, 32
    %v1209 = vpop.permute.xlu0 %1208
    %v1211 = vadd.f32 %v1201, %v1209
    %v1212 = vtanh.pop %v1211
    %1214 = vrot.lane.b32.xlu0 %v1212, 64
    %v1215 = vpop.permute.xlu0 %1214
    %v1217 = vmul.f32 %v1199, %v1215
    %v1218 = vxor.u32 %v1193, 2147483648
    %v1219 = vmul.f32 %v1218, 1.442695
    %v1220 = vpow.pop %v1219
    %v1221 = vadd.f32 %v1220, 1.0
    %v1222 = vrcp.pop %v1221
    %v1223 = vmul.f32 1.0, %v1222
    %v1224 = vtanh.pop %v1193
    %v1225 = vmul.f32 %v1223, %v1125
    %1227 = vrot.lane.b32.xlu0 %v1224, 64
    %v1228 = vpop.permute.xlu0 %1227
    %v1230 = vmul.f32 %v1223, %v1228
    %1232 = vrot.lane.b32.xlu0 %v1230, 32
    %v1233 = vpop.permute.xlu0 %1232
    %v1235 = vadd.f32 %v1225, %v1233
    %v1236 = vtanh.pop %v1235
    %1238 = vrot.lane.b32.xlu0 %v1236, 64
    %v1239 = vpop.permute.xlu0 %1238
    %v1241 = vmul.f32 %v1223, %v1239
    %1243 = vrot.lane.b32.xlu0 %v1217, 32
    %v1244 = vpop.permute.xlu0 %1243
    %1246 = vst.msk [vmem:[%s467] sm:$0xff] %vm151, %v1244
    %1248 = vrot.lane.b32.xlu0 %v1241, 64
    %v1249 = vpop.permute.xlu0 %1248
    %1251 = vst.msk [vmem:[#allocation2] sm:$0xff] %vm468, %v1249
    %v1252 = vld [vmem:[#allocation2] sm:$0xff]
    %v1253 = vld [vmem:[#allocation2 + $0x8] sm:$0xff]
    %v1254 = vld [vmem:[#allocation2 + $0x10] sm:$0xff]
    %v1255 = vld [vmem:[#allocation2 + $0x18] sm:$0xff]
    %v1256 = vld [vmem:[#allocation2 + $0x20] sm:$0xff]
    %v1257 = vld [vmem:[#allocation2 + $0x28] sm:$0xff]
    %v1258 = vld [vmem:[#allocation2 + $0x30] sm:$0xff]
    %v1259 = vld [vmem:[#allocation2 + $0x38] sm:$0xff]
    %v1260 = vpack.c.bf16 %v1253, %v1252
    %v1261 = vpack.c.bf16 %v1255, %v1254
    %v1262 = vpack.c.bf16 %v1257, %v1256
    %v1263 = vpack.c.bf16 %v1259, %v1258
    %v1264 = vld [vmem:[#allocation10] sm:$0xff]
    %v1265 = vld [vmem:[#allocation10 + $0x8] sm:$0xff]
    %v1266 = vld [vmem:[#allocation10 + $0x10] sm:$0xff]
    %v1267 = vld [vmem:[#allocation10 + $0x18] sm:$0xff]
    %v1268 = vld [vmem:[#allocation10 + $0x20] sm:$0xff]
    %v1269 = vld [vmem:[#allocation10 + $0x28] sm:$0xff]
    %v1270 = vld [vmem:[#allocation10 + $0x30] sm:$0xff]
    %v1271 = vld [vmem:[#allocation10 + $0x38] sm:$0xff]
    %v1272 = vld [vmem:[%s6] sm:$0x3]
    %v1274 = vlaneseq
    %v1275 = vshrl.u32 %v1274, 7
    %v1276 = vsub.s32 0, %v1275
    %v1277 = vrot.slane %v1272, %v1276
    %v1278 = vlaneseq
    %v1279 = vshrl.u32 %v1278, 7
    %v1280 = vsub.s32 1, %v1279
    %v1281 = vrot.slane %v1272, %v1280
    %v1292 = vunpack.c.l.b16 %v1264
    %v1293 = vunpack.c.h.b16 %v1264
    %v1294 = vunpack.c.l.b16 %v1265
    %v1295 = vunpack.c.h.b16 %v1265
    %v1296 = vunpack.c.l.b16 %v1266
    %v1297 = vunpack.c.h.b16 %v1266
    %v1298 = vunpack.c.l.b16 %v1267
    %v1299 = vunpack.c.h.b16 %v1267
    %v1300 = vunpack.c.l.b16 %v1268
    %v1301 = vunpack.c.h.b16 %v1268
    %v1302 = vunpack.c.l.b16 %v1269
    %v1303 = vunpack.c.h.b16 %v1269
    %v1304 = vunpack.c.l.b16 %v1270
    %v1305 = vunpack.c.h.b16 %v1270
    %v1306 = vunpack.c.l.b16 %v1271
    %v1307 = vunpack.c.h.b16 %v1271
    %v1308 = vpack.c.b16 %v1294, %v1292
    %v1309 = vpack.c.b16 %v1295, %v1293
    %v1310 = vpack.c.b16 %v1298, %v1296
    %v1311 = vpack.c.b16 %v1299, %v1297
    %v1312 = vpack.c.b16 %v1302, %v1300
    %v1313 = vpack.c.b16 %v1303, %v1301
    %v1314 = vpack.c.b16 %v1306, %v1304
    %v1315 = vpack.c.b16 %v1307, %v1305
    %v1325 = vsel %vm358, %v1260, 0
    %v1328 = vsel %vm358, %v1261, 0
    %v1331 = vsel %vm358, %v1262, 0
    %v1334 = vsel %vm358, %v1263, 0
    %1336 = vmatprep.subr.bf16.mxu0 %v1309
    %1337 = vmatpush1.bf16.msra.mxu0 %v1308
    %1338 = vmatprep.subr.bf16.mxu0 %v1311
    %1339 = vmatpush1.bf16.msra.mxu0 %v1310
    %1340 = vmatprep.subr.bf16.mxu0 %v1313
    %1341 = vmatpush1.bf16.msra.mxu0 %v1312
    %1342 = vmatprep.subr.bf16.mxu0 %v1315
    %1343 = vmatpush1.bf16.msra.mxu0 %v1314
    %1344 = vmatprep.subr.bf16.mxu0 0
    %1345 = vmatpush1.bf16.msra.mxu0 0
    %1346 = vmatprep.subr.bf16.mxu0 0
    %1347 = vmatpush1.bf16.msra.mxu0 0
    %1348 = vmatprep.subr.bf16.mxu0 0
    %1349 = vmatpush1.bf16.msra.mxu0 0
    %1350 = vmatprep.subr.bf16.mxu0 0
    %1351 = vmatpush1.bf16.msra.mxu0 0
    %1352 = vmatprep.subr.bf16.mxu0 0
    %1353 = vmatpush1.bf16.msra.mxu0 0
    %1354 = vmatprep.subr.bf16.mxu0 0
    %1355 = vmatpush1.bf16.msra.mxu0 0
    %1356 = vmatprep.subr.bf16.mxu0 0
    %1357 = vmatpush1.bf16.msra.mxu0 0
    %1358 = vmatprep.subr.bf16.mxu0 0
    %1359 = vmatpush1.bf16.msra.mxu0 0
    %1360 = vmatprep.subr.bf16.mxu0 0
    %1361 = vmatpush1.bf16.msra.mxu0 0
    %1362 = vmatprep.subr.bf16.mxu0 0
    %1363 = vmatpush1.bf16.msra.mxu0 0
    %1364 = vmatprep.subr.bf16.mxu0 0
    %1365 = vmatpush1.bf16.msra.mxu0 0
    %1366 = vmatprep.subr.bf16.mxu0 0
    %1367 = vmatpush1.bf16.msra.mxu0 0
    %1368 = vmatprep.mubr.bf16.mxu0 0
    %1369 = vmatmul.mubr.bf16.gmra.mrb[0].mxu0 %v1325
    %v1370 = vpop.f32.mrb[0].mxu0
    %v1371 = vadd.f32 %v1277, %v1370
    %v1372 = vpop.f32.mrb[0].mxu0
    %v1373 = vadd.f32 %v1281, %v1372
    %v1374 = vpop.f32.mrb[0].mxu0
    %v1375 = vadd.f32 %v1277, %v1374
    %v1376 = vpop.f32.mrb[0].mxu0
    %v1377 = vadd.f32 %v1281, %v1376
    %1378 = vmatprep.mubr.bf16.mxu0 0
    %1379 = vmatmul.mubr.bf16.gmra.mrb[0].mxu0 %v1328
    %v1380 = vpop.f32.mrb[0].mxu0
    %v1381 = vadd.f32 %v1277, %v1380
    %v1382 = vpop.f32.mrb[0].mxu0
    %v1383 = vadd.f32 %v1281, %v1382
    %v1384 = vpop.f32.mrb[0].mxu0
    %v1385 = vadd.f32 %v1277, %v1384
    %v1386 = vpop.f32.mrb[0].mxu0
    %v1387 = vadd.f32 %v1281, %v1386
    %1388 = vmatprep.mubr.bf16.mxu0 0
    %1389 = vmatmul.mubr.bf16.gmra.mrb[0].mxu0 %v1331
    %v1390 = vpop.f32.mrb[0].mxu0
    %v1391 = vadd.f32 %v1277, %v1390
    %v1392 = vpop.f32.mrb[0].mxu0
    %v1393 = vadd.f32 %v1281, %v1392
    %v1394 = vpop.f32.mrb[0].mxu0
    %v1395 = vadd.f32 %v1277, %v1394
    %v1396 = vpop.f32.mrb[0].mxu0
    %v1397 = vadd.f32 %v1281, %v1396
    %1398 = vmatprep.mubr.bf16.mxu0 0
    %1399 = vmatmul.mubr.bf16.gmra.mrb[0].mxu0 %v1334
    %v1400 = vpop.f32.mrb[0].mxu0
    %v1401 = vadd.f32 %v1277, %v1400
    %v1402 = vpop.f32.mrb[0].mxu0
    %v1403 = vadd.f32 %v1281, %v1402
    %v1404 = vpop.f32.mrb[0].mxu0
    %v1405 = vadd.f32 %v1277, %v1404
    %v1406 = vpop.f32.mrb[0].mxu0
    %v1407 = vadd.f32 %v1281, %v1406
    %1408 = vdwg.mxu0
    %v1409 = vpack.c.bf16 %v1371, %v1371
    %v1410 = vpack.c.bf16 %v1373, %v1373
    %v1411 = vpack.c.bf16 %v1375, %v1375
    %v1412 = vpack.c.bf16 %v1377, %v1377
    %v1413 = vpack.c.bf16 %v1381, %v1381
    %v1414 = vpack.c.bf16 %v1383, %v1383
    %v1415 = vpack.c.bf16 %v1385, %v1385
    %v1416 = vpack.c.bf16 %v1387, %v1387
    %v1417 = vpack.c.bf16 %v1391, %v1391
    %v1418 = vpack.c.bf16 %v1393, %v1393
    %v1419 = vpack.c.bf16 %v1395, %v1395
    %v1420 = vpack.c.bf16 %v1397, %v1397
    %v1421 = vpack.c.bf16 %v1401, %v1401
    %v1422 = vpack.c.bf16 %v1403, %v1403
    %v1423 = vpack.c.bf16 %v1405, %v1405
    %v1424 = vpack.c.bf16 %v1407, %v1407
    %v1441 = vunpack.c.l.b16 %v1409
    %v1442 = vunpack.c.l.b16 %v1410
    %v1443 = vunpack.c.l.b16 %v1411
    %v1444 = vunpack.c.l.b16 %v1412
    %v1445 = vunpack.c.l.b16 %v1413
    %v1446 = vunpack.c.l.b16 %v1414
    %v1447 = vunpack.c.l.b16 %v1415
    %v1448 = vunpack.c.l.b16 %v1416
    %v1449 = vunpack.c.l.b16 %v1417
    %v1450 = vunpack.c.l.b16 %v1418
    %v1451 = vunpack.c.l.b16 %v1419
    %v1452 = vunpack.c.l.b16 %v1420
    %v1453 = vunpack.c.l.b16 %v1421
    %v1454 = vunpack.c.l.b16 %v1422
    %v1455 = vunpack.c.l.b16 %v1423
    %v1456 = vunpack.c.l.b16 %v1424
    %v1457 = vpack.c.b16 %v1442, %v1441
    %v1458 = vpack.c.b16 %v1444, %v1443
    %v1459 = vpack.c.b16 %v1446, %v1445
    %v1460 = vpack.c.b16 %v1448, %v1447
    %v1461 = vpack.c.b16 %v1450, %v1449
    %v1462 = vpack.c.b16 %v1452, %v1451
    %v1463 = vpack.c.b16 %v1454, %v1453
    %v1464 = vpack.c.b16 %v1456, %v1455
    %1473 = vst [vmem:[#allocation3] sm:$0xff] %v1457
    %1474 = vst [vmem:[#allocation3 + $0x8] sm:$0xff] %v1458
    %1475 = vst [vmem:[#allocation3 + $0x10] sm:$0xff] %v1459
    %1476 = vst [vmem:[#allocation3 + $0x18] sm:$0xff] %v1460
    %1477 = vst [vmem:[#allocation3 + $0x20] sm:$0xff] %v1461
    %1478 = vst [vmem:[#allocation3 + $0x28] sm:$0xff] %v1462
    %1479 = vst [vmem:[#allocation3 + $0x30] sm:$0xff] %v1463
    %1480 = vst [vmem:[#allocation3 + $0x38] sm:$0xff] %v1464
    %v1481 = vld [vmem:[#allocation12] sm:$0xff]
    %v1482 = vld [vmem:[#allocation12 + $0x8] sm:$0xff]
    %v1483 = vld [vmem:[#allocation12 + $0x10] sm:$0xff]
    %v1484 = vld [vmem:[#allocation12 + $0x18] sm:$0xff]
    %v1485 = vld [vmem:[#allocation12 + $0x20] sm:$0xff]
    %v1486 = vld [vmem:[#allocation12 + $0x28] sm:$0xff]
    %v1487 = vld [vmem:[#allocation12 + $0x30] sm:$0xff]
    %v1488 = vld [vmem:[#allocation12 + $0x38] sm:$0xff]
    %v1497 = vunpack.c.l.b16 %v1481
    %v1498 = vunpack.c.h.b16 %v1481
    %v1499 = vunpack.c.l.b16 %v1482
    %v1500 = vunpack.c.h.b16 %v1482
    %v1501 = vunpack.c.l.b16 %v1483
    %v1502 = vunpack.c.h.b16 %v1483
    %v1503 = vunpack.c.l.b16 %v1484
    %v1504 = vunpack.c.h.b16 %v1484
    %v1505 = vunpack.c.l.b16 %v1485
    %v1506 = vunpack.c.h.b16 %v1485
    %v1507 = vunpack.c.l.b16 %v1486
    %v1508 = vunpack.c.h.b16 %v1486
    %v1509 = vunpack.c.l.b16 %v1487
    %v1510 = vunpack.c.h.b16 %v1487
    %v1511 = vunpack.c.l.b16 %v1488
    %v1512 = vunpack.c.h.b16 %v1488
    %v1513 = vpack.c.b16 %v1499, %v1497
    %v1514 = vpack.c.b16 %v1500, %v1498
    %v1515 = vpack.c.b16 %v1503, %v1501
    %v1516 = vpack.c.b16 %v1504, %v1502
    %v1517 = vpack.c.b16 %v1507, %v1505
    %v1518 = vpack.c.b16 %v1508, %v1506
    %v1519 = vpack.c.b16 %v1511, %v1509
    %v1520 = vpack.c.b16 %v1512, %v1510
    %1529 = vmatprep.subr.bf16.mxu0 %v1514
    %1530 = vmatpush1.bf16.msra.mxu0 %v1513
    %1531 = vmatprep.subr.bf16.mxu0 %v1516
    %1532 = vmatpush1.bf16.msra.mxu0 %v1515
    %1533 = vmatprep.subr.bf16.mxu0 %v1518
    %1534 = vmatpush1.bf16.msra.mxu0 %v1517
    %1535 = vmatprep.subr.bf16.mxu0 %v1520
    %1536 = vmatpush1.bf16.msra.mxu0 %v1519
    %1537 = vmatprep.subr.bf16.mxu0 0
    %1538 = vmatpush1.bf16.msra.mxu0 0
    %1539 = vmatprep.subr.bf16.mxu0 0
    %1540 = vmatpush1.bf16.msra.mxu0 0
    %1541 = vmatprep.subr.bf16.mxu0 0
    %1542 = vmatpush1.bf16.msra.mxu0 0
    %1543 = vmatprep.subr.bf16.mxu0 0
    %1544 = vmatpush1.bf16.msra.mxu0 0
    %1545 = vmatprep.subr.bf16.mxu0 0
    %1546 = vmatpush1.bf16.msra.mxu0 0
    %1547 = vmatprep.subr.bf16.mxu0 0
    %1548 = vmatpush1.bf16.msra.mxu0 0
    %1549 = vmatprep.subr.bf16.mxu0 0
    %1550 = vmatpush1.bf16.msra.mxu0 0
    %1551 = vmatprep.subr.bf16.mxu0 0
    %1552 = vmatpush1.bf16.msra.mxu0 0
    %1553 = vmatprep.subr.bf16.mxu0 0
    %1554 = vmatpush1.bf16.msra.mxu0 0
    %1555 = vmatprep.subr.bf16.mxu0 0
    %1556 = vmatpush1.bf16.msra.mxu0 0
    %1557 = vmatprep.subr.bf16.mxu0 0
    %1558 = vmatpush1.bf16.msra.mxu0 0
    %1559 = vmatprep.subr.bf16.mxu0 0
    %1560 = vmatpush1.bf16.msra.mxu0 0
    %1561 = vmatprep.mubr.bf16.mxu0 0
    %1562 = vmatmul.mubr.bf16.gmra.mrb[0].mxu0 %v360
    %v1563 = vpop.f32.mrb[0].mxu0
    %v1564 = vadd.f32 0.0, %v1563
    %v1565 = vpop.f32.mrb[0].mxu0
    %v1566 = vadd.f32 0.0, %v1565
    %v1567 = vpop.f32.mrb[0].mxu0
    %v1568 = vpop.f32.mrb[0].mxu0
    %1569 = vdwg.mxu0
    %v1570 = vld [vmem:[#allocation3] sm:$0xf]
    %v1571 = vunpack.c.l.bf16 %v1570
    %v1572 = vadd.f32 %v1571, %v1564
    %v1573 = vld [vmem:[%s406 + $0x4] sm:$0xf]
    %v1574 = vunpack.c.l.bf16 %v1573
    %v1575 = vadd.f32 %v1574, %v1566
    %v1576 = vxor.u32 %v1572, 2147483648
    %v1577 = vmul.f32 %v1576, 1.442695
    %v1578 = vpow.pop %v1577
    %v1579 = vadd.f32 %v1578, 1.0
    %v1580 = vrcp.pop %v1579
    %v1581 = vmul.f32 1.0, %v1580
    %v1582 = vtanh.pop %v1572
    %v1583 = vmul.f32 %v1581, 0.0
    %1585 = vrot.lane.b32.xlu0 %v1582, 64
    %v1586 = vpop.permute.xlu0 %1585
    %v1588 = vmul.f32 %v1581, %v1586
    %1590 = vrot.lane.b32.xlu0 %v1588, 32
    %v1591 = vpop.permute.xlu0 %1590
    %v1593 = vadd.f32 %v1583, %v1591
    %v1594 = vtanh.pop %v1593
    %1596 = vrot.lane.b32.xlu0 %v1594, 64
    %v1597 = vpop.permute.xlu0 %1596
    %v1599 = vmul.f32 %v1581, %v1597
    %v1600 = vxor.u32 %v1575, 2147483648
    %v1601 = vmul.f32 %v1600, 1.442695
    %v1602 = vpow.pop %v1601
    %v1603 = vadd.f32 %v1602, 1.0
    %v1604 = vrcp.pop %v1603
    %v1605 = vmul.f32 1.0, %v1604
    %v1606 = vtanh.pop %v1575
    %v1607 = vmul.f32 %v1605, 0.0
    %1609 = vrot.lane.b32.xlu0 %v1606, 64
    %v1610 = vpop.permute.xlu0 %1609
    %v1612 = vmul.f32 %v1605, %v1610
    %1614 = vrot.lane.b32.xlu0 %v1612, 32
    %v1615 = vpop.permute.xlu0 %1614
    %v1617 = vadd.f32 %v1607, %v1615
    %v1618 = vtanh.pop %v1617
    %1620 = vrot.lane.b32.xlu0 %v1618, 64
    %v1621 = vpop.permute.xlu0 %1620
    %v1623 = vmul.f32 %v1605, %v1621
    %1625 = vrot.lane.b32.xlu0 %v1599, 32
    %v1626 = vpop.permute.xlu0 %1625
    %1629 = vrot.lane.b32.xlu0 %v1623, 64
    %v1630 = vpop.permute.xlu0 %1629
    %v1632 = vsel %vm151, %v1626, %v1630
    %v1633 = vpack.c.bf16 %v1632, %v1632
    %v1635 = vsel %vm358, %v1633, 0
    %1637 = vmatprep.subr.bf16.mxu0 %v1514
    %1638 = vmatpush1.bf16.msra.mxu0 %v1513
    %1639 = vmatprep.subr.bf16.mxu0 %v1516
    %1640 = vmatpush1.bf16.msra.mxu0 %v1515
    %1641 = vmatprep.subr.bf16.mxu0 %v1518
    %1642 = vmatpush1.bf16.msra.mxu0 %v1517
    %1643 = vmatprep.subr.bf16.mxu0 %v1520
    %1644 = vmatpush1.bf16.msra.mxu0 %v1519
    %1645 = vmatprep.subr.bf16.mxu0 0
    %1646 = vmatpush1.bf16.msra.mxu0 0
    %1647 = vmatprep.subr.bf16.mxu0 0
    %1648 = vmatpush1.bf16.msra.mxu0 0
    %1649 = vmatprep.subr.bf16.mxu0 0
    %1650 = vmatpush1.bf16.msra.mxu0 0
    %1651 = vmatprep.subr.bf16.mxu0 0
    %1652 = vmatpush1.bf16.msra.mxu0 0
    %1653 = vmatprep.subr.bf16.mxu0 0
    %1654 = vmatpush1.bf16.msra.mxu0 0
    %1655 = vmatprep.subr.bf16.mxu0 0
    %1656 = vmatpush1.bf16.msra.mxu0 0
    %1657 = vmatprep.subr.bf16.mxu0 0
    %1658 = vmatpush1.bf16.msra.mxu0 0
    %1659 = vmatprep.subr.bf16.mxu0 0
    %1660 = vmatpush1.bf16.msra.mxu0 0
    %1661 = vmatprep.subr.bf16.mxu0 0
    %1662 = vmatpush1.bf16.msra.mxu0 0
    %1663 = vmatprep.subr.bf16.mxu0 0
    %1664 = vmatpush1.bf16.msra.mxu0 0
    %1665 = vmatprep.subr.bf16.mxu0 0
    %1666 = vmatpush1.bf16.msra.mxu0 0
    %1667 = vmatprep.subr.bf16.mxu0 0
    %1668 = vmatpush1.bf16.msra.mxu0 0
    %1669 = vmatprep.mubr.bf16.mxu0 0
    %1670 = vmatmul.mubr.bf16.gmra.mrb[0].mxu0 %v1635
    %v1671 = vpop.f32.mrb[0].mxu0
    %v1672 = vadd.f32 0.0, %v1671
    %v1673 = vpop.f32.mrb[0].mxu0
    %v1674 = vadd.f32 0.0, %v1673
    %v1675 = vpop.f32.mrb[0].mxu0
    %v1676 = vpop.f32.mrb[0].mxu0
    %1677 = vdwg.mxu0
    %v1678 = vld [vmem:[%s516] sm:$0xf]
    %v1679 = vunpack.c.l.bf16 %v1678
    %v1680 = vadd.f32 %v1679, %v1672
    %v1681 = vld [vmem:[%s520 + $0x4] sm:$0xf]
    %v1682 = vunpack.c.l.bf16 %v1681
    %v1683 = vadd.f32 %v1682, %v1674
    %v1684 = vxor.u32 %v1680, 2147483648
    %v1685 = vmul.f32 %v1684, 1.442695
    %v1686 = vpow.pop %v1685
    %v1687 = vadd.f32 %v1686, 1.0
    %v1688 = vrcp.pop %v1687
    %v1689 = vmul.f32 1.0, %v1688
    %v1690 = vtanh.pop %v1680
    %v1691 = vmul.f32 %v1689, %v1593
    %1693 = vrot.lane.b32.xlu0 %v1690, 64
    %v1694 = vpop.permute.xlu0 %1693
    %v1696 = vmul.f32 %v1689, %v1694
    %1698 = vrot.lane.b32.xlu0 %v1696, 32
    %v1699 = vpop.permute.xlu0 %1698
    %v1701 = vadd.f32 %v1691, %v1699
    %v1702 = vtanh.pop %v1701
    %1704 = vrot.lane.b32.xlu0 %v1702, 64
    %v1705 = vpop.permute.xlu0 %1704
    %v1707 = vmul.f32 %v1689, %v1705
    %v1708 = vxor.u32 %v1683, 2147483648
    %v1709 = vmul.f32 %v1708, 1.442695
    %v1710 = vpow.pop %v1709
    %v1711 = vadd.f32 %v1710, 1.0
    %v1712 = vrcp.pop %v1711
    %v1713 = vmul.f32 1.0, %v1712
    %v1714 = vtanh.pop %v1683
    %v1715 = vmul.f32 %v1713, %v1617
    %1717 = vrot.lane.b32.xlu0 %v1714, 64
    %v1718 = vpop.permute.xlu0 %1717
    %v1720 = vmul.f32 %v1713, %v1718
    %1722 = vrot.lane.b32.xlu0 %v1720, 32
    %v1723 = vpop.permute.xlu0 %1722
    %v1725 = vadd.f32 %v1715, %v1723
    %v1726 = vtanh.pop %v1725
    %1728 = vrot.lane.b32.xlu0 %v1726, 64
    %v1729 = vpop.permute.xlu0 %1728
    %v1731 = vmul.f32 %v1713, %v1729
    %1733 = vrot.lane.b32.xlu0 %v1707, 32
    %v1734 = vpop.permute.xlu0 %1733
    %1737 = vrot.lane.b32.xlu0 %v1731, 64
    %v1738 = vpop.permute.xlu0 %1737
    %v1740 = vsel %vm151, %v1734, %v1738
    %v1741 = vpack.c.bf16 %v1740, %v1740
    %v1743 = vsel %vm358, %v1741, 0
    %1745 = vmatprep.subr.bf16.mxu0 %v1514
    %1746 = vmatpush1.bf16.msra.mxu0 %v1513
    %1747 = vmatprep.subr.bf16.mxu0 %v1516
    %1748 = vmatpush1.bf16.msra.mxu0 %v1515
    %1749 = vmatprep.subr.bf16.mxu0 %v1518
    %1750 = vmatpush1.bf16.msra.mxu0 %v1517
    %1751 = vmatprep.subr.bf16.mxu0 %v1520
    %1752 = vmatpush1.bf16.msra.mxu0 %v1519
    %1753 = vmatprep.subr.bf16.mxu0 0
    %1754 = vmatpush1.bf16.msra.mxu0 0
    %1755 = vmatprep.subr.bf16.mxu0 0
    %1756 = vmatpush1.bf16.msra.mxu0 0
    %1757 = vmatprep.subr.bf16.mxu0 0
    %1758 = vmatpush1.bf16.msra.mxu0 0
    %1759 = vmatprep.subr.bf16.mxu0 0
    %1760 = vmatpush1.bf16.msra.mxu0 0
    %1761 = vmatprep.subr.bf16.mxu0 0
    %1762 = vmatpush1.bf16.msra.mxu0 0
    %1763 = vmatprep.subr.bf16.mxu0 0
    %1764 = vmatpush1.bf16.msra.mxu0 0
    %1765 = vmatprep.subr.bf16.mxu0 0
    %1766 = vmatpush1.bf16.msra.mxu0 0
    %1767 = vmatprep.subr.bf16.mxu0 0
    %1768 = vmatpush1.bf16.msra.mxu0 0
    %1769 = vmatprep.subr.bf16.mxu0 0
    %1770 = vmatpush1.bf16.msra.mxu0 0
    %1771 = vmatprep.subr.bf16.mxu0 0
    %1772 = vmatpush1.bf16.msra.mxu0 0
    %1773 = vmatprep.subr.bf16.mxu0 0
    %1774 = vmatpush1.bf16.msra.mxu0 0
    %1775 = vmatprep.subr.bf16.mxu0 0
    %1776 = vmatpush1.bf16.msra.mxu0 0
    %1777 = vmatprep.mubr.bf16.mxu0 0
    %1778 = vmatmul.mubr.bf16.gmra.mrb[0].mxu0 %v1743
    %v1779 = vpop.f32.mrb[0].mxu0
    %v1780 = vadd.f32 0.0, %v1779
    %v1781 = vpop.f32.mrb[0].mxu0
    %v1782 = vadd.f32 0.0, %v1781
    %v1783 = vpop.f32.mrb[0].mxu0
    %v1784 = vpop.f32.mrb[0].mxu0
    %1785 = vdwg.mxu0
    %v1786 = vld [vmem:[%s630] sm:$0xf]
    %v1787 = vunpack.c.l.bf16 %v1786
    %v1788 = vadd.f32 %v1787, %v1780
    %v1789 = vld [vmem:[%s634 + $0x4] sm:$0xf]
    %v1790 = vunpack.c.l.bf16 %v1789
    %v1791 = vadd.f32 %v1790, %v1782
    %v1792 = vxor.u32 %v1788, 2147483648
    %v1793 = vmul.f32 %v1792, 1.442695
    %v1794 = vpow.pop %v1793
    %v1795 = vadd.f32 %v1794, 1.0
    %v1796 = vrcp.pop %v1795
    %v1797 = vmul.f32 1.0, %v1796
    %v1798 = vtanh.pop %v1788
    %v1799 = vmul.f32 %v1797, %v1701
    %1801 = vrot.lane.b32.xlu0 %v1798, 64
    %v1802 = vpop.permute.xlu0 %1801
    %v1804 = vmul.f32 %v1797, %v1802
    %1806 = vrot.lane.b32.xlu0 %v1804, 32
    %v1807 = vpop.permute.xlu0 %1806
    %v1809 = vadd.f32 %v1799, %v1807
    %v1810 = vtanh.pop %v1809
    %1812 = vrot.lane.b32.xlu0 %v1810, 64
    %v1813 = vpop.permute.xlu0 %1812
    %v1815 = vmul.f32 %v1797, %v1813
    %v1816 = vxor.u32 %v1791, 2147483648
    %v1817 = vmul.f32 %v1816, 1.442695
    %v1818 = vpow.pop %v1817
    %v1819 = vadd.f32 %v1818, 1.0
    %v1820 = vrcp.pop %v1819
    %v1821 = vmul.f32 1.0, %v1820
    %v1822 = vtanh.pop %v1791
    %v1823 = vmul.f32 %v1821, %v1725
    %1825 = vrot.lane.b32.xlu0 %v1822, 64
    %v1826 = vpop.permute.xlu0 %1825
    %v1828 = vmul.f32 %v1821, %v1826
    %1830 = vrot.lane.b32.xlu0 %v1828, 32
    %v1831 = vpop.permute.xlu0 %1830
    %v1833 = vadd.f32 %v1823, %v1831
    %v1834 = vtanh.pop %v1833
    %1836 = vrot.lane.b32.xlu0 %v1834, 64
    %v1837 = vpop.permute.xlu0 %1836
    %v1839 = vmul.f32 %v1821, %v1837
    %1841 = vrot.lane.b32.xlu0 %v1815, 32
    %v1842 = vpop.permute.xlu0 %1841
    %1845 = vrot.lane.b32.xlu0 %v1839, 64
    %v1846 = vpop.permute.xlu0 %1845
    %v1848 = vsel %vm151, %v1842, %v1846
    %v1849 = vpack.c.bf16 %v1848, %v1848
    %v1851 = vsel %vm358, %v1849, 0
    %1853 = vmatprep.subr.bf16.mxu0 %v1514
    %1854 = vmatpush1.bf16.msra.mxu0 %v1513
    %1855 = vmatprep.subr.bf16.mxu0 %v1516
    %1856 = vmatpush1.bf16.msra.mxu0 %v1515
    %1857 = vmatprep.subr.bf16.mxu0 %v1518
    %1858 = vmatpush1.bf16.msra.mxu0 %v1517
    %1859 = vmatprep.subr.bf16.mxu0 %v1520
    %1860 = vmatpush1.bf16.msra.mxu0 %v1519
    %1861 = vmatprep.subr.bf16.mxu0 0
    %1862 = vmatpush1.bf16.msra.mxu0 0
    %1863 = vmatprep.subr.bf16.mxu0 0
    %1864 = vmatpush1.bf16.msra.mxu0 0
    %1865 = vmatprep.subr.bf16.mxu0 0
    %1866 = vmatpush1.bf16.msra.mxu0 0
    %1867 = vmatprep.subr.bf16.mxu0 0
    %1868 = vmatpush1.bf16.msra.mxu0 0
    %1869 = vmatprep.subr.bf16.mxu0 0
    %1870 = vmatpush1.bf16.msra.mxu0 0
    %1871 = vmatprep.subr.bf16.mxu0 0
    %1872 = vmatpush1.bf16.msra.mxu0 0
    %1873 = vmatprep.subr.bf16.mxu0 0
    %1874 = vmatpush1.bf16.msra.mxu0 0
    %1875 = vmatprep.subr.bf16.mxu0 0
    %1876 = vmatpush1.bf16.msra.mxu0 0
    %1877 = vmatprep.subr.bf16.mxu0 0
    %1878 = vmatpush1.bf16.msra.mxu0 0
    %1879 = vmatprep.subr.bf16.mxu0 0
    %1880 = vmatpush1.bf16.msra.mxu0 0
    %1881 = vmatprep.subr.bf16.mxu0 0
    %1882 = vmatpush1.bf16.msra.mxu0 0
    %1883 = vmatprep.subr.bf16.mxu0 0
    %1884 = vmatpush1.bf16.msra.mxu0 0
    %1885 = vmatprep.mubr.bf16.mxu0 0
    %1886 = vmatmul.mubr.bf16.gmra.mrb[0].mxu0 %v1851
    %v1887 = vpop.f32.mrb[0].mxu0
    %v1888 = vadd.f32 0.0, %v1887
    %v1889 = vpop.f32.mrb[0].mxu0
    %v1890 = vadd.f32 0.0, %v1889
    %v1891 = vpop.f32.mrb[0].mxu0
    %v1892 = vpop.f32.mrb[0].mxu0
    %1893 = vdwg.mxu0
    %v1894 = vld [vmem:[%s744] sm:$0xf]
    %v1895 = vunpack.c.l.bf16 %v1894
    %v1896 = vadd.f32 %v1895, %v1888
    %v1897 = vld [vmem:[%s748 + $0x4] sm:$0xf]
    %v1898 = vunpack.c.l.bf16 %v1897
    %v1899 = vadd.f32 %v1898, %v1890
    %v1900 = vxor.u32 %v1896, 2147483648
    %v1901 = vmul.f32 %v1900, 1.442695
    %v1902 = vpow.pop %v1901
    %v1903 = vadd.f32 %v1902, 1.0
    %v1904 = vrcp.pop %v1903
    %v1905 = vmul.f32 1.0, %v1904
    %v1906 = vtanh.pop %v1896
    %v1907 = vmul.f32 %v1905, %v1809
    %1909 = vrot.lane.b32.xlu0 %v1906, 64
    %v1910 = vpop.permute.xlu0 %1909
    %v1912 = vmul.f32 %v1905, %v1910
    %1914 = vrot.lane.b32.xlu0 %v1912, 32
    %v1915 = vpop.permute.xlu0 %1914
    %v1917 = vadd.f32 %v1907, %v1915
    %v1918 = vtanh.pop %v1917
    %1920 = vrot.lane.b32.xlu0 %v1918, 64
    %v1921 = vpop.permute.xlu0 %1920
    %v1923 = vmul.f32 %v1905, %v1921
    %v1924 = vxor.u32 %v1899, 2147483648
    %v1925 = vmul.f32 %v1924, 1.442695
    %v1926 = vpow.pop %v1925
    %v1927 = vadd.f32 %v1926, 1.0
    %v1928 = vrcp.pop %v1927
    %v1929 = vmul.f32 1.0, %v1928
    %v1930 = vtanh.pop %v1899
    %v1931 = vmul.f32 %v1929, %v1833
    %1933 = vrot.lane.b32.xlu0 %v1930, 64
    %v1934 = vpop.permute.xlu0 %1933
    %v1936 = vmul.f32 %v1929, %v1934
    %1938 = vrot.lane.b32.xlu0 %v1936, 32
    %v1939 = vpop.permute.xlu0 %1938
    %v1941 = vadd.f32 %v1931, %v1939
    %v1942 = vtanh.pop %v1941
    %1944 = vrot.lane.b32.xlu0 %v1942, 64
    %v1945 = vpop.permute.xlu0 %1944
    %v1947 = vmul.f32 %v1929, %v1945
    %1949 = vrot.lane.b32.xlu0 %v1923, 32
    %v1950 = vpop.permute.xlu0 %1949
    %1953 = vrot.lane.b32.xlu0 %v1947, 64
    %v1954 = vpop.permute.xlu0 %1953
    %v1956 = vsel %vm151, %v1950, %v1954
    %v1957 = vpack.c.bf16 %v1956, %v1956
    %v1959 = vsel %vm358, %v1957, 0
    %1961 = vmatprep.subr.bf16.mxu0 %v1514
    %1962 = vmatpush1.bf16.msra.mxu0 %v1513
    %1963 = vmatprep.subr.bf16.mxu0 %v1516
    %1964 = vmatpush1.bf16.msra.mxu0 %v1515
    %1965 = vmatprep.subr.bf16.mxu0 %v1518
    %1966 = vmatpush1.bf16.msra.mxu0 %v1517
    %1967 = vmatprep.subr.bf16.mxu0 %v1520
    %1968 = vmatpush1.bf16.msra.mxu0 %v1519
    %1969 = vmatprep.subr.bf16.mxu0 0
    %1970 = vmatpush1.bf16.msra.mxu0 0
    %1971 = vmatprep.subr.bf16.mxu0 0
    %1972 = vmatpush1.bf16.msra.mxu0 0
    %1973 = vmatprep.subr.bf16.mxu0 0
    %1974 = vmatpush1.bf16.msra.mxu0 0
    %1975 = vmatprep.subr.bf16.mxu0 0
    %1976 = vmatpush1.bf16.msra.mxu0 0
    %1977 = vmatprep.subr.bf16.mxu0 0
    %1978 = vmatpush1.bf16.msra.mxu0 0
    %1979 = vmatprep.subr.bf16.mxu0 0
    %1980 = vmatpush1.bf16.msra.mxu0 0
    %1981 = vmatprep.subr.bf16.mxu0 0
    %1982 = vmatpush1.bf16.msra.mxu0 0
    %1983 = vmatprep.subr.bf16.mxu0 0
    %1984 = vmatpush1.bf16.msra.mxu0 0
    %1985 = vmatprep.subr.bf16.mxu0 0
    %1986 = vmatpush1.bf16.msra.mxu0 0
    %1987 = vmatprep.subr.bf16.mxu0 0
    %1988 = vmatpush1.bf16.msra.mxu0 0
    %1989 = vmatprep.subr.bf16.mxu0 0
    %1990 = vmatpush1.bf16.msra.mxu0 0
    %1991 = vmatprep.subr.bf16.mxu0 0
    %1992 = vmatpush1.bf16.msra.mxu0 0
    %1993 = vmatprep.mubr.bf16.mxu0 0
    %1994 = vmatmul.mubr.bf16.gmra.mrb[0].mxu0 %v1959
    %v1995 = vpop.f32.mrb[0].mxu0
    %v1996 = vadd.f32 0.0, %v1995
    %v1997 = vpop.f32.mrb[0].mxu0
    %v1998 = vadd.f32 0.0, %v1997
    %v1999 = vpop.f32.mrb[0].mxu0
    %v2000 = vpop.f32.mrb[0].mxu0
    %2001 = vdwg.mxu0
    %v2002 = vld [vmem:[%s748] sm:$0xf]
    %v2003 = vunpack.c.l.bf16 %v2002
    %v2004 = vadd.f32 %v2003, %v1996
    %v2005 = vld [vmem:[%s744 + $0x4] sm:$0xf]
    %v2006 = vunpack.c.l.bf16 %v2005
    %v2007 = vadd.f32 %v2006, %v1998
    %v2008 = vxor.u32 %v2004, 2147483648
    %v2009 = vmul.f32 %v2008, 1.442695
    %v2010 = vpow.pop %v2009
    %v2011 = vadd.f32 %v2010, 1.0
    %v2012 = vrcp.pop %v2011
    %v2013 = vmul.f32 1.0, %v2012
    %v2014 = vtanh.pop %v2004
    %v2015 = vmul.f32 %v2013, %v1917
    %2017 = vrot.lane.b32.xlu0 %v2014, 64
    %v2018 = vpop.permute.xlu0 %2017
    %v2020 = vmul.f32 %v2013, %v2018
    %2022 = vrot.lane.b32.xlu0 %v2020, 32
    %v2023 = vpop.permute.xlu0 %2022
    %v2025 = vadd.f32 %v2015, %v2023
    %v2026 = vtanh.pop %v2025
    %2028 = vrot.lane.b32.xlu0 %v2026, 64
    %v2029 = vpop.permute.xlu0 %2028
    %v2031 = vmul.f32 %v2013, %v2029
    %v2032 = vxor.u32 %v2007, 2147483648
    %v2033 = vmul.f32 %v2032, 1.442695
    %v2034 = vpow.pop %v2033
    %v2035 = vadd.f32 %v2034, 1.0
    %v2036 = vrcp.pop %v2035
    %v2037 = vmul.f32 1.0, %v2036
    %v2038 = vtanh.pop %v2007
    %v2039 = vmul.f32 %v2037, %v1941
    %2041 = vrot.lane.b32.xlu0 %v2038, 64
    %v2042 = vpop.permute.xlu0 %2041
    %v2044 = vmul.f32 %v2037, %v2042
    %2046 = vrot.lane.b32.xlu0 %v2044, 32
    %v2047 = vpop.permute.xlu0 %2046
    %v2049 = vadd.f32 %v2039, %v2047
    %v2050 = vtanh.pop %v2049
    %2052 = vrot.lane.b32.xlu0 %v2050, 64
    %v2053 = vpop.permute.xlu0 %2052
    %v2055 = vmul.f32 %v2037, %v2053
    %2057 = vrot.lane.b32.xlu0 %v2031, 32
    %v2058 = vpop.permute.xlu0 %2057
    %2061 = vrot.lane.b32.xlu0 %v2055, 64
    %v2062 = vpop.permute.xlu0 %2061
    %v2064 = vsel %vm151, %v2058, %v2062
    %v2065 = vpack.c.bf16 %v2064, %v2064
    %v2067 = vsel %vm358, %v2065, 0
    %2069 = vmatprep.subr.bf16.mxu0 %v1514
    %2070 = vmatpush1.bf16.msra.mxu0 %v1513
    %2071 = vmatprep.subr.bf16.mxu0 %v1516
    %2072 = vmatpush1.bf16.msra.mxu0 %v1515
    %2073 = vmatprep.subr.bf16.mxu0 %v1518
    %2074 = vmatpush1.bf16.msra.mxu0 %v1517
    %2075 = vmatprep.subr.bf16.mxu0 %v1520
    %2076 = vmatpush1.bf16.msra.mxu0 %v1519
    %2077 = vmatprep.subr.bf16.mxu0 0
    %2078 = vmatpush1.bf16.msra.mxu0 0
    %2079 = vmatprep.subr.bf16.mxu0 0
    %2080 = vmatpush1.bf16.msra.mxu0 0
    %2081 = vmatprep.subr.bf16.mxu0 0
    %2082 = vmatpush1.bf16.msra.mxu0 0
    %2083 = vmatprep.subr.bf16.mxu0 0
    %2084 = vmatpush1.bf16.msra.mxu0 0
    %2085 = vmatprep.subr.bf16.mxu0 0
    %2086 = vmatpush1.bf16.msra.mxu0 0
    %2087 = vmatprep.subr.bf16.mxu0 0
    %2088 = vmatpush1.bf16.msra.mxu0 0
    %2089 = vmatprep.subr.bf16.mxu0 0
    %2090 = vmatpush1.bf16.msra.mxu0 0
    %2091 = vmatprep.subr.bf16.mxu0 0
    %2092 = vmatpush1.bf16.msra.mxu0 0
    %2093 = vmatprep.subr.bf16.mxu0 0
    %2094 = vmatpush1.bf16.msra.mxu0 0
    %2095 = vmatprep.subr.bf16.mxu0 0
    %2096 = vmatpush1.bf16.msra.mxu0 0
    %2097 = vmatprep.subr.bf16.mxu0 0
    %2098 = vmatpush1.bf16.msra.mxu0 0
    %2099 = vmatprep.subr.bf16.mxu0 0
    %2100 = vmatpush1.bf16.msra.mxu0 0
    %2101 = vmatprep.mubr.bf16.mxu0 0
    %2102 = vmatmul.mubr.bf16.gmra.mrb[0].mxu0 %v2067
    %v2103 = vpop.f32.mrb[0].mxu0
    %v2104 = vadd.f32 0.0, %v2103
    %v2105 = vpop.f32.mrb[0].mxu0
    %v2106 = vadd.f32 0.0, %v2105
    %v2107 = vpop.f32.mrb[0].mxu0
    %v2108 = vpop.f32.mrb[0].mxu0
    %2109 = vdwg.mxu0
    %v2110 = vld [vmem:[%s634] sm:$0xf]
    %v2111 = vunpack.c.l.bf16 %v2110
    %v2112 = vadd.f32 %v2111, %v2104
    %v2113 = vld [vmem:[%s630 + $0x4] sm:$0xf]
    %v2114 = vunpack.c.l.bf16 %v2113
    %v2115 = vadd.f32 %v2114, %v2106
    %v2116 = vxor.u32 %v2112, 2147483648
    %v2117 = vmul.f32 %v2116, 1.442695
    %v2118 = vpow.pop %v2117
    %v2119 = vadd.f32 %v2118, 1.0
    %v2120 = vrcp.pop %v2119
    %v2121 = vmul.f32 1.0, %v2120
    %v2122 = vtanh.pop %v2112
    %v2123 = vmul.f32 %v2121, %v2025
    %2125 = vrot.lane.b32.xlu0 %v2122, 64
    %v2126 = vpop.permute.xlu0 %2125
    %v2128 = vmul.f32 %v2121, %v2126
    %2130 = vrot.lane.b32.xlu0 %v2128, 32
    %v2131 = vpop.permute.xlu0 %2130
    %v2133 = vadd.f32 %v2123, %v2131
    %v2134 = vtanh.pop %v2133
    %2136 = vrot.lane.b32.xlu0 %v2134, 64
    %v2137 = vpop.permute.xlu0 %2136
    %v2139 = vmul.f32 %v2121, %v2137
    %v2140 = vxor.u32 %v2115, 2147483648
    %v2141 = vmul.f32 %v2140, 1.442695
    %v2142 = vpow.pop %v2141
    %v2143 = vadd.f32 %v2142, 1.0
    %v2144 = vrcp.pop %v2143
    %v2145 = vmul.f32 1.0, %v2144
    %v2146 = vtanh.pop %v2115
    %v2147 = vmul.f32 %v2145, %v2049
    %2149 = vrot.lane.b32.xlu0 %v2146, 64
    %v2150 = vpop.permute.xlu0 %2149
    %v2152 = vmul.f32 %v2145, %v2150
    %2154 = vrot.lane.b32.xlu0 %v2152, 32
    %v2155 = vpop.permute.xlu0 %2154
    %v2157 = vadd.f32 %v2147, %v2155
    %v2158 = vtanh.pop %v2157
    %2160 = vrot.lane.b32.xlu0 %v2158, 64
    %v2161 = vpop.permute.xlu0 %2160
    %v2163 = vmul.f32 %v2145, %v2161
    %2165 = vrot.lane.b32.xlu0 %v2139, 32
    %v2166 = vpop.permute.xlu0 %2165
    %2169 = vrot.lane.b32.xlu0 %v2163, 64
    %v2170 = vpop.permute.xlu0 %2169
    %v2172 = vsel %vm151, %v2166, %v2170
    %v2173 = vpack.c.bf16 %v2172, %v2172
    %v2175 = vsel %vm358, %v2173, 0
    %2177 = vmatprep.subr.bf16.mxu0 %v1514
    %2178 = vmatpush1.bf16.msra.mxu0 %v1513
    %2179 = vmatprep.subr.bf16.mxu0 %v1516
    %2180 = vmatpush1.bf16.msra.mxu0 %v1515
    %2181 = vmatprep.subr.bf16.mxu0 %v1518
    %2182 = vmatpush1.bf16.msra.mxu0 %v1517
    %2183 = vmatprep.subr.bf16.mxu0 %v1520
    %2184 = vmatpush1.bf16.msra.mxu0 %v1519
    %2185 = vmatprep.subr.bf16.mxu0 0
    %2186 = vmatpush1.bf16.msra.mxu0 0
    %2187 = vmatprep.subr.bf16.mxu0 0
    %2188 = vmatpush1.bf16.msra.mxu0 0
    %2189 = vmatprep.subr.bf16.mxu0 0
    %2190 = vmatpush1.bf16.msra.mxu0 0
    %2191 = vmatprep.subr.bf16.mxu0 0
    %2192 = vmatpush1.bf16.msra.mxu0 0
    %2193 = vmatprep.subr.bf16.mxu0 0
    %2194 = vmatpush1.bf16.msra.mxu0 0
    %2195 = vmatprep.subr.bf16.mxu0 0
    %2196 = vmatpush1.bf16.msra.mxu0 0
    %2197 = vmatprep.subr.bf16.mxu0 0
    %2198 = vmatpush1.bf16.msra.mxu0 0
    %2199 = vmatprep.subr.bf16.mxu0 0
    %2200 = vmatpush1.bf16.msra.mxu0 0
    %2201 = vmatprep.subr.bf16.mxu0 0
    %2202 = vmatpush1.bf16.msra.mxu0 0
    %2203 = vmatprep.subr.bf16.mxu0 0
    %2204 = vmatpush1.bf16.msra.mxu0 0
    %2205 = vmatprep.subr.bf16.mxu0 0
    %2206 = vmatpush1.bf16.msra.mxu0 0
    %2207 = vmatprep.subr.bf16.mxu0 0
    %2208 = vmatpush1.bf16.msra.mxu0 0
    %2209 = vmatprep.mubr.bf16.mxu0 0
    %2210 = vmatmul.mubr.bf16.gmra.mrb[0].mxu0 %v2175
    %v2211 = vpop.f32.mrb[0].mxu0
    %v2212 = vadd.f32 0.0, %v2211
    %v2213 = vpop.f32.mrb[0].mxu0
    %v2214 = vadd.f32 0.0, %v2213
    %v2215 = vpop.f32.mrb[0].mxu0
    %v2216 = vpop.f32.mrb[0].mxu0
    %2217 = vdwg.mxu0
    %v2218 = vld [vmem:[%s520] sm:$0xf]
    %v2219 = vunpack.c.l.bf16 %v2218
    %v2220 = vadd.f32 %v2219, %v2212
    %v2221 = vld [vmem:[%s516 + $0x4] sm:$0xf]
    %v2222 = vunpack.c.l.bf16 %v2221
    %v2223 = vadd.f32 %v2222, %v2214
    %v2224 = vxor.u32 %v2220, 2147483648
    %v2225 = vmul.f32 %v2224, 1.442695
    %v2226 = vpow.pop %v2225
    %v2227 = vadd.f32 %v2226, 1.0
    %v2228 = vrcp.pop %v2227
    %v2229 = vmul.f32 1.0, %v2228
    %v2230 = vtanh.pop %v2220
    %v2231 = vmul.f32 %v2229, %v2133
    %2233 = vrot.lane.b32.xlu0 %v2230, 64
    %v2234 = vpop.permute.xlu0 %2233
    %v2236 = vmul.f32 %v2229, %v2234
    %2238 = vrot.lane.b32.xlu0 %v2236, 32
    %v2239 = vpop.permute.xlu0 %2238
    %v2241 = vadd.f32 %v2231, %v2239
    %v2242 = vtanh.pop %v2241
    %2244 = vrot.lane.b32.xlu0 %v2242, 64
    %v2245 = vpop.permute.xlu0 %2244
    %v2247 = vmul.f32 %v2229, %v2245
    %v2248 = vxor.u32 %v2223, 2147483648
    %v2249 = vmul.f32 %v2248, 1.442695
    %v2250 = vpow.pop %v2249
    %v2251 = vadd.f32 %v2250, 1.0
    %v2252 = vrcp.pop %v2251
    %v2253 = vmul.f32 1.0, %v2252
    %v2254 = vtanh.pop %v2223
    %v2255 = vmul.f32 %v2253, %v2157
    %2257 = vrot.lane.b32.xlu0 %v2254, 64
    %v2258 = vpop.permute.xlu0 %2257
    %v2260 = vmul.f32 %v2253, %v2258
    %2262 = vrot.lane.b32.xlu0 %v2260, 32
    %v2263 = vpop.permute.xlu0 %2262
    %v2265 = vadd.f32 %v2255, %v2263
    %v2266 = vtanh.pop %v2265
    %2268 = vrot.lane.b32.xlu0 %v2266, 64
    %v2269 = vpop.permute.xlu0 %2268
    %v2271 = vmul.f32 %v2253, %v2269
    %2273 = vrot.lane.b32.xlu0 %v2247, 32
    %v2274 = vpop.permute.xlu0 %2273
    %2277 = vrot.lane.b32.xlu0 %v2271, 64
    %v2278 = vpop.permute.xlu0 %2277
    %v2280 = vsel %vm151, %v2274, %v2278
    %v2281 = vpack.c.bf16 %v2280, %v2280
    %v2283 = vsel %vm358, %v2281, 0
    %2285 = vmatprep.subr.bf16.mxu0 %v1514
    %2286 = vmatpush1.bf16.msra.mxu0 %v1513
    %2287 = vmatprep.subr.bf16.mxu0 %v1516
    %2288 = vmatpush1.bf16.msra.mxu0 %v1515
    %2289 = vmatprep.subr.bf16.mxu0 %v1518
    %2290 = vmatpush1.bf16.msra.mxu0 %v1517
    %2291 = vmatprep.subr.bf16.mxu0 %v1520
    %2292 = vmatpush1.bf16.msra.mxu0 %v1519
    %2293 = vmatprep.subr.bf16.mxu0 0
    %2294 = vmatpush1.bf16.msra.mxu0 0
    %2295 = vmatprep.subr.bf16.mxu0 0
    %2296 = vmatpush1.bf16.msra.mxu0 0
    %2297 = vmatprep.subr.bf16.mxu0 0
    %2298 = vmatpush1.bf16.msra.mxu0 0
    %2299 = vmatprep.subr.bf16.mxu0 0
    %2300 = vmatpush1.bf16.msra.mxu0 0
    %2301 = vmatprep.subr.bf16.mxu0 0
    %2302 = vmatpush1.bf16.msra.mxu0 0
    %2303 = vmatprep.subr.bf16.mxu0 0
    %2304 = vmatpush1.bf16.msra.mxu0 0
    %2305 = vmatprep.subr.bf16.mxu0 0
    %2306 = vmatpush1.bf16.msra.mxu0 0
    %2307 = vmatprep.subr.bf16.mxu0 0
    %2308 = vmatpush1.bf16.msra.mxu0 0
    %2309 = vmatprep.subr.bf16.mxu0 0
    %2310 = vmatpush1.bf16.msra.mxu0 0
    %2311 = vmatprep.subr.bf16.mxu0 0
    %2312 = vmatpush1.bf16.msra.mxu0 0
    %2313 = vmatprep.subr.bf16.mxu0 0
    %2314 = vmatpush1.bf16.msra.mxu0 0
    %2315 = vmatprep.subr.bf16.mxu0 0
    %2316 = vmatpush1.bf16.msra.mxu0 0
    %2317 = vmatprep.mubr.bf16.mxu0 0
    %2318 = vmatmul.mubr.bf16.gmra.mrb[0].mxu0 %v2283
    %v2319 = vpop.f32.mrb[0].mxu0
    %v2320 = vadd.f32 0.0, %v2319
    %v2321 = vpop.f32.mrb[0].mxu0
    %v2322 = vpop.f32.mrb[0].mxu0
    %v2323 = vpop.f32.mrb[0].mxu0
    %2324 = vdwg.mxu0
    %v2325 = vld [vmem:[%s406] sm:$0xf]
    %v2326 = vunpack.c.l.bf16 %v2325
    %v2327 = vadd.f32 %v2326, %v2320
    %v2328 = vxor.u32 %v2327, 2147483648
    %v2329 = vmul.f32 %v2328, 1.442695
    %v2330 = vpow.pop %v2329
    %v2331 = vadd.f32 %v2330, 1.0
    %v2332 = vrcp.pop %v2331
    %v2333 = vmul.f32 1.0, %v2332
    %v2334 = vtanh.pop %v2327
    %v2335 = vmul.f32 %v2333, %v2241
    %2337 = vrot.lane.b32.xlu0 %v2334, 64
    %v2338 = vpop.permute.xlu0 %2337
    %v2340 = vmul.f32 %v2333, %v2338
    %2342 = vrot.lane.b32.xlu0 %v2340, 32
    %v2343 = vpop.permute.xlu0 %2342
    %v2345 = vadd.f32 %v2335, %v2343
    %v2346 = vtanh.pop %v2345
    %2348 = vrot.lane.b32.xlu0 %v2346, 64
    %v2349 = vpop.permute.xlu0 %2348
    %v2351 = vmul.f32 %v2333, %v2349
    %2353 = vrot.lane.b32.xlu0 %v2351, 32
    %v2354 = vpop.permute.xlu0 %2353
    %v2356 = vsel %vm151, %v2354, %v1630
    %v2357 = vld [vmem:[%s7] sm:$0x1]
    %v2359 = vlaneseq
    %v2360 = vshrl.u32 %v2359, 7
    %v2361 = vsub.s32 0, %v2360
    %v2362 = vrot.slane %v2357, %v2361
    %v2364 = vmul.f32 %v2356, %v2362
    %v2365 = vsel %vm358, %v2364, 0.0
    %2366 = vadd.xlane.f32.xlu0 %v2365
    %v2367 = vpop.xlane.xlu0 %2366
    %v2368 = vld [vmem:[#allocation4] sm:$0x1]
    %v2370 = vlaneseq
    %v2371 = vshrl.u32 %v2370, 7
    %v2372 = vsub.s32 0, %v2371
    %v2373 = vrot.slane %v2368, %v2372
    %v2375 = vadd.f32 %v2367, %v2373
    %v2376 = vxor.u32 %v2375, 2147483648
    %v2377 = vmul.f32 %v2376, 1.442695
    %v2378 = vpow.pop %v2377
    %v2379 = vadd.f32 %v2378, 1.0
    %v2380 = vrcp.pop %v2379
    %v2381 = vmul.f32 1.0, %v2380
    %vm2382 = vcmask 7168
    %2383 = vst.msk [vmem:[%s9] sm:$0xff] %vm2382, %v2381
    // Predicated region
    $region58: #{tpu_custom_call.1} parent=1 // pred_check
      _
    $region59: #{tpu_custom_call.1} parent=1 // pred_check_branch
      %2385 = sbr.rel (0) target = $region61
    $region60: #{tpu_custom_call.1} parent=1 // pred_region
      _
    $region61: #{tpu_custom_call.1} parent=1 // pred_fallthru
      _
    // Predicated region
    $region62: #{tpu_custom_call.1} parent=1 // pred_check
      _
    $region63: #{tpu_custom_call.1} parent=1 // pred_check_branch
      %2387 = sbr.rel (0) target = $region65
    $region64: #{tpu_custom_call.1} parent=1 // pred_region
      _
    $region65: #{tpu_custom_call.1} parent=1 // pred_fallthru
      _
    %2388 = vsyncpa [#allocation6], 1
    %2389 = vsyncpa [#allocation8], 1
    %2390 = vsyncpa [#allocation11], 1

</llo_original>
